<compile_context>
chip_gen: v6e
topology: v6e:2x2x1
jax: 0.10.0
libtpu: 0.0.40
codegen_flags: <defaults>
</compile_context>

<pallas_src>
import jax
import jax.numpy as jnp
from jax.experimental import pallas as pl
from jax.experimental.pallas import tpu as pltpu

EPS = 1e-5
LANE = 128                      # pad every matmul output (feature) dim to this
ROW_ALIGN = 32                  # row-tile alignment (covers f32/bf16 packing)
ROW_TILE = 512                  # target rows per grid step (fits VMEM easily,
                                # sized conservatively for v7x's 64 MiB VMEM)
COMPUTE_DTYPE = jnp.bfloat16    # MXU operand dtype; accumulation is f32


def _round_up(x, m):
    return (x + m - 1) // m * m


def _row_tiling(m):
    """Pick (tile_rows, padded_rows): tile <= ~ROW_TILE, multiple of ROW_ALIGN."""
    nt = max(1, -(-m // ROW_TILE))
    tile = _round_up(-(-m // nt), ROW_ALIGN)
    return tile, nt * tile


# ----------------------------- Pallas kernels ------------------------------ #
def _matmul_stats_kernel(x_ref, w_ref, y_ref, stats_ref):
    """One M-tile of y = x @ w (bf16 operands, f32 accum) plus per-column
    partial sum / sum-of-squares for cross-tile BatchNorm statistics."""
    y = jnp.dot(x_ref[...], w_ref[...], preferred_element_type=jnp.float32)
    y_ref[...] = y
    s = jnp.sum(y, axis=0, keepdims=True)          # (1, Np)
    ss = jnp.sum(y * y, axis=0, keepdims=True)     # (1, Np)
    pad = jnp.zeros((6, y.shape[1]), jnp.float32)
    stats_ref[...] = jnp.concatenate([s, ss, pad], axis=0)   # (8, Np) block


def _affine_relu_kernel(y_ref, scale_ref, shift_ref, o_ref):
    """Folded BatchNorm (y*scale + shift) + ReLU over one M-tile."""
    o_ref[...] = jnp.maximum(
        y_ref[...] * scale_ref[...] + shift_ref[...], 0.0).astype(o_ref.dtype)


def _fc_head_kernel(x_ref, w1_ref, g4_ref, b4_ref, w2_ref, g5_ref, b5_ref,
                    w3_ref, o_ref):
    """Fused fc1 -> BN(batch stats) -> ReLU -> fc2 -> BN -> ReLU -> fc3."""
    def bn_relu(y, g, b):
        mean = jnp.mean(y, axis=0, keepdims=True)
        var = jnp.maximum(jnp.mean(y * y, axis=0, keepdims=True) - mean * mean, 0.0)
        return jnp.maximum((y - mean) * jax.lax.rsqrt(var + EPS) * g + b, 0.0)

    h = jnp.dot(x_ref[...], w1_ref[...], preferred_element_type=jnp.float32)
    h = bn_relu(h, g4_ref[...], b4_ref[...]).astype(COMPUTE_DTYPE)
    h = jnp.dot(h, w2_ref[...], preferred_element_type=jnp.float32)
    h = bn_relu(h, g5_ref[...], b5_ref[...]).astype(COMPUTE_DTYPE)
    o_ref[...] = jnp.dot(h, w3_ref[...], preferred_element_type=jnp.float32)


# ----------------------------- Pallas wrappers ------------------------------ #
def matmul_with_col_stats(x_pad, w_pad, tile_m):
    """x_pad: (Mpad, Kpad) bf16, w_pad: (Kpad, Npad) bf16.
    Returns (y (Mpad, Npad) f32, stats (ntiles*8, Npad) f32)."""
    mp, kp = x_pad.shape
    _, np_ = w_pad.shape
    nt = mp // tile_m
    return pl.pallas_call(
        _matmul_stats_kernel,
        out_shape=(jax.ShapeDtypeStruct((mp, np_), jnp.float32),
                   jax.ShapeDtypeStruct((nt * 8, np_), jnp.float32)),
        grid=(nt,),
        in_specs=[pl.BlockSpec((tile_m, kp), lambda i: (i, 0)),
                  pl.BlockSpec((kp, np_), lambda i: (0, 0))],
        out_specs=(pl.BlockSpec((tile_m, np_), lambda i: (i, 0)),
                   pl.BlockSpec((8, np_), lambda i: (i, 0))),
        compiler_params=pltpu.CompilerParams(
            dimension_semantics=("parallel",)),
    )(x_pad, w_pad)


def affine_relu(y, scale, shift, tile_m, out_dtype):
    """Tiled y*scale + shift then ReLU. y: (Mpad, Npad) f32."""
    mp, np_ = y.shape
    nt = mp // tile_m
    return pl.pallas_call(
        _affine_relu_kernel,
        out_shape=jax.ShapeDtypeStruct((mp, np_), out_dtype),
        grid=(nt,),
        in_specs=[pl.BlockSpec((tile_m, np_), lambda i: (i, 0)),
                  pl.BlockSpec((1, np_), lambda i: (0, 0)),
                  pl.BlockSpec((1, np_), lambda i: (0, 0))],
        out_specs=pl.BlockSpec((tile_m, np_), lambda i: (i, 0)),
        compiler_params=pltpu.CompilerParams(
            dimension_semantics=("parallel",)),
    )(y, scale.reshape(1, np_), shift.reshape(1, np_))


def fc_head(x_pad, fc):
    """Single fused kernel for the 3-layer FC head (everything fits in VMEM)."""
    b = x_pad.shape[0]
    nop = fc["w3"].shape[1]
    vmem = pl.BlockSpec(memory_space=pltpu.MemorySpace.VMEM)
    return pl.pallas_call(
        _fc_head_kernel,
        out_shape=jax.ShapeDtypeStruct((b, nop), jnp.float32),
        in_specs=[vmem] * 8,
        out_specs=vmem,
    )(x_pad, fc["w1"], fc["g4"], fc["b4"], fc["w2"], fc["g5"], fc["b5"], fc["w3"])


# ------------------------------ JAX glue ----------------------------------- #
def im2col_nhwc(x, k):
    """x: (N,H,W,C) -> cols: (N*Ho*Wo, C*k*k), column order (Cin, kh, kw)
    matching PyTorch's Conv2d weight flattening."""
    n, h, w, c = x.shape
    ho, wo = h - k + 1, w - k + 1
    pats = jnp.stack(
        [x[:, di:di + ho, dj:dj + wo, :] for di in range(k) for dj in range(k)],
        axis=3,
    )  # (N, Ho, Wo, k*k, C)
    pats = pats.reshape(n, ho, wo, k, k, c)
    pats = jnp.transpose(pats, (0, 1, 2, 5, 3, 4))  # (N,Ho,Wo,C,kh,kw)
    return pats.reshape(n * ho * wo, c * k * k), (n, ho, wo)


def maxpool2x2_nhwc(x):
    """Floor-mode 2x2 max pool, stride 2. x: (N,H,W,C)."""
    n, h, w, c = x.shape
    hp, wp = h // 2, w // 2
    x = x[:, : hp * 2, : wp * 2, :]
    return jnp.max(x.reshape(n, hp, 2, wp, 2, c), axis=(2, 4))


def conv_block(x_nhwc, layer, cout, k):
    """conv(no bias) -> BN(batch stats) -> ReLU -> [dropout=id] -> maxpool(2)."""
    cols, (n, ho, wo) = im2col_nhwc(x_nhwc, k)
    m, kdim = cols.shape
    kp, np_ = layer["w"].shape
    tile_m, mp = _row_tiling(m)
    # Zero-pad rows to the tile grid and K to the padded weight K; zero rows
    # contribute nothing to the column sums so stats below use the true M.
    cols = jnp.pad(cols, ((0, mp - m), (0, kp - kdim))).astype(COMPUTE_DTYPE)

    y, stats = matmul_with_col_stats(cols, layer["w"], tile_m)

    # Cross-tile BatchNorm statistics (biased variance, full-batch).
    sums = jnp.sum(stats.reshape(-1, 8, np_), axis=0)      # (8, Np)
    mean = sums[0] / m
    var = jnp.maximum(sums[1] / m - mean * mean, 0.0)
    inv = jax.lax.rsqrt(var + EPS)
    scale = layer["gamma"] * inv
    shift = layer["beta"] - mean * scale

    a = affine_relu(y, scale, shift, tile_m, COMPUTE_DTYPE)
    a = a[:m, :cout].reshape(n, ho, wo, cout)
    return maxpool2x2_nhwc(a)


# ------------------------------ Parameters ---------------------------------- #
def init_params(key, n_outputs=10, channels=(8, 16, 32, 64)):
    c1, c2, c3, c4 = channels
    smid = 2  # (((32-4+1)//2 -3+1)//2 -2+1)//2 = 2 for 32x32 input
    flat = c3 * smid * smid

    def u(key, shape, fan_in):
        bound = 1.0 / jnp.sqrt(jnp.float32(fan_in))
        return jax.random.uniform(key, shape, jnp.float32, -bound, bound)

    ks = jax.random.split(key, 6)
    return {
        "conv1_w": u(ks[0], (c1, 3, 4, 4), 3 * 4 * 4),
        "conv2_w": u(ks[1], (c2, c1, 3, 3), c1 * 3 * 3),
        "conv3_w": u(ks[2], (c3, c2, 2, 2), c2 * 2 * 2),
        "fc1_w": u(ks[3], (c4, flat), flat),   # PyTorch Linear layout: (out, in)
        "fc2_w": u(ks[4], (c4, c4), c4),
        "fc3_w": u(ks[5], (n_outputs, c4), c4),
        "bn1_g": jnp.ones((c1,), jnp.float32), "bn1_b": jnp.zeros((c1,), jnp.float32),
        "bn2_g": jnp.ones((c2,), jnp.float32), "bn2_b": jnp.zeros((c2,), jnp.float32),
        "bn3_g": jnp.ones((c3,), jnp.float32), "bn3_b": jnp.zeros((c3,), jnp.float32),
        "bn4_g": jnp.ones((c4,), jnp.float32), "bn4_b": jnp.zeros((c4,), jnp.float32),
        "bn5_g": jnp.ones((c4,), jnp.float32), "bn5_b": jnp.zeros((c4,), jnp.float32),
    }


def prepare_params(params):
    """Pre-transpose + zero-pad weights into lane-dense matmul layout, once."""
    def pad2(a, rows, cols):
        r, c = a.shape
        return jnp.pad(a, ((0, rows - r), (0, cols - c)))

    prep = {}
    for i, name in enumerate(("conv1", "conv2", "conv3"), start=1):
        w = params[f"{name}_w"]                      # (Cout, Cin, k, k)
        cout, cin, k, _ = w.shape
        kdim = cin * k * k
        kp, np_ = _round_up(kdim, 8), _round_up(cout, LANE)
        w2 = w.reshape(cout, kdim).T                 # (K, Cout), (Cin,kh,kw) order
        prep[name] = {
            "w": pad2(w2, kp, np_).astype(COMPUTE_DTYPE),
            "gamma": jnp.pad(params[f"bn{i}_g"], (0, np_ - cout), constant_values=1.0),
            "beta": jnp.pad(params[f"bn{i}_b"], (0, np_ - cout)),
        }

    w1, w2, w3 = params["fc1_w"].T, params["fc2_w"].T, params["fc3_w"].T
    f1, c4 = w1.shape
    nout = w3.shape[1]
    f1p, c4p, nop = _round_up(f1, LANE), _round_up(c4, LANE), _round_up(nout, LANE)
    prep["fc"] = {
        "w1": pad2(w1, f1p, c4p).astype(COMPUTE_DTYPE),
        "g4": jnp.pad(params["bn4_g"], (0, c4p - c4), constant_values=1.0).reshape(1, c4p),
        "b4": jnp.pad(params["bn4_b"], (0, c4p - c4)).reshape(1, c4p),
        "w2": pad2(w2, c4p, c4p).astype(COMPUTE_DTYPE),
        "g5": jnp.pad(params["bn5_g"], (0, c4p - c4), constant_values=1.0).reshape(1, c4p),
        "b5": jnp.pad(params["bn5_b"], (0, c4p - c4)).reshape(1, c4p),
        "w3": pad2(w3, c4p, nop).astype(COMPUTE_DTYPE),
    }
    return prep


# ------------------------------- Forward ------------------------------------ #
def make_forward(channels, n_outputs):
    c1, c2, c3, _ = channels
    conv_cfg = (("conv1", 4, c1), ("conv2", 3, c2), ("conv3", 2, c3))

    @jax.jit
    def forward(prep, x_nchw):
        # TODO(synk): dropout layers are identity (inference-mode forward).
        bsz = x_nchw.shape[0]
        x = jnp.transpose(x_nchw, (0, 2, 3, 1))        # NCHW -> NHWC
        for name, k, cout in conv_cfg:
            x = conv_block(x, prep[name], cout, k)
        # flatten in PyTorch NCHW order: (N, C, H, W) -> (N, C*H*W)
        x = jnp.transpose(x, (0, 3, 1, 2)).reshape(bsz, -1)
        f1 = x.shape[1]
        f1p = prep["fc"]["w1"].shape[0]
        x = jnp.pad(x, ((0, 0), (0, f1p - f1))).astype(COMPUTE_DTYPE)
        y = fc_head(x, prep["fc"])
        return y[:, :n_outputs]

    return forward


# --------------------------- Pure-JAX reference ----------------------------- #
def _ref_bn(y, gamma, beta, axes):
    mean = jnp.mean(y, axis=axes, keepdims=True)
    var = jnp.mean(jnp.square(y - mean), axis=axes, keepdims=True)
    return (y - mean) * jax.lax.rsqrt(var + EPS) * gamma + beta


def reference_forward(params, x_nchw):
    """Pure-JAX reference. Conv/matmul operands are cast to bf16 with f32
    accumulation to mirror the kernel's deliberate MXU dtype choice; all BN /
    elementwise math stays in f32."""
    bsz = x_nchw.shape[0]
    x = jnp.transpose(x_nchw, (0, 2, 3, 1))
    dn = ("NHWC", "OIHW", "NHWC")

    def block(x, w, g, b):
        y = jax.lax.conv_general_dilated(
            x.astype(COMPUTE_DTYPE), w.astype(COMPUTE_DTYPE), (1, 1), "VALID",
            dimension_numbers=dn, preferred_element_type=jnp.float32)
        y = jnp.maximum(
            _ref_bn(y, g.reshape(1, 1, 1, -1), b.reshape(1, 1, 1, -1), (0, 1, 2)), 0.0)
        return maxpool2x2_nhwc(y)

    x = block(x, params["conv1_w"], params["bn1_g"], params["bn1_b"])
    x = block(x, params["conv2_w"], params["bn2_g"], params["bn2_b"])
    x = block(x, params["conv3_w"], params["bn3_g"], params["bn3_b"])
    x = jnp.transpose(x, (0, 3, 1, 2)).reshape(bsz, -1)

    def fc(x, w):
        return jnp.dot(x.astype(COMPUTE_DTYPE), w.T.astype(COMPUTE_DTYPE),
                       preferred_element_type=jnp.float32)

    x = jnp.maximum(_ref_bn(fc(x, params["fc1_w"]), params["bn4_g"][None],
                            params["bn4_b"][None], (0,)), 0.0)
    x = jnp.maximum(_ref_bn(fc(x, params["fc2_w"]), params["bn5_g"][None],
                            params["bn5_b"][None], (0,)), 0.0)
    return fc(x, params["fc3_w"])


# ------------------------------- main --------------------------------------- #
if __name__ == "__main__":
    key = jax.random.PRNGKey(0)
    pkey, xkey = jax.random.split(key)

    n_outputs = 10
    channels = (8, 16, 32, 64)      # small stand-ins for [64, 128, 256, 2048]
    params = init_params(pkey, n_outputs=n_outputs, channels=channels)
    prep = prepare_params(params)
    forward = make_forward(channels, n_outputs)

    # Input must be 32x32 spatial (the architecture hard-codes it); small batch.
    x = jax.random.normal(xkey, (4, 3, 32, 32), jnp.float32)   # NCHW

    y = jax.block_until_ready(forward(prep, x))
    assert y.shape == (4, n_outputs), y.shape

    y_ref = jax.block_until_ready(reference_forward(params, x))
    err = float(jnp.max(jnp.abs(y - y_ref)))
    assert jnp.allclose(y, y_ref, rtol=2e-2, atol=2e-2), f"max abs err {err}"

    print("KERNEL_OK")
</pallas_src>

<mosaic_0001>
module attributes {stable_mosaic.version = 11 : i64} {
  func.func @_matmul_stats_kernel(%arg0: i32, %arg1: memref<512x48xbf16, #tpu.memory_space<vmem>>, %arg2: memref<48x128xbf16, #tpu.memory_space<vmem>>, %arg3: memref<512x128xf32, #tpu.memory_space<vmem>>, %arg4: memref<8x128xf32, #tpu.memory_space<vmem>>) attributes {dimension_semantics = [#tpu.dimension_semantics<parallel>], iteration_bounds = array<i64: 7>, scalar_prefetch = 0 : i64, scratch_operands = 0 : i64, tpu.core_type = #tpu.core_type<tc>, window_params = [{transform_indices = @transform_0, window_bounds = array<i64: 512, 48>}, {pipeline_mode = #tpu.pipeline_mode<synchronous>, transform_indices = @transform_1, window_bounds = array<i64: 48, 128>}, {transform_indices = @transform_2, window_bounds = array<i64: 512, 128>}, {transform_indices = @transform_3, window_bounds = array<i64: 8, 128>}]} {
    %c0 = arith.constant 0 : index
    %c0_0 = arith.constant 0 : index
    %0 = vector.load %arg1[%c0, %c0_0] : memref<512x48xbf16, #tpu.memory_space<vmem>>, vector<512x48xbf16>
    %c0_1 = arith.constant 0 : index
    %c0_2 = arith.constant 0 : index
    %1 = vector.load %arg2[%c0_1, %c0_2] : memref<48x128xbf16, #tpu.memory_space<vmem>>, vector<48x128xbf16>
    %cst = arith.constant dense<0.000000e+00> : vector<512x128xf32>
    %2 = tpu.matmul %0, %1, %cst {dimension_numbers = #tpu.dot_dimension_numbers<[1], [0], [0], [1], [0, 0, 1, 1], [], []>} : vector<512x48xbf16>, vector<48x128xbf16>, vector<512x128xf32> -> vector<512x128xf32>
    %c0_3 = arith.constant 0 : index
    %c0_4 = arith.constant 0 : index
    %3 = vector.load %arg3[%c0_3, %c0_4] : memref<512x128xf32, #tpu.memory_space<vmem>>, vector<512x128xf32>
    tpu.vector_store %arg3[%c0_3, %c0_4], %2 {strides = array<i32>} : memref<512x128xf32, #tpu.memory_space<vmem>>, vector<512x128xf32>,
    %cst_5 = arith.constant dense<0.000000e+00> : vector<128xf32>
    %4 = vector.multi_reduction <add>, %2, %cst_5 [0] : vector<512x128xf32> to vector<128xf32>
    %5 = vector.shape_cast %4 : vector<128xf32> to vector<1x128xf32>
    %6 = arith.mulf %2, %2 : vector<512x128xf32>
    %cst_6 = arith.constant dense<0.000000e+00> : vector<128xf32>
    %7 = vector.multi_reduction <add>, %6, %cst_6 [0] : vector<512x128xf32> to vector<128xf32>
    %8 = vector.shape_cast %7 : vector<128xf32> to vector<1x128xf32>
    %cst_7 = arith.constant 0.000000e+00 : f32
    %9 = vector.broadcast %cst_7 : f32 to vector<6x128xf32>
    %10 = tpu.concatenate %5, %8, %9 in 0 : vector<1x128xf32>, vector<1x128xf32>, vector<6x128xf32> -> vector<8x128xf32>
    %c0_8 = arith.constant 0 : index
    %c0_9 = arith.constant 0 : index
    %11 = vector.load %arg4[%c0_8, %c0_9] : memref<8x128xf32, #tpu.memory_space<vmem>>, vector<8x128xf32>
    tpu.vector_store %arg4[%c0_8, %c0_9], %10 {strides = array<i32>} : memref<8x128xf32, #tpu.memory_space<vmem>>, vector<8x128xf32>,
    return
  }
  func.func @transform_0(%arg0: i32) -> (i32, i32) {
    %c0_i32 = arith.constant 0 : i32
    %c0_i32_0 = arith.constant 0 : i32
    return %arg0, %c0_i32 : i32, i32
  }
  func.func @transform_1(%arg0: i32) -> (i32, i32) {
    %c0_i32 = arith.constant 0 : i32
    %c0_i32_0 = arith.constant 0 : i32
    %c0_i32_1 = arith.constant 0 : i32
    return %c0_i32, %c0_i32_0 : i32, i32
  }
  func.func @transform_2(%arg0: i32) -> (i32, i32) {
    %c0_i32 = arith.constant 0 : i32
    %c0_i32_0 = arith.constant 0 : i32
    return %arg0, %c0_i32 : i32, i32
  }
  func.func @transform_3(%arg0: i32) -> (i32, i32) {
    %c0_i32 = arith.constant 0 : i32
    %c0_i32_0 = arith.constant 0 : i32
    return %arg0, %c0_i32 : i32, i32
  }
}

module attributes {stable_mosaic.version = 11 : i64} {
  func.func @_affine_relu_kernel(%arg0: i32, %arg1: memref<512x128xf32, #tpu.memory_space<vmem>>, %arg2: memref<1x128xf32, #tpu.memory_space<vmem>>, %arg3: memref<1x128xf32, #tpu.memory_space<vmem>>, %arg4: memref<512x128xbf16, #tpu.memory_space<vmem>>) attributes {dimension_semantics = [#tpu.dimension_semantics<parallel>], iteration_bounds = array<i64: 7>, scalar_prefetch = 0 : i64, scratch_operands = 0 : i64, tpu.core_type = #tpu.core_type<tc>, window_params = [{transform_indices = @transform_0, window_bounds = array<i64: 512, 128>}, {pipeline_mode = #tpu.pipeline_mode<synchronous>, transform_indices = @transform_1, window_bounds = array<i64: 1, 128>}, {pipeline_mode = #tpu.pipeline_mode<synchronous>, transform_indices = @transform_2, window_bounds = array<i64: 1, 128>}, {transform_indices = @transform_3, window_bounds = array<i64: 512, 128>}]} {
    %c0 = arith.constant 0 : index
    %c0_0 = arith.constant 0 : index
    %0 = vector.load %arg1[%c0, %c0_0] : memref<512x128xf32, #tpu.memory_space<vmem>>, vector<512x128xf32>
    %c0_1 = arith.constant 0 : index
    %c0_2 = arith.constant 0 : index
    %1 = vector.load %arg2[%c0_1, %c0_2] : memref<1x128xf32, #tpu.memory_space<vmem>>, vector<1x128xf32>
    %2 = vector.broadcast %1 : vector<1x128xf32> to vector<512x128xf32>
    %3 = arith.mulf %0, %2 : vector<512x128xf32>
    %c0_3 = arith.constant 0 : index
    %c0_4 = arith.constant 0 : index
    %4 = vector.load %arg3[%c0_3, %c0_4] : memref<1x128xf32, #tpu.memory_space<vmem>>, vector<1x128xf32>
    %5 = vector.broadcast %4 : vector<1x128xf32> to vector<512x128xf32>
    %6 = arith.addf %3, %5 : vector<512x128xf32>
    %cst = arith.constant 0.000000e+00 : f32
    %7 = vector.broadcast %cst : f32 to vector<512x128xf32>
    %8 = arith.maximumf %6, %7 : vector<512x128xf32>
    %9 = arith.truncf %8 : vector<512x128xf32> to vector<512x128xbf16>
    %c0_5 = arith.constant 0 : index
    %c0_6 = arith.constant 0 : index
    %10 = vector.load %arg4[%c0_5, %c0_6] : memref<512x128xbf16, #tpu.memory_space<vmem>>, vector<512x128xbf16>
    tpu.vector_store %arg4[%c0_5, %c0_6], %9 {strides = array<i32>} : memref<512x128xbf16, #tpu.memory_space<vmem>>, vector<512x128xbf16>,
    return
  }
  func.func @transform_0(%arg0: i32) -> (i32, i32) {
    %c0_i32 = arith.constant 0 : i32
    %c0_i32_0 = arith.constant 0 : i32
    return %arg0, %c0_i32 : i32, i32
  }
  func.func @transform_1(%arg0: i32) -> (i32, i32) {
    %c0_i32 = arith.constant 0 : i32
    %c0_i32_0 = arith.constant 0 : i32
    %c0_i32_1 = arith.constant 0 : i32
    return %c0_i32, %c0_i32_0 : i32, i32
  }
  func.func @transform_2(%arg0: i32) -> (i32, i32) {
    %c0_i32 = arith.constant 0 : i32
    %c0_i32_0 = arith.constant 0 : i32
    %c0_i32_1 = arith.constant 0 : i32
    return %c0_i32, %c0_i32_0 : i32, i32
  }
  func.func @transform_3(%arg0: i32) -> (i32, i32) {
    %c0_i32 = arith.constant 0 : i32
    %c0_i32_0 = arith.constant 0 : i32
    return %arg0, %c0_i32 : i32, i32
  }
}

module attributes {stable_mosaic.version = 11 : i64} {
  func.func @_matmul_stats_kernel(%arg0: i32, %arg1: memref<288x72xbf16, #tpu.memory_space<vmem>>, %arg2: memref<72x128xbf16, #tpu.memory_space<vmem>>, %arg3: memref<288x128xf32, #tpu.memory_space<vmem>>, %arg4: memref<8x128xf32, #tpu.memory_space<vmem>>) attributes {dimension_semantics = [#tpu.dimension_semantics<parallel>], iteration_bounds = array<i64: 2>, scalar_prefetch = 0 : i64, scratch_operands = 0 : i64, tpu.core_type = #tpu.core_type<tc>, window_params = [{transform_indices = @transform_0, window_bounds = array<i64: 288, 72>}, {pipeline_mode = #tpu.pipeline_mode<synchronous>, transform_indices = @transform_1, window_bounds = array<i64: 72, 128>}, {transform_indices = @transform_2, window_bounds = array<i64: 288, 128>}, {transform_indices = @transform_3, window_bounds = array<i64: 8, 128>}]} {
    %c0 = arith.constant 0 : index
    %c0_0 = arith.constant 0 : index
    %0 = vector.load %arg1[%c0, %c0_0] : memref<288x72xbf16, #tpu.memory_space<vmem>>, vector<288x72xbf16>
    %c0_1 = arith.constant 0 : index
    %c0_2 = arith.constant 0 : index
    %1 = vector.load %arg2[%c0_1, %c0_2] : memref<72x128xbf16, #tpu.memory_space<vmem>>, vector<72x128xbf16>
    %cst = arith.constant dense<0.000000e+00> : vector<288x128xf32>
    %2 = tpu.matmul %0, %1, %cst {dimension_numbers = #tpu.dot_dimension_numbers<[1], [0], [0], [1], [0, 0, 1, 1], [], []>} : vector<288x72xbf16>, vector<72x128xbf16>, vector<288x128xf32> -> vector<288x128xf32>
    %c0_3 = arith.constant 0 : index
    %c0_4 = arith.constant 0 : index
    %3 = vector.load %arg3[%c0_3, %c0_4] : memref<288x128xf32, #tpu.memory_space<vmem>>, vector<288x128xf32>
    tpu.vector_store %arg3[%c0_3, %c0_4], %2 {strides = array<i32>} : memref<288x128xf32, #tpu.memory_space<vmem>>, vector<288x128xf32>,
    %cst_5 = arith.constant dense<0.000000e+00> : vector<128xf32>
    %4 = vector.multi_reduction <add>, %2, %cst_5 [0] : vector<288x128xf32> to vector<128xf32>
    %5 = vector.shape_cast %4 : vector<128xf32> to vector<1x128xf32>
    %6 = arith.mulf %2, %2 : vector<288x128xf32>
    %cst_6 = arith.constant dense<0.000000e+00> : vector<128xf32>
    %7 = vector.multi_reduction <add>, %6, %cst_6 [0] : vector<288x128xf32> to vector<128xf32>
    %8 = vector.shape_cast %7 : vector<128xf32> to vector<1x128xf32>
    %cst_7 = arith.constant 0.000000e+00 : f32
    %9 = vector.broadcast %cst_7 : f32 to vector<6x128xf32>
    %10 = tpu.concatenate %5, %8, %9 in 0 : vector<1x128xf32>, vector<1x128xf32>, vector<6x128xf32> -> vector<8x128xf32>
    %c0_8 = arith.constant 0 : index
    %c0_9 = arith.constant 0 : index
    %11 = vector.load %arg4[%c0_8, %c0_9] : memref<8x128xf32, #tpu.memory_space<vmem>>, vector<8x128xf32>
    tpu.vector_store %arg4[%c0_8, %c0_9], %10 {strides = array<i32>} : memref<8x128xf32, #tpu.memory_space<vmem>>, vector<8x128xf32>,
    return
  }
  func.func @transform_0(%arg0: i32) -> (i32, i32) {
    %c0_i32 = arith.constant 0 : i32
    %c0_i32_0 = arith.constant 0 : i32
    return %arg0, %c0_i32 : i32, i32
  }
  func.func @transform_1(%arg0: i32) -> (i32, i32) {
    %c0_i32 = arith.constant 0 : i32
    %c0_i32_0 = arith.constant 0 : i32
    %c0_i32_1 = arith.constant 0 : i32
    return %c0_i32, %c0_i32_0 : i32, i32
  }
  func.func @transform_2(%arg0: i32) -> (i32, i32) {
    %c0_i32 = arith.constant 0 : i32
    %c0_i32_0 = arith.constant 0 : i32
    return %arg0, %c0_i32 : i32, i32
  }
  func.func @transform_3(%arg0: i32) -> (i32, i32) {
    %c0_i32 = arith.constant 0 : i32
    %c0_i32_0 = arith.constant 0 : i32
    return %arg0, %c0_i32 : i32, i32
  }
}

module attributes {stable_mosaic.version = 11 : i64} {
  func.func @_affine_relu_kernel(%arg0: i32, %arg1: memref<288x128xf32, #tpu.memory_space<vmem>>, %arg2: memref<1x128xf32, #tpu.memory_space<vmem>>, %arg3: memref<1x128xf32, #tpu.memory_space<vmem>>, %arg4: memref<288x128xbf16, #tpu.memory_space<vmem>>) attributes {dimension_semantics = [#tpu.dimension_semantics<parallel>], iteration_bounds = array<i64: 2>, scalar_prefetch = 0 : i64, scratch_operands = 0 : i64, tpu.core_type = #tpu.core_type<tc>, window_params = [{transform_indices = @transform_0, window_bounds = array<i64: 288, 128>}, {pipeline_mode = #tpu.pipeline_mode<synchronous>, transform_indices = @transform_1, window_bounds = array<i64: 1, 128>}, {pipeline_mode = #tpu.pipeline_mode<synchronous>, transform_indices = @transform_2, window_bounds = array<i64: 1, 128>}, {transform_indices = @transform_3, window_bounds = array<i64: 288, 128>}]} {
    %c0 = arith.constant 0 : index
    %c0_0 = arith.constant 0 : index
    %0 = vector.load %arg1[%c0, %c0_0] : memref<288x128xf32, #tpu.memory_space<vmem>>, vector<288x128xf32>
    %c0_1 = arith.constant 0 : index
    %c0_2 = arith.constant 0 : index
    %1 = vector.load %arg2[%c0_1, %c0_2] : memref<1x128xf32, #tpu.memory_space<vmem>>, vector<1x128xf32>
    %2 = vector.broadcast %1 : vector<1x128xf32> to vector<288x128xf32>
    %3 = arith.mulf %0, %2 : vector<288x128xf32>
    %c0_3 = arith.constant 0 : index
    %c0_4 = arith.constant 0 : index
    %4 = vector.load %arg3[%c0_3, %c0_4] : memref<1x128xf32, #tpu.memory_space<vmem>>, vector<1x128xf32>
    %5 = vector.broadcast %4 : vector<1x128xf32> to vector<288x128xf32>
    %6 = arith.addf %3, %5 : vector<288x128xf32>
    %cst = arith.constant 0.000000e+00 : f32
    %7 = vector.broadcast %cst : f32 to vector<288x128xf32>
    %8 = arith.maximumf %6, %7 : vector<288x128xf32>
    %9 = arith.truncf %8 : vector<288x128xf32> to vector<288x128xbf16>
    %c0_5 = arith.constant 0 : index
    %c0_6 = arith.constant 0 : index
    %10 = vector.load %arg4[%c0_5, %c0_6] : memref<288x128xbf16, #tpu.memory_space<vmem>>, vector<288x128xbf16>
    tpu.vector_store %arg4[%c0_5, %c0_6], %9 {strides = array<i32>} : memref<288x128xbf16, #tpu.memory_space<vmem>>, vector<288x128xbf16>,
    return
  }
  func.func @transform_0(%arg0: i32) -> (i32, i32) {
    %c0_i32 = arith.constant 0 : i32
    %c0_i32_0 = arith.constant 0 : i32
    return %arg0, %c0_i32 : i32, i32
  }
  func.func @transform_1(%arg0: i32) -> (i32, i32) {
    %c0_i32 = arith.constant 0 : i32
    %c0_i32_0 = arith.constant 0 : i32
    %c0_i32_1 = arith.constant 0 : i32
    return %c0_i32, %c0_i32_0 : i32, i32
  }
  func.func @transform_2(%arg0: i32) -> (i32, i32) {
    %c0_i32 = arith.constant 0 : i32
    %c0_i32_0 = arith.constant 0 : i32
    %c0_i32_1 = arith.constant 0 : i32
    return %c0_i32, %c0_i32_0 : i32, i32
  }
  func.func @transform_3(%arg0: i32) -> (i32, i32) {
    %c0_i32 = arith.constant 0 : i32
    %c0_i32_0 = arith.constant 0 : i32
    return %arg0, %c0_i32 : i32, i32
  }
}

module attributes {stable_mosaic.version = 11 : i64} {
  func.func @_matmul_stats_kernel(%arg0: i32, %arg1: memref<128x64xbf16, #tpu.memory_space<vmem>>, %arg2: memref<64x128xbf16, #tpu.memory_space<vmem>>, %arg3: memref<128x128xf32, #tpu.memory_space<vmem>>, %arg4: memref<8x128xf32, #tpu.memory_space<vmem>>) attributes {dimension_semantics = [#tpu.dimension_semantics<parallel>], iteration_bounds = array<i64: 1>, scalar_prefetch = 0 : i64, scratch_operands = 0 : i64, tpu.core_type = #tpu.core_type<tc>, window_params = [{transform_indices = @transform_0, window_bounds = array<i64: 128, 64>}, {pipeline_mode = #tpu.pipeline_mode<synchronous>, transform_indices = @transform_1, window_bounds = array<i64: 64, 128>}, {transform_indices = @transform_2, window_bounds = array<i64: 128, 128>}, {transform_indices = @transform_3, window_bounds = array<i64: 8, 128>}]} {
    %c0 = arith.constant 0 : index
    %c0_0 = arith.constant 0 : index
    %0 = vector.load %arg1[%c0, %c0_0] : memref<128x64xbf16, #tpu.memory_space<vmem>>, vector<128x64xbf16>
    %c0_1 = arith.constant 0 : index
    %c0_2 = arith.constant 0 : index
    %1 = vector.load %arg2[%c0_1, %c0_2] : memref<64x128xbf16, #tpu.memory_space<vmem>>, vector<64x128xbf16>
    %cst = arith.constant dense<0.000000e+00> : vector<128x128xf32>
    %2 = tpu.matmul %0, %1, %cst {dimension_numbers = #tpu.dot_dimension_numbers<[1], [0], [0], [1], [0, 0, 1, 1], [], []>} : vector<128x64xbf16>, vector<64x128xbf16>, vector<128x128xf32> -> vector<128x128xf32>
    %c0_3 = arith.constant 0 : index
    %c0_4 = arith.constant 0 : index
    %3 = vector.load %arg3[%c0_3, %c0_4] : memref<128x128xf32, #tpu.memory_space<vmem>>, vector<128x128xf32>
    tpu.vector_store %arg3[%c0_3, %c0_4], %2 {strides = array<i32>} : memref<128x128xf32, #tpu.memory_space<vmem>>, vector<128x128xf32>,
    %cst_5 = arith.constant dense<0.000000e+00> : vector<128xf32>
    %4 = vector.multi_reduction <add>, %2, %cst_5 [0] : vector<128x128xf32> to vector<128xf32>
    %5 = vector.shape_cast %4 : vector<128xf32> to vector<1x128xf32>
    %6 = arith.mulf %2, %2 : vector<128x128xf32>
    %cst_6 = arith.constant dense<0.000000e+00> : vector<128xf32>
    %7 = vector.multi_reduction <add>, %6, %cst_6 [0] : vector<128x128xf32> to vector<128xf32>
    %8 = vector.shape_cast %7 : vector<128xf32> to vector<1x128xf32>
    %cst_7 = arith.constant 0.000000e+00 : f32
    %9 = vector.broadcast %cst_7 : f32 to vector<6x128xf32>
    %10 = tpu.concatenate %5, %8, %9 in 0 : vector<1x128xf32>, vector<1x128xf32>, vector<6x128xf32> -> vector<8x128xf32>
    %c0_8 = arith.constant 0 : index
    %c0_9 = arith.constant 0 : index
    %11 = vector.load %arg4[%c0_8, %c0_9] : memref<8x128xf32, #tpu.memory_space<vmem>>, vector<8x128xf32>
    tpu.vector_store %arg4[%c0_8, %c0_9], %10 {strides = array<i32>} : memref<8x128xf32, #tpu.memory_space<vmem>>, vector<8x128xf32>,
    return
  }
  func.func @transform_0(%arg0: i32) -> (i32, i32) {
    %c0_i32 = arith.constant 0 : i32
    %c0_i32_0 = arith.constant 0 : i32
    return %arg0, %c0_i32 : i32, i32
  }
  func.func @transform_1(%arg0: i32) -> (i32, i32) {
    %c0_i32 = arith.constant 0 : i32
    %c0_i32_0 = arith.constant 0 : i32
    %c0_i32_1 = arith.constant 0 : i32
    return %c0_i32, %c0_i32_0 : i32, i32
  }
  func.func @transform_2(%arg0: i32) -> (i32, i32) {
    %c0_i32 = arith.constant 0 : i32
    %c0_i32_0 = arith.constant 0 : i32
    return %arg0, %c0_i32 : i32, i32
  }
  func.func @transform_3(%arg0: i32) -> (i32, i32) {
    %c0_i32 = arith.constant 0 : i32
    %c0_i32_0 = arith.constant 0 : i32
    return %arg0, %c0_i32 : i32, i32
  }
}

module attributes {stable_mosaic.version = 11 : i64} {
  func.func @_affine_relu_kernel(%arg0: i32, %arg1: memref<128x128xf32, #tpu.memory_space<vmem>>, %arg2: memref<1x128xf32, #tpu.memory_space<vmem>>, %arg3: memref<1x128xf32, #tpu.memory_space<vmem>>, %arg4: memref<128x128xbf16, #tpu.memory_space<vmem>>) attributes {dimension_semantics = [#tpu.dimension_semantics<parallel>], iteration_bounds = array<i64: 1>, scalar_prefetch = 0 : i64, scratch_operands = 0 : i64, tpu.core_type = #tpu.core_type<tc>, window_params = [{transform_indices = @transform_0, window_bounds = array<i64: 128, 128>}, {pipeline_mode = #tpu.pipeline_mode<synchronous>, transform_indices = @transform_1, window_bounds = array<i64: 1, 128>}, {pipeline_mode = #tpu.pipeline_mode<synchronous>, transform_indices = @transform_2, window_bounds = array<i64: 1, 128>}, {transform_indices = @transform_3, window_bounds = array<i64: 128, 128>}]} {
    %c0 = arith.constant 0 : index
    %c0_0 = arith.constant 0 : index
    %0 = vector.load %arg1[%c0, %c0_0] : memref<128x128xf32, #tpu.memory_space<vmem>>, vector<128x128xf32>
    %c0_1 = arith.constant 0 : index
    %c0_2 = arith.constant 0 : index
    %1 = vector.load %arg2[%c0_1, %c0_2] : memref<1x128xf32, #tpu.memory_space<vmem>>, vector<1x128xf32>
    %2 = vector.broadcast %1 : vector<1x128xf32> to vector<128x128xf32>
    %3 = arith.mulf %0, %2 : vector<128x128xf32>
    %c0_3 = arith.constant 0 : index
    %c0_4 = arith.constant 0 : index
    %4 = vector.load %arg3[%c0_3, %c0_4] : memref<1x128xf32, #tpu.memory_space<vmem>>, vector<1x128xf32>
    %5 = vector.broadcast %4 : vector<1x128xf32> to vector<128x128xf32>
    %6 = arith.addf %3, %5 : vector<128x128xf32>
    %cst = arith.constant 0.000000e+00 : f32
    %7 = vector.broadcast %cst : f32 to vector<128x128xf32>
    %8 = arith.maximumf %6, %7 : vector<128x128xf32>
    %9 = arith.truncf %8 : vector<128x128xf32> to vector<128x128xbf16>
    %c0_5 = arith.constant 0 : index
    %c0_6 = arith.constant 0 : index
    %10 = vector.load %arg4[%c0_5, %c0_6] : memref<128x128xbf16, #tpu.memory_space<vmem>>, vector<128x128xbf16>
    tpu.vector_store %arg4[%c0_5, %c0_6], %9 {strides = array<i32>} : memref<128x128xbf16, #tpu.memory_space<vmem>>, vector<128x128xbf16>,
    return
  }
  func.func @transform_0(%arg0: i32) -> (i32, i32) {
    %c0_i32 = arith.constant 0 : i32
    %c0_i32_0 = arith.constant 0 : i32
    return %arg0, %c0_i32 : i32, i32
  }
  func.func @transform_1(%arg0: i32) -> (i32, i32) {
    %c0_i32 = arith.constant 0 : i32
    %c0_i32_0 = arith.constant 0 : i32
    %c0_i32_1 = arith.constant 0 : i32
    return %c0_i32, %c0_i32_0 : i32, i32
  }
  func.func @transform_2(%arg0: i32) -> (i32, i32) {
    %c0_i32 = arith.constant 0 : i32
    %c0_i32_0 = arith.constant 0 : i32
    %c0_i32_1 = arith.constant 0 : i32
    return %c0_i32, %c0_i32_0 : i32, i32
  }
  func.func @transform_3(%arg0: i32) -> (i32, i32) {
    %c0_i32 = arith.constant 0 : i32
    %c0_i32_0 = arith.constant 0 : i32
    return %arg0, %c0_i32 : i32, i32
  }
}

module attributes {stable_mosaic.version = 11 : i64} {
  func.func @_fc_head_kernel(%arg0: memref<4x128xbf16, #tpu.memory_space<vmem>>, %arg1: memref<128x128xbf16, #tpu.memory_space<vmem>>, %arg2: memref<1x128xf32, #tpu.memory_space<vmem>>, %arg3: memref<1x128xf32, #tpu.memory_space<vmem>>, %arg4: memref<128x128xbf16, #tpu.memory_space<vmem>>, %arg5: memref<1x128xf32, #tpu.memory_space<vmem>>, %arg6: memref<1x128xf32, #tpu.memory_space<vmem>>, %arg7: memref<128x128xbf16, #tpu.memory_space<vmem>>, %arg8: memref<4x128xf32, #tpu.memory_space<vmem>>) attributes {dimension_semantics = [], scalar_prefetch = 0 : i64, scratch_operands = 0 : i64, tpu.core_type = #tpu.core_type<tc>} {
    %c0 = arith.constant 0 : index
    %c0_0 = arith.constant 0 : index
    %0 = vector.load %arg0[%c0, %c0_0] : memref<4x128xbf16, #tpu.memory_space<vmem>>, vector<4x128xbf16>
    %c0_1 = arith.constant 0 : index
    %c0_2 = arith.constant 0 : index
    %1 = vector.load %arg1[%c0_1, %c0_2] : memref<128x128xbf16, #tpu.memory_space<vmem>>, vector<128x128xbf16>
    %cst = arith.constant dense<0.000000e+00> : vector<4x128xf32>
    %2 = tpu.matmul %0, %1, %cst {dimension_numbers = #tpu.dot_dimension_numbers<[1], [0], [0], [1], [0, 0, 1, 1], [], []>} : vector<4x128xbf16>, vector<128x128xbf16>, vector<4x128xf32> -> vector<4x128xf32>
    %c0_3 = arith.constant 0 : index
    %c0_4 = arith.constant 0 : index
    %3 = vector.load %arg2[%c0_3, %c0_4] : memref<1x128xf32, #tpu.memory_space<vmem>>, vector<1x128xf32>
    %c0_5 = arith.constant 0 : index
    %c0_6 = arith.constant 0 : index
    %4 = vector.load %arg3[%c0_5, %c0_6] : memref<1x128xf32, #tpu.memory_space<vmem>>, vector<1x128xf32>
    %cst_7 = arith.constant dense<0.000000e+00> : vector<128xf32>
    %5 = vector.multi_reduction <add>, %2, %cst_7 [0] : vector<4x128xf32> to vector<128xf32>
    %6 = vector.shape_cast %5 : vector<128xf32> to vector<1x128xf32>
    %cst_8 = arith.constant 4.000000e+00 : f32
    %7 = vector.broadcast %cst_8 : f32 to vector<1x128xf32>
    %8 = arith.divf %6, %7 : vector<1x128xf32>
    %9 = arith.mulf %2, %2 : vector<4x128xf32>
    %cst_9 = arith.constant dense<0.000000e+00> : vector<128xf32>
    %10 = vector.multi_reduction <add>, %9, %cst_9 [0] : vector<4x128xf32> to vector<128xf32>
    %11 = vector.shape_cast %10 : vector<128xf32> to vector<1x128xf32>
    %cst_10 = arith.constant 4.000000e+00 : f32
    %12 = vector.broadcast %cst_10 : f32 to vector<1x128xf32>
    %13 = arith.divf %11, %12 : vector<1x128xf32>
    %14 = arith.mulf %8, %8 : vector<1x128xf32>
    %15 = arith.subf %13, %14 : vector<1x128xf32>
    %cst_11 = arith.constant 0.000000e+00 : f32
    %16 = vector.broadcast %cst_11 : f32 to vector<1x128xf32>
    %17 = arith.maximumf %15, %16 : vector<1x128xf32>
    %18 = vector.broadcast %8 : vector<1x128xf32> to vector<4x128xf32>
    %19 = arith.subf %2, %18 : vector<4x128xf32>
    %cst_12 = arith.constant 9.99999974E-6 : f32
    %20 = vector.broadcast %cst_12 : f32 to vector<1x128xf32>
    %21 = arith.addf %17, %20 : vector<1x128xf32>
    %22 = math.rsqrt %21 : vector<1x128xf32>
    %23 = vector.broadcast %22 : vector<1x128xf32> to vector<4x128xf32>
    %24 = arith.mulf %19, %23 : vector<4x128xf32>
    %25 = vector.broadcast %3 : vector<1x128xf32> to vector<4x128xf32>
    %26 = arith.mulf %24, %25 : vector<4x128xf32>
    %27 = vector.broadcast %4 : vector<1x128xf32> to vector<4x128xf32>
    %28 = arith.addf %26, %27 : vector<4x128xf32>
    %cst_13 = arith.constant 0.000000e+00 : f32
    %29 = vector.broadcast %cst_13 : f32 to vector<4x128xf32>
    %30 = arith.maximumf %28, %29 : vector<4x128xf32>
    %31 = arith.truncf %30 : vector<4x128xf32> to vector<4x128xbf16>
    %c0_14 = arith.constant 0 : index
    %c0_15 = arith.constant 0 : index
    %32 = vector.load %arg4[%c0_14, %c0_15] : memref<128x128xbf16, #tpu.memory_space<vmem>>, vector<128x128xbf16>
    %cst_16 = arith.constant dense<0.000000e+00> : vector<4x128xf32>
    %33 = tpu.matmul %31, %32, %cst_16 {dimension_numbers = #tpu.dot_dimension_numbers<[1], [0], [0], [1], [0, 0, 1, 1], [], []>} : vector<4x128xbf16>, vector<128x128xbf16>, vector<4x128xf32> -> vector<4x128xf32>
    %c0_17 = arith.constant 0 : index
    %c0_18 = arith.constant 0 : index
    %34 = vector.load %arg5[%c0_17, %c0_18] : memref<1x128xf32, #tpu.memory_space<vmem>>, vector<1x128xf32>
    %c0_19 = arith.constant 0 : index
    %c0_20 = arith.constant 0 : index
    %35 = vector.load %arg6[%c0_19, %c0_20] : memref<1x128xf32, #tpu.memory_space<vmem>>, vector<1x128xf32>
    %cst_21 = arith.constant dense<0.000000e+00> : vector<128xf32>
    %36 = vector.multi_reduction <add>, %33, %cst_21 [0] : vector<4x128xf32> to vector<128xf32>
    %37 = vector.shape_cast %36 : vector<128xf32> to vector<1x128xf32>
    %cst_22 = arith.constant 4.000000e+00 : f32
    %38 = vector.broadcast %cst_22 : f32 to vector<1x128xf32>
    %39 = arith.divf %37, %38 : vector<1x128xf32>
    %40 = arith.mulf %33, %33 : vector<4x128xf32>
    %cst_23 = arith.constant dense<0.000000e+00> : vector<128xf32>
    %41 = vector.multi_reduction <add>, %40, %cst_23 [0] : vector<4x128xf32> to vector<128xf32>
    %42 = vector.shape_cast %41 : vector<128xf32> to vector<1x128xf32>
    %cst_24 = arith.constant 4.000000e+00 : f32
    %43 = vector.broadcast %cst_24 : f32 to vector<1x128xf32>
    %44 = arith.divf %42, %43 : vector<1x128xf32>
    %45 = arith.mulf %39, %39 : vector<1x128xf32>
    %46 = arith.subf %44, %45 : vector<1x128xf32>
    %cst_25 = arith.constant 0.000000e+00 : f32
    %47 = vector.broadcast %cst_25 : f32 to vector<1x128xf32>
    %48 = arith.maximumf %46, %47 : vector<1x128xf32>
    %49 = vector.broadcast %39 : vector<1x128xf32> to vector<4x128xf32>
    %50 = arith.subf %33, %49 : vector<4x128xf32>
    %cst_26 = arith.constant 9.99999974E-6 : f32
    %51 = vector.broadcast %cst_26 : f32 to vector<1x128xf32>
    %52 = arith.addf %48, %51 : vector<1x128xf32>
    %53 = math.rsqrt %52 : vector<1x128xf32>
    %54 = vector.broadcast %53 : vector<1x128xf32> to vector<4x128xf32>
    %55 = arith.mulf %50, %54 : vector<4x128xf32>
    %56 = vector.broadcast %34 : vector<1x128xf32> to vector<4x128xf32>
    %57 = arith.mulf %55, %56 : vector<4x128xf32>
    %58 = vector.broadcast %35 : vector<1x128xf32> to vector<4x128xf32>
    %59 = arith.addf %57, %58 : vector<4x128xf32>
    %cst_27 = arith.constant 0.000000e+00 : f32
    %60 = vector.broadcast %cst_27 : f32 to vector<4x128xf32>
    %61 = arith.maximumf %59, %60 : vector<4x128xf32>
    %62 = arith.truncf %61 : vector<4x128xf32> to vector<4x128xbf16>
    %c0_28 = arith.constant 0 : index
    %c0_29 = arith.constant 0 : index
    %63 = vector.load %arg7[%c0_28, %c0_29] : memref<128x128xbf16, #tpu.memory_space<vmem>>, vector<128x128xbf16>
    %cst_30 = arith.constant dense<0.000000e+00> : vector<4x128xf32>
    %64 = tpu.matmul %62, %63, %cst_30 {dimension_numbers = #tpu.dot_dimension_numbers<[1], [0], [0], [1], [0, 0, 1, 1], [], []>} : vector<4x128xbf16>, vector<128x128xbf16>, vector<4x128xf32> -> vector<4x128xf32>
    %c0_31 = arith.constant 0 : index
    %c0_32 = arith.constant 0 : index
    %65 = vector.load %arg8[%c0_31, %c0_32] : memref<4x128xf32, #tpu.memory_space<vmem>>, vector<4x128xf32>
    tpu.vector_store %arg8[%c0_31, %c0_32], %64 {strides = array<i32>} : memref<4x128xf32, #tpu.memory_space<vmem>>, vector<4x128xf32>,
    return
  }
}

</mosaic_0001>

<llo_original>
// kernel: forward.7
$region0: #{forward.7}
  #allocation0 [shape = 'u32[]', space=smem, size = 0x4, offset = 0x4, fixed_abs, tag = 'smem constant byte address 0x4 - core index']
  #allocation1 [shape = 'u32[144,128]{1,0:T(1,128)}', space=vmem, size = 0x12000, scoped, tag = 'internal scratch']
  %s0 = inlined_call_operand.vmem [shape: bf16[3584,48], index: 0, kind: input, shape index: {}]
  %s1 = inlined_call_operand.vmem [shape: bf16[48,128], index: 1, kind: input, shape index: {}]
  %s2 = inlined_call_operand.vmem [shape: f32[3584,128], index: 2, kind: output, shape index: {0}]
  %s3 = inlined_call_operand.vmem [shape: f32[56,128], index: 3, kind: output, shape index: {1}]
  %4 = xla_tuple %s2, %s3
  %s5 = sld [smem:[#allocation0]]
  $region49: #{forward.7} parent=0
    _
  %s7 = ssub.s32 1, %s5
  %s8 = scalar_select 0, %s7, %s5
  loop: start=0, step=1, limit=9
  $region2: #{forward.7} parent=0 // loop_pre_header
    _
  $region3: #{forward.7} parent=0 // loop_header
    %s10 = sphi 0, %s14
    %p11 = scmp.ge.s32.totalorder %s10, 9
    %s20 = sphi 0, %s22
    %s23 = sphi 0, %s20
    %s24 = sphi 0, %s23
    %s40 = sphi 0, %s24
    %s44 = sphi 0, %s44
    %s46 = sphi 0, %s44
    %s47 = sphi 0, %s46
    %s61 = sphi 0, %s47
    %s67 = sphi 0, %s69
    %s70 = sphi 0, %s67
    %s71 = sphi 0, %s70
    %s87 = sphi 0, %s71
    %s93 = sphi 0, %s95
    %s96 = sphi 0, %s93
    %s97 = sphi 0, %s96
    %s113 = sphi 0, %s97
  $region4: #{forward.7} parent=0 // loop_header_branch
    %13 = sbr.rel (%p11) target = $region8
  $region5: #{forward.7} parent=0 // loop_body
    %s15 = ssub.s32 %s10, 1
    %s16 = ssub.s32 %s10, 2
    %s17 = sadd.s32 %s10, 1
    %s18 = ssub.s32 %s10, %s17
    %p19 = scmp.eq.s32.totalorder %s18, 0
    %s21 = sadd.s32 %s20, 1
    %s22 = scalar_select %p19, %s20, %s21
    %p25 = pneg %p19
    %p26 = scmp.eq.s32.totalorder %s10, 6
    %p27 = por %p25, %p26
    %p28 = scmp.ne.s32.totalorder %s20, %s23
    %p29 = scmp.eq.s32.totalorder %s10, 0
    %p30 = por %p28, %p29
    %p31 = scmp.ne.s32.totalorder %s20, %s23
    %p32 = scmp.eq.s32.totalorder %s15, 6
    %p33 = por %p31, %p32
    %p34 = scmp.ne.s32.totalorder %s23, %s24
    %p35 = scmp.eq.s32.totalorder %s15, 0
    %p36 = por %p34, %p35
    %p37 = scmp.ne.s32.totalorder %s23, %s24
    %p38 = scmp.eq.s32.totalorder %s16, 6
    %p39 = por %p37, %p38
    %p41 = scmp.ne.s32.totalorder %s24, %s40
    %p42 = scmp.eq.s32.totalorder %s16, 0
    %p43 = por %p41, %p42
    %s45 = sadd.s32 %s44, 1
    %p48 = scmp.eq.s32.totalorder %s10, 6
    %p49 = scmp.ne.s32.totalorder %s44, %s46
    %p50 = scmp.eq.s32.totalorder %s10, 0
    %p51 = por %p49, %p50
    %p52 = scmp.ne.s32.totalorder %s44, %s46
    %p53 = scmp.eq.s32.totalorder %s15, 6
    %p54 = por %p52, %p53
    %p55 = scmp.ne.s32.totalorder %s46, %s47
    %p56 = scmp.eq.s32.totalorder %s15, 0
    %p57 = por %p55, %p56
    %p58 = scmp.ne.s32.totalorder %s46, %s47
    %p59 = scmp.eq.s32.totalorder %s16, 6
    %p60 = por %p58, %p59
    %p62 = scmp.ne.s32.totalorder %s47, %s61
    %p63 = scmp.eq.s32.totalorder %s16, 0
    %p64 = por %p62, %p63
    %s65 = ssub.s32 %s10, %s17
    %p66 = scmp.eq.s32.totalorder %s65, 0
    %s68 = sadd.s32 %s67, 1
    %s69 = scalar_select %p66, %s67, %s68
    %p72 = pneg %p66
    %p73 = scmp.eq.s32.totalorder %s10, 6
    %p74 = por %p72, %p73
    %p75 = scmp.ne.s32.totalorder %s67, %s70
    %p76 = scmp.eq.s32.totalorder %s10, 0
    %p77 = por %p75, %p76
    %p78 = scmp.ne.s32.totalorder %s67, %s70
    %p79 = scmp.eq.s32.totalorder %s15, 6
    %p80 = por %p78, %p79
    %p81 = scmp.ne.s32.totalorder %s70, %s71
    %p82 = scmp.eq.s32.totalorder %s15, 0
    %p83 = por %p81, %p82
    %p84 = scmp.ne.s32.totalorder %s70, %s71
    %p85 = scmp.eq.s32.totalorder %s16, 6
    %p86 = por %p84, %p85
    %p88 = scmp.ne.s32.totalorder %s71, %s87
    %p89 = scmp.eq.s32.totalorder %s16, 0
    %p90 = por %p88, %p89
    %s91 = ssub.s32 %s10, %s17
    %p92 = scmp.eq.s32.totalorder %s91, 0
    %s94 = sadd.s32 %s93, 1
    %s95 = scalar_select %p92, %s93, %s94
    %p98 = pneg %p92
    %p99 = scmp.eq.s32.totalorder %s10, 6
    %p100 = por %p98, %p99
    %p101 = scmp.ne.s32.totalorder %s93, %s96
    %p102 = scmp.eq.s32.totalorder %s10, 0
    %p103 = por %p101, %p102
    %p104 = scmp.ne.s32.totalorder %s93, %s96
    %p105 = scmp.eq.s32.totalorder %s15, 6
    %p106 = por %p104, %p105
    %p107 = scmp.ne.s32.totalorder %s96, %s97
    %p108 = scmp.eq.s32.totalorder %s15, 0
    %p109 = por %p107, %p108
    %p110 = scmp.ne.s32.totalorder %s96, %s97
    %p111 = scmp.eq.s32.totalorder %s16, 6
    %p112 = por %p110, %p111
    %p114 = scmp.ne.s32.totalorder %s97, %s113
    %p115 = scmp.eq.s32.totalorder %s16, 0
    %p116 = por %p114, %p115
    %p117 = scmp.le.s32.totalorder 1, %s10
    %p118 = scmp.lt.s32.totalorder %s10, 8
    %p119 = pnand %p117, %p118
    %p120 = pneg %p119
    // Predicated region
    $region9: #{forward.7} parent=5 // pred_check
      _
    $region10: #{forward.7} parent=5 // pred_check_branch
      %122 = sbr.rel (%p119) target = $region12
    $region11: #{forward.7} parent=5 // pred_region
      %s123 = ssub.s32 %s10, 1
      // Predicated region
      $region13: #{forward.7} parent=11 // pred_check
        %p124 = pneg %p57
      $region14: #{forward.7} parent=11 // pred_check_branch
        %126 = sbr.rel (%p124) target = $region16
      $region15: #{forward.7} parent=11 // pred_region
        _
      $region16: #{forward.7} parent=11 // pred_fallthru
        _
    $region12: #{forward.7} parent=5 // pred_fallthru
      _
    %p127 = scmp.lt.s32.totalorder %s10, 7
    // Predicated region
    $region17: #{forward.7} parent=5 // pred_check
      %p128 = pneg %p127
    $region18: #{forward.7} parent=5 // pred_check_branch
      %130 = sbr.rel (%p128) target = $region20
    $region19: #{forward.7} parent=5 // pred_region
      // Predicated region
      $region21: #{forward.7} parent=19 // pred_check
        %p131 = pneg %p30
      $region22: #{forward.7} parent=19 // pred_check_branch
        %133 = sbr.rel (%p131) target = $region24
      $region23: #{forward.7} parent=19 // pred_region
        %s134 = smul.u32 64, %s10
        %p135 = scmp.lt.s32.totalorder %s134, 447
        %s136 = scalar_select %p135, %s134, 447
        %s137 = smul.addr %s136, 4
        %s138 = scalar_lea.vmem %s0, %s137
        %s139 = smul.u32 64, %s10
      $region24: #{forward.7} parent=19 // pred_fallthru
        _
    $region20: #{forward.7} parent=5 // pred_fallthru
      _
    %p140 = scmp.le.s32.totalorder 1, %s10
    %p141 = scmp.lt.s32.totalorder %s10, 8
    %p142 = pnand %p140, %p141
    %p143 = pneg %p142
    // Predicated region
    $region25: #{forward.7} parent=5 // pred_check
      _
    $region26: #{forward.7} parent=5 // pred_check_branch
      %145 = sbr.rel (%p142) target = $region28
    $region27: #{forward.7} parent=5 // pred_region
      %s146 = ssub.s32 %s10, 1
      %s147 = smul.u32 64, %s15
      %p148 = scmp.lt.s32.totalorder %s147, 447
      %s149 = scalar_select %p148, %s147, 447
      %s150 = smul.addr %s149, 4
      %s151 = scalar_lea.vmem %s0, %s150
      %p152 = pneg %p36
      %p153 = pneg %p33
      %p154 = pneg %p57
      %p155 = pneg %p54
      %p156 = pneg %p83
      %p157 = pneg %p80
      %s158 = smul.u32 64, %s15
      %p159 = scmp.lt.s32.totalorder %s158, 447
      %s160 = scalar_select %p159, %s158, 447
      %s161 = smul.addr %s160, 8
      %s162 = scalar_lea.vmem %s2, %s161
      %p163 = pneg %p109
      %p164 = pneg %p106
      %p165 = scmp.lt.s32.totalorder %s15, 6
      %s166 = scalar_select %p165, %s15, 6
      %s167 = smul.addr %s166, 8
      %s168 = scalar_lea.vmem %s3, %s167
      %s169 = smul.u32 64, %s15
      %p170 = scmp.lt.s32.totalorder %s169, 447
      %s171 = scalar_select %p170, %s169, 447
      %s172 = smul.addr %s171, 4
      %s173 = scalar_lea.vmem %s0, %s172
      %s174 = smul.u32 64, %s15
      %s175 = smul.u32 64, %s15
      %p176 = scmp.lt.s32.totalorder %s175, 447
      %s177 = scalar_select %p176, %s175, 447
      %s178 = smul.addr %s177, 8
      %s179 = scalar_lea.vmem %s2, %s178
      %s180 = smul.u32 64, %s15
      %p181 = scmp.lt.s32.totalorder %s15, 6
      %s182 = scalar_select %p181, %s15, 6
      %s183 = smul.addr %s182, 8
      %s184 = scalar_lea.vmem %s3, %s183
      %v186 = vld [vmem:[%s173] sm:$0xf]
      %v187 = vld [vmem:[%s173 + $0x4] sm:$0xf]
      %v188 = vld [vmem:[%s173 + $0x8] sm:$0xf]
      %v189 = vld [vmem:[%s173 + $0xc] sm:$0xf]
      %v190 = vld [vmem:[%s173 + $0x10] sm:$0xf]
      %v191 = vld [vmem:[%s173 + $0x14] sm:$0xf]
      %v192 = vld [vmem:[%s173 + $0x18] sm:$0xf]
      %v193 = vld [vmem:[%s173 + $0x1c] sm:$0xf]
      %v194 = vld [vmem:[%s173 + $0x20] sm:$0xf]
      %v195 = vld [vmem:[%s173 + $0x24] sm:$0xf]
      %v196 = vld [vmem:[%s173 + $0x28] sm:$0xf]
      %v197 = vld [vmem:[%s173 + $0x2c] sm:$0xf]
      %v198 = vld [vmem:[%s173 + $0x30] sm:$0xf]
      %v199 = vld [vmem:[%s173 + $0x34] sm:$0xf]
      %v200 = vld [vmem:[%s173 + $0x38] sm:$0xf]
      %v201 = vld [vmem:[%s173 + $0x3c] sm:$0xf]
      %v202 = vld [vmem:[%s173 + $0x40] sm:$0xf]
      %v203 = vld [vmem:[%s173 + $0x44] sm:$0xf]
      %v204 = vld [vmem:[%s173 + $0x48] sm:$0xf]
      %v205 = vld [vmem:[%s173 + $0x4c] sm:$0xf]
      %v206 = vld [vmem:[%s173 + $0x50] sm:$0xf]
      %v207 = vld [vmem:[%s173 + $0x54] sm:$0xf]
      %v208 = vld [vmem:[%s173 + $0x58] sm:$0xf]
      %v209 = vld [vmem:[%s173 + $0x5c] sm:$0xf]
      %v210 = vld [vmem:[%s173 + $0x60] sm:$0xf]
      %v211 = vld [vmem:[%s173 + $0x64] sm:$0xf]
      %v212 = vld [vmem:[%s173 + $0x68] sm:$0xf]
      %v213 = vld [vmem:[%s173 + $0x6c] sm:$0xf]
      %v214 = vld [vmem:[%s173 + $0x70] sm:$0xf]
      %v215 = vld [vmem:[%s173 + $0x74] sm:$0xf]
      %v216 = vld [vmem:[%s173 + $0x78] sm:$0xf]
      %v217 = vld [vmem:[%s173 + $0x7c] sm:$0xf]
      %v218 = vld [vmem:[%s173 + $0x80] sm:$0xf]
      %v219 = vld [vmem:[%s173 + $0x84] sm:$0xf]
      %v220 = vld [vmem:[%s173 + $0x88] sm:$0xf]
      %v221 = vld [vmem:[%s173 + $0x8c] sm:$0xf]
      %v222 = vld [vmem:[%s173 + $0x90] sm:$0xf]
      %v223 = vld [vmem:[%s173 + $0x94] sm:$0xf]
      %v224 = vld [vmem:[%s173 + $0x98] sm:$0xf]
      %v225 = vld [vmem:[%s173 + $0x9c] sm:$0xf]
      %v226 = vld [vmem:[%s173 + $0xa0] sm:$0xf]
      %v227 = vld [vmem:[%s173 + $0xa4] sm:$0xf]
      %v228 = vld [vmem:[%s173 + $0xa8] sm:$0xf]
      %v229 = vld [vmem:[%s173 + $0xac] sm:$0xf]
      %v230 = vld [vmem:[%s173 + $0xb0] sm:$0xf]
      %v231 = vld [vmem:[%s173 + $0xb4] sm:$0xf]
      %v232 = vld [vmem:[%s173 + $0xb8] sm:$0xf]
      %v233 = vld [vmem:[%s173 + $0xbc] sm:$0xf]
      %v234 = vld [vmem:[%s173 + $0xc0] sm:$0xf]
      %v235 = vld [vmem:[%s173 + $0xc4] sm:$0xf]
      %v236 = vld [vmem:[%s173 + $0xc8] sm:$0xf]
      %v237 = vld [vmem:[%s173 + $0xcc] sm:$0xf]
      %v238 = vld [vmem:[%s173 + $0xd0] sm:$0xf]
      %v239 = vld [vmem:[%s173 + $0xd4] sm:$0xf]
      %v240 = vld [vmem:[%s173 + $0xd8] sm:$0xf]
      %v241 = vld [vmem:[%s173 + $0xdc] sm:$0xf]
      %v242 = vld [vmem:[%s173 + $0xe0] sm:$0xf]
      %v243 = vld [vmem:[%s173 + $0xe4] sm:$0xf]
      %v244 = vld [vmem:[%s173 + $0xe8] sm:$0xf]
      %v245 = vld [vmem:[%s173 + $0xec] sm:$0xf]
      %v246 = vld [vmem:[%s173 + $0xf0] sm:$0xf]
      %v247 = vld [vmem:[%s173 + $0xf4] sm:$0xf]
      %v248 = vld [vmem:[%s173 + $0xf8] sm:$0xf]
      %v249 = vld [vmem:[%s173 + $0xfc] sm:$0xf]
      %v250 = vld [vmem:[%s1] sm:$0xf]
      %v251 = vld [vmem:[%s1 + $0x4] sm:$0xf]
      %v252 = vld [vmem:[%s1 + $0x8] sm:$0xf]
      %v253 = vld [vmem:[%s1 + $0xc] sm:$0xf]
      %v254 = vld [vmem:[%s1 + $0x10] sm:$0xf]
      %v255 = vld [vmem:[%s1 + $0x14] sm:$0xf]
      %v320 = vunpack.c.l.b16 %v186
      %v321 = vunpack.c.l.b16 %v187
      %v322 = vunpack.c.l.b16 %v188
      %v323 = vunpack.c.l.b16 %v189
      %v324 = vunpack.c.l.b16 %v190
      %v325 = vunpack.c.l.b16 %v191
      %v326 = vunpack.c.l.b16 %v192
      %v327 = vunpack.c.l.b16 %v193
      %v328 = vunpack.c.l.b16 %v194
      %v329 = vunpack.c.l.b16 %v195
      %v330 = vunpack.c.l.b16 %v196
      %v331 = vunpack.c.l.b16 %v197
      %v332 = vunpack.c.l.b16 %v198
      %v333 = vunpack.c.l.b16 %v199
      %v334 = vunpack.c.l.b16 %v200
      %v335 = vunpack.c.l.b16 %v201
      %v336 = vunpack.c.l.b16 %v202
      %v337 = vunpack.c.l.b16 %v203
      %v338 = vunpack.c.l.b16 %v204
      %v339 = vunpack.c.l.b16 %v205
      %v340 = vunpack.c.l.b16 %v206
      %v341 = vunpack.c.l.b16 %v207
      %v342 = vunpack.c.l.b16 %v208
      %v343 = vunpack.c.l.b16 %v209
      %v344 = vunpack.c.l.b16 %v210
      %v345 = vunpack.c.l.b16 %v211
      %v346 = vunpack.c.l.b16 %v212
      %v347 = vunpack.c.l.b16 %v213
      %v348 = vunpack.c.l.b16 %v214
      %v349 = vunpack.c.l.b16 %v215
      %v350 = vunpack.c.l.b16 %v216
      %v351 = vunpack.c.l.b16 %v217
      %v352 = vunpack.c.l.b16 %v218
      %v353 = vunpack.c.l.b16 %v219
      %v354 = vunpack.c.l.b16 %v220
      %v355 = vunpack.c.l.b16 %v221
      %v356 = vunpack.c.l.b16 %v222
      %v357 = vunpack.c.l.b16 %v223
      %v358 = vunpack.c.l.b16 %v224
      %v359 = vunpack.c.l.b16 %v225
      %v360 = vunpack.c.l.b16 %v226
      %v361 = vunpack.c.l.b16 %v227
      %v362 = vunpack.c.l.b16 %v228
      %v363 = vunpack.c.l.b16 %v229
      %v364 = vunpack.c.l.b16 %v230
      %v365 = vunpack.c.l.b16 %v231
      %v366 = vunpack.c.l.b16 %v232
      %v367 = vunpack.c.l.b16 %v233
      %v368 = vunpack.c.l.b16 %v234
      %v369 = vunpack.c.l.b16 %v235
      %v370 = vunpack.c.l.b16 %v236
      %v371 = vunpack.c.l.b16 %v237
      %v372 = vunpack.c.l.b16 %v238
      %v373 = vunpack.c.l.b16 %v239
      %v374 = vunpack.c.l.b16 %v240
      %v375 = vunpack.c.l.b16 %v241
      %v376 = vunpack.c.l.b16 %v242
      %v377 = vunpack.c.l.b16 %v243
      %v378 = vunpack.c.l.b16 %v244
      %v379 = vunpack.c.l.b16 %v245
      %v380 = vunpack.c.l.b16 %v246
      %v381 = vunpack.c.l.b16 %v247
      %v382 = vunpack.c.l.b16 %v248
      %v383 = vunpack.c.l.b16 %v249
      %v384 = vpack.c.b16 %v321, %v320
      %v385 = vpack.c.b16 %v323, %v322
      %v386 = vpack.c.b16 %v325, %v324
      %v387 = vpack.c.b16 %v327, %v326
      %v388 = vpack.c.b16 %v329, %v328
      %v389 = vpack.c.b16 %v331, %v330
      %v390 = vpack.c.b16 %v333, %v332
      %v391 = vpack.c.b16 %v335, %v334
      %v392 = vpack.c.b16 %v337, %v336
      %v393 = vpack.c.b16 %v339, %v338
      %v394 = vpack.c.b16 %v341, %v340
      %v395 = vpack.c.b16 %v343, %v342
      %v396 = vpack.c.b16 %v345, %v344
      %v397 = vpack.c.b16 %v347, %v346
      %v398 = vpack.c.b16 %v349, %v348
      %v399 = vpack.c.b16 %v351, %v350
      %v400 = vpack.c.b16 %v353, %v352
      %v401 = vpack.c.b16 %v355, %v354
      %v402 = vpack.c.b16 %v357, %v356
      %v403 = vpack.c.b16 %v359, %v358
      %v404 = vpack.c.b16 %v361, %v360
      %v405 = vpack.c.b16 %v363, %v362
      %v406 = vpack.c.b16 %v365, %v364
      %v407 = vpack.c.b16 %v367, %v366
      %v408 = vpack.c.b16 %v369, %v368
      %v409 = vpack.c.b16 %v371, %v370
      %v410 = vpack.c.b16 %v373, %v372
      %v411 = vpack.c.b16 %v375, %v374
      %v412 = vpack.c.b16 %v377, %v376
      %v413 = vpack.c.b16 %v379, %v378
      %v414 = vpack.c.b16 %v381, %v380
      %v415 = vpack.c.b16 %v383, %v382
      %v422 = vunpack.c.l.b16 %v250
      %v423 = vunpack.c.l.b16 %v251
      %v424 = vunpack.c.l.b16 %v252
      %v425 = vunpack.c.l.b16 %v253
      %v426 = vunpack.c.l.b16 %v254
      %v427 = vunpack.c.l.b16 %v255
      %v428 = vpack.c.b16 %v423, %v422
      %v429 = vpack.c.b16 %v425, %v424
      %v430 = vpack.c.b16 %v427, %v426
      %vm434 = vcmask 392192
      %v436 = vsel %vm434, %v384, 0
      %v439 = vsel %vm434, %v385, 0
      %v442 = vsel %vm434, %v386, 0
      %v445 = vsel %vm434, %v387, 0
      %v448 = vsel %vm434, %v388, 0
      %v451 = vsel %vm434, %v389, 0
      %v454 = vsel %vm434, %v390, 0
      %v457 = vsel %vm434, %v391, 0
      %v460 = vsel %vm434, %v392, 0
      %v463 = vsel %vm434, %v393, 0
      %v466 = vsel %vm434, %v394, 0
      %v469 = vsel %vm434, %v395, 0
      %v472 = vsel %vm434, %v396, 0
      %v475 = vsel %vm434, %v397, 0
      %v478 = vsel %vm434, %v398, 0
      %v481 = vsel %vm434, %v399, 0
      %v484 = vsel %vm434, %v400, 0
      %v487 = vsel %vm434, %v401, 0
      %v490 = vsel %vm434, %v402, 0
      %v493 = vsel %vm434, %v403, 0
      %v496 = vsel %vm434, %v404, 0
      %v499 = vsel %vm434, %v405, 0
      %v502 = vsel %vm434, %v406, 0
      %v505 = vsel %vm434, %v407, 0
      %v508 = vsel %vm434, %v408, 0
      %v511 = vsel %vm434, %v409, 0
      %v514 = vsel %vm434, %v410, 0
      %v517 = vsel %vm434, %v411, 0
      %v520 = vsel %vm434, %v412, 0
      %v523 = vsel %vm434, %v413, 0
      %v526 = vsel %vm434, %v414, 0
      %v529 = vsel %vm434, %v415, 0
      %531 = vmatprep.subr.bf16.mxu0 0
      %532 = vmatpush1.bf16.msra.mxu0 0
      %533 = vmatprep.subr.bf16.mxu0 0
      %534 = vmatpush1.bf16.msra.mxu0 0
      %535 = vmatprep.subr.bf16.mxu0 0
      %536 = vmatpush1.bf16.msra.mxu0 0
      %537 = vmatprep.subr.bf16.mxu0 0
      %538 = vmatpush1.bf16.msra.mxu0 0
      %539 = vmatprep.subr.bf16.mxu0 0
      %540 = vmatpush1.bf16.msra.mxu0 0
      %541 = vmatprep.subr.bf16.mxu0 0
      %542 = vmatpush1.bf16.msra.mxu0 %v430
      %543 = vmatprep.subr.bf16.mxu0 0
      %544 = vmatpush1.bf16.msra.mxu0 %v429
      %545 = vmatprep.subr.bf16.mxu0 0
      %546 = vmatpush1.bf16.msra.mxu0 %v428
      %547 = vmatprep.subr.bf16.mxu0 0
      %548 = vmatpush2.bf16.msra.mxu0 0
      %549 = vmatprep.subr.bf16.mxu0 0
      %550 = vmatpush2.bf16.msra.mxu0 0
      %551 = vmatprep.subr.bf16.mxu0 0
      %552 = vmatpush2.bf16.msra.mxu0 0
      %553 = vmatprep.subr.bf16.mxu0 0
      %554 = vmatpush2.bf16.msra.mxu0 0
      %555 = vmatprep.subr.bf16.mxu0 0
      %556 = vmatpush2.bf16.msra.mxu0 0
      %557 = vmatprep.subr.bf16.mxu0 0
      %558 = vmatpush2.bf16.msra.mxu0 0
      %559 = vmatprep.subr.bf16.mxu0 0
      %560 = vmatpush2.bf16.msra.mxu0 0
      %561 = vmatprep.subr.bf16.mxu0 0
      %562 = vmatpush2.bf16.msra.mxu0 0
      %563 = vmatprep.mubr.bf16.mxu0 0
      %564 = vmatmul.mubr.bf16.gmra.mxu0 %v436
      %v565 = vpop.f32.mrf.mxu0
      %v566 = vadd.f32 0.0, %v565
      %v567 = vpop.f32.mrf.mxu0
      %v568 = vpop.f32.mrf.mxu0
      %v569 = vadd.f32 0.0, %v568
      %v570 = vpop.f32.mrf.mxu0
      %571 = vmatprep.mubr.bf16.mxu0 0
      %572 = vmatmul.mubr.bf16.gmra.mxu0 %v439
      %v573 = vpop.f32.mrf.mxu0
      %v574 = vadd.f32 0.0, %v573
      %v575 = vpop.f32.mrf.mxu0
      %v576 = vpop.f32.mrf.mxu0
      %v577 = vadd.f32 0.0, %v576
      %v578 = vpop.f32.mrf.mxu0
      %579 = vmatprep.mubr.bf16.mxu0 0
      %580 = vmatmul.mubr.bf16.gmra.mxu0 %v442
      %v581 = vpop.f32.mrf.mxu0
      %v582 = vadd.f32 0.0, %v581
      %v583 = vpop.f32.mrf.mxu0
      %v584 = vpop.f32.mrf.mxu0
      %v585 = vadd.f32 0.0, %v584
      %v586 = vpop.f32.mrf.mxu0
      %587 = vmatprep.mubr.bf16.mxu0 0
      %588 = vmatmul.mubr.bf16.gmra.mxu0 %v445
      %v589 = vpop.f32.mrf.mxu0
      %v590 = vadd.f32 0.0, %v589
      %v591 = vpop.f32.mrf.mxu0
      %v592 = vpop.f32.mrf.mxu0
      %v593 = vadd.f32 0.0, %v592
      %v594 = vpop.f32.mrf.mxu0
      %595 = vmatprep.mubr.bf16.mxu0 0
      %596 = vmatmul.mubr.bf16.gmra.mxu0 %v448
      %v597 = vpop.f32.mrf.mxu0
      %v598 = vadd.f32 0.0, %v597
      %v599 = vpop.f32.mrf.mxu0
      %v600 = vpop.f32.mrf.mxu0
      %v601 = vadd.f32 0.0, %v600
      %v602 = vpop.f32.mrf.mxu0
      %603 = vmatprep.mubr.bf16.mxu0 0
      %604 = vmatmul.mubr.bf16.gmra.mxu0 %v451
      %v605 = vpop.f32.mrf.mxu0
      %v606 = vadd.f32 0.0, %v605
      %v607 = vpop.f32.mrf.mxu0
      %v608 = vpop.f32.mrf.mxu0
      %v609 = vadd.f32 0.0, %v608
      %v610 = vpop.f32.mrf.mxu0
      %611 = vmatprep.mubr.bf16.mxu0 0
      %612 = vmatmul.mubr.bf16.gmra.mxu0 %v454
      %v613 = vpop.f32.mrf.mxu0
      %v614 = vadd.f32 0.0, %v613
      %v615 = vpop.f32.mrf.mxu0
      %v616 = vpop.f32.mrf.mxu0
      %v617 = vadd.f32 0.0, %v616
      %v618 = vpop.f32.mrf.mxu0
      %619 = vmatprep.mubr.bf16.mxu0 0
      %620 = vmatmul.mubr.bf16.gmra.mxu0 %v457
      %v621 = vpop.f32.mrf.mxu0
      %v622 = vadd.f32 0.0, %v621
      %v623 = vpop.f32.mrf.mxu0
      %v624 = vpop.f32.mrf.mxu0
      %v625 = vadd.f32 0.0, %v624
      %v626 = vpop.f32.mrf.mxu0
      %627 = vmatprep.mubr.bf16.mxu0 0
      %628 = vmatmul.mubr.bf16.gmra.mxu0 %v460
      %v629 = vpop.f32.mrf.mxu0
      %v630 = vadd.f32 0.0, %v629
      %v631 = vpop.f32.mrf.mxu0
      %v632 = vpop.f32.mrf.mxu0
      %v633 = vadd.f32 0.0, %v632
      %v634 = vpop.f32.mrf.mxu0
      %635 = vmatprep.mubr.bf16.mxu0 0
      %636 = vmatmul.mubr.bf16.gmra.mxu0 %v463
      %v637 = vpop.f32.mrf.mxu0
      %v638 = vadd.f32 0.0, %v637
      %v639 = vpop.f32.mrf.mxu0
      %v640 = vpop.f32.mrf.mxu0
      %v641 = vadd.f32 0.0, %v640
      %v642 = vpop.f32.mrf.mxu0
      %643 = vmatprep.mubr.bf16.mxu0 0
      %644 = vmatmul.mubr.bf16.gmra.mxu0 %v466
      %v645 = vpop.f32.mrf.mxu0
      %v646 = vadd.f32 0.0, %v645
      %v647 = vpop.f32.mrf.mxu0
      %v648 = vpop.f32.mrf.mxu0
      %v649 = vadd.f32 0.0, %v648
      %v650 = vpop.f32.mrf.mxu0
      %651 = vmatprep.mubr.bf16.mxu0 0
      %652 = vmatmul.mubr.bf16.gmra.mxu0 %v469
      %v653 = vpop.f32.mrf.mxu0
      %v654 = vadd.f32 0.0, %v653
      %v655 = vpop.f32.mrf.mxu0
      %v656 = vpop.f32.mrf.mxu0
      %v657 = vadd.f32 0.0, %v656
      %v658 = vpop.f32.mrf.mxu0
      %659 = vmatprep.mubr.bf16.mxu0 0
      %660 = vmatmul.mubr.bf16.gmra.mxu0 %v472
      %v661 = vpop.f32.mrf.mxu0
      %v662 = vadd.f32 0.0, %v661
      %v663 = vpop.f32.mrf.mxu0
      %v664 = vpop.f32.mrf.mxu0
      %v665 = vadd.f32 0.0, %v664
      %v666 = vpop.f32.mrf.mxu0
      %667 = vmatprep.mubr.bf16.mxu0 0
      %668 = vmatmul.mubr.bf16.gmra.mxu0 %v475
      %v669 = vpop.f32.mrf.mxu0
      %v670 = vadd.f32 0.0, %v669
      %v671 = vpop.f32.mrf.mxu0
      %v672 = vpop.f32.mrf.mxu0
      %v673 = vadd.f32 0.0, %v672
      %v674 = vpop.f32.mrf.mxu0
      %675 = vmatprep.mubr.bf16.mxu0 0
      %676 = vmatmul.mubr.bf16.gmra.mxu0 %v478
      %v677 = vpop.f32.mrf.mxu0
      %v678 = vadd.f32 0.0, %v677
      %v679 = vpop.f32.mrf.mxu0
      %v680 = vpop.f32.mrf.mxu0
      %v681 = vadd.f32 0.0, %v680
      %v682 = vpop.f32.mrf.mxu0
      %683 = vmatprep.mubr.bf16.mxu0 0
      %684 = vmatmul.mubr.bf16.gmra.mxu0 %v481
      %v685 = vpop.f32.mrf.mxu0
      %v686 = vadd.f32 0.0, %v685
      %v687 = vpop.f32.mrf.mxu0
      %v688 = vpop.f32.mrf.mxu0
      %v689 = vadd.f32 0.0, %v688
      %v690 = vpop.f32.mrf.mxu0
      %691 = vmatprep.mubr.bf16.mxu0 0
      %692 = vmatmul.mubr.bf16.gmra.mxu0 %v484
      %v693 = vpop.f32.mrf.mxu0
      %v694 = vadd.f32 0.0, %v693
      %v695 = vpop.f32.mrf.mxu0
      %v696 = vpop.f32.mrf.mxu0
      %v697 = vadd.f32 0.0, %v696
      %v698 = vpop.f32.mrf.mxu0
      %699 = vmatprep.mubr.bf16.mxu0 0
      %700 = vmatmul.mubr.bf16.gmra.mxu0 %v487
      %v701 = vpop.f32.mrf.mxu0
      %v702 = vadd.f32 0.0, %v701
      %v703 = vpop.f32.mrf.mxu0
      %v704 = vpop.f32.mrf.mxu0
      %v705 = vadd.f32 0.0, %v704
      %v706 = vpop.f32.mrf.mxu0
      %707 = vmatprep.mubr.bf16.mxu0 0
      %708 = vmatmul.mubr.bf16.gmra.mxu0 %v490
      %v709 = vpop.f32.mrf.mxu0
      %v710 = vadd.f32 0.0, %v709
      %v711 = vpop.f32.mrf.mxu0
      %v712 = vpop.f32.mrf.mxu0
      %v713 = vadd.f32 0.0, %v712
      %v714 = vpop.f32.mrf.mxu0
      %715 = vmatprep.mubr.bf16.mxu0 0
      %716 = vmatmul.mubr.bf16.gmra.mxu0 %v493
      %v717 = vpop.f32.mrf.mxu0
      %v718 = vadd.f32 0.0, %v717
      %v719 = vpop.f32.mrf.mxu0
      %v720 = vpop.f32.mrf.mxu0
      %v721 = vadd.f32 0.0, %v720
      %v722 = vpop.f32.mrf.mxu0
      %723 = vmatprep.mubr.bf16.mxu0 0
      %724 = vmatmul.mubr.bf16.gmra.mxu0 %v496
      %v725 = vpop.f32.mrf.mxu0
      %v726 = vadd.f32 0.0, %v725
      %v727 = vpop.f32.mrf.mxu0
      %v728 = vpop.f32.mrf.mxu0
      %v729 = vadd.f32 0.0, %v728
      %v730 = vpop.f32.mrf.mxu0
      %731 = vmatprep.mubr.bf16.mxu0 0
      %732 = vmatmul.mubr.bf16.gmra.mxu0 %v499
      %v733 = vpop.f32.mrf.mxu0
      %v734 = vadd.f32 0.0, %v733
      %v735 = vpop.f32.mrf.mxu0
      %v736 = vpop.f32.mrf.mxu0
      %v737 = vadd.f32 0.0, %v736
      %v738 = vpop.f32.mrf.mxu0
      %739 = vmatprep.mubr.bf16.mxu0 0
      %740 = vmatmul.mubr.bf16.gmra.mxu0 %v502
      %v741 = vpop.f32.mrf.mxu0
      %v742 = vadd.f32 0.0, %v741
      %v743 = vpop.f32.mrf.mxu0
      %v744 = vpop.f32.mrf.mxu0
      %v745 = vadd.f32 0.0, %v744
      %v746 = vpop.f32.mrf.mxu0
      %747 = vmatprep.mubr.bf16.mxu0 0
      %748 = vmatmul.mubr.bf16.gmra.mxu0 %v505
      %v749 = vpop.f32.mrf.mxu0
      %v750 = vadd.f32 0.0, %v749
      %v751 = vpop.f32.mrf.mxu0
      %v752 = vpop.f32.mrf.mxu0
      %v753 = vadd.f32 0.0, %v752
      %v754 = vpop.f32.mrf.mxu0
      %755 = vmatprep.mubr.bf16.mxu0 0
      %756 = vmatmul.mubr.bf16.gmra.mxu0 %v508
      %v757 = vpop.f32.mrf.mxu0
      %v758 = vadd.f32 0.0, %v757
      %v759 = vpop.f32.mrf.mxu0
      %v760 = vpop.f32.mrf.mxu0
      %v761 = vadd.f32 0.0, %v760
      %v762 = vpop.f32.mrf.mxu0
      %763 = vmatprep.mubr.bf16.mxu0 0
      %764 = vmatmul.mubr.bf16.gmra.mxu0 %v511
      %v765 = vpop.f32.mrf.mxu0
      %v766 = vadd.f32 0.0, %v765
      %v767 = vpop.f32.mrf.mxu0
      %v768 = vpop.f32.mrf.mxu0
      %v769 = vadd.f32 0.0, %v768
      %v770 = vpop.f32.mrf.mxu0
      %771 = vmatprep.mubr.bf16.mxu0 0
      %772 = vmatmul.mubr.bf16.gmra.mxu0 %v514
      %v773 = vpop.f32.mrf.mxu0
      %v774 = vadd.f32 0.0, %v773
      %v775 = vpop.f32.mrf.mxu0
      %v776 = vpop.f32.mrf.mxu0
      %v777 = vadd.f32 0.0, %v776
      %v778 = vpop.f32.mrf.mxu0
      %779 = vmatprep.mubr.bf16.mxu0 0
      %780 = vmatmul.mubr.bf16.gmra.mxu0 %v517
      %v781 = vpop.f32.mrf.mxu0
      %v782 = vadd.f32 0.0, %v781
      %v783 = vpop.f32.mrf.mxu0
      %v784 = vpop.f32.mrf.mxu0
      %v785 = vadd.f32 0.0, %v784
      %v786 = vpop.f32.mrf.mxu0
      %787 = vmatprep.mubr.bf16.mxu0 0
      %788 = vmatmul.mubr.bf16.gmra.mxu0 %v520
      %v789 = vpop.f32.mrf.mxu0
      %v790 = vadd.f32 0.0, %v789
      %v791 = vpop.f32.mrf.mxu0
      %v792 = vpop.f32.mrf.mxu0
      %v793 = vadd.f32 0.0, %v792
      %v794 = vpop.f32.mrf.mxu0
      %795 = vmatprep.mubr.bf16.mxu0 0
      %796 = vmatmul.mubr.bf16.gmra.mxu0 %v523
      %v797 = vpop.f32.mrf.mxu0
      %v798 = vadd.f32 0.0, %v797
      %v799 = vpop.f32.mrf.mxu0
      %v800 = vpop.f32.mrf.mxu0
      %v801 = vadd.f32 0.0, %v800
      %v802 = vpop.f32.mrf.mxu0
      %803 = vmatprep.mubr.bf16.mxu0 0
      %804 = vmatmul.mubr.bf16.gmra.mxu0 %v526
      %v805 = vpop.f32.mrf.mxu0
      %v806 = vadd.f32 0.0, %v805
      %v807 = vpop.f32.mrf.mxu0
      %v808 = vpop.f32.mrf.mxu0
      %v809 = vadd.f32 0.0, %v808
      %v810 = vpop.f32.mrf.mxu0
      %811 = vmatprep.mubr.bf16.mxu0 0
      %812 = vmatmul.mubr.bf16.gmra.mxu0 %v529
      %v813 = vpop.f32.mrf.mxu0
      %v814 = vadd.f32 0.0, %v813
      %v815 = vpop.f32.mrf.mxu0
      %v816 = vpop.f32.mrf.mxu0
      %v817 = vadd.f32 0.0, %v816
      %v818 = vpop.f32.mrf.mxu0
      %819 = vdwg.mxu0
      %820 = vst [vmem:[%s179] sm:$0xff] %v566
      %821 = vst [vmem:[%s179 + $0x8] sm:$0xff] %v569
      %822 = vst [vmem:[%s179 + $0x10] sm:$0xff] %v574
      %823 = vst [vmem:[%s179 + $0x18] sm:$0xff] %v577
      %824 = vst [vmem:[%s179 + $0x20] sm:$0xff] %v582
      %825 = vst [vmem:[%s179 + $0x28] sm:$0xff] %v585
      %826 = vst [vmem:[%s179 + $0x30] sm:$0xff] %v590
      %827 = vst [vmem:[%s179 + $0x38] sm:$0xff] %v593
      %828 = vst [vmem:[%s179 + $0x40] sm:$0xff] %v598
      %829 = vst [vmem:[%s179 + $0x48] sm:$0xff] %v601
      %830 = vst [vmem:[%s179 + $0x50] sm:$0xff] %v606
      %831 = vst [vmem:[%s179 + $0x58] sm:$0xff] %v609
      %832 = vst [vmem:[%s179 + $0x60] sm:$0xff] %v614
      %833 = vst [vmem:[%s179 + $0x68] sm:$0xff] %v617
      %834 = vst [vmem:[%s179 + $0x70] sm:$0xff] %v622
      %835 = vst [vmem:[%s179 + $0x78] sm:$0xff] %v625
      %836 = vst [vmem:[%s179 + $0x80] sm:$0xff] %v630
      %837 = vst [vmem:[%s179 + $0x88] sm:$0xff] %v633
      %838 = vst [vmem:[%s179 + $0x90] sm:$0xff] %v638
      %839 = vst [vmem:[%s179 + $0x98] sm:$0xff] %v641
      %840 = vst [vmem:[%s179 + $0xa0] sm:$0xff] %v646
      %841 = vst [vmem:[%s179 + $0xa8] sm:$0xff] %v649
      %842 = vst [vmem:[%s179 + $0xb0] sm:$0xff] %v654
      %843 = vst [vmem:[%s179 + $0xb8] sm:$0xff] %v657
      %844 = vst [vmem:[%s179 + $0xc0] sm:$0xff] %v662
      %845 = vst [vmem:[%s179 + $0xc8] sm:$0xff] %v665
      %846 = vst [vmem:[%s179 + $0xd0] sm:$0xff] %v670
      %847 = vst [vmem:[%s179 + $0xd8] sm:$0xff] %v673
      %848 = vst [vmem:[%s179 + $0xe0] sm:$0xff] %v678
      %849 = vst [vmem:[%s179 + $0xe8] sm:$0xff] %v681
      %850 = vst [vmem:[%s179 + $0xf0] sm:$0xff] %v686
      %851 = vst [vmem:[%s179 + $0xf8] sm:$0xff] %v689
      %852 = vst [vmem:[%s179 + $0x100] sm:$0xff] %v694
      %853 = vst [vmem:[%s179 + $0x108] sm:$0xff] %v697
      %854 = vst [vmem:[%s179 + $0x110] sm:$0xff] %v702
      %855 = vst [vmem:[%s179 + $0x118] sm:$0xff] %v705
      %856 = vst [vmem:[%s179 + $0x120] sm:$0xff] %v710
      %857 = vst [vmem:[%s179 + $0x128] sm:$0xff] %v713
      %858 = vst [vmem:[%s179 + $0x130] sm:$0xff] %v718
      %859 = vst [vmem:[%s179 + $0x138] sm:$0xff] %v721
      %860 = vst [vmem:[%s179 + $0x140] sm:$0xff] %v726
      %861 = vst [vmem:[%s179 + $0x148] sm:$0xff] %v729
      %862 = vst [vmem:[%s179 + $0x150] sm:$0xff] %v734
      %863 = vst [vmem:[%s179 + $0x158] sm:$0xff] %v737
      %864 = vst [vmem:[%s179 + $0x160] sm:$0xff] %v742
      %865 = vst [vmem:[%s179 + $0x168] sm:$0xff] %v745
      %866 = vst [vmem:[%s179 + $0x170] sm:$0xff] %v750
      %867 = vst [vmem:[%s179 + $0x178] sm:$0xff] %v753
      %868 = vst [vmem:[%s179 + $0x180] sm:$0xff] %v758
      %869 = vst [vmem:[%s179 + $0x188] sm:$0xff] %v761
      %870 = vst [vmem:[%s179 + $0x190] sm:$0xff] %v766
      %871 = vst [vmem:[%s179 + $0x198] sm:$0xff] %v769
      %872 = vst [vmem:[%s179 + $0x1a0] sm:$0xff] %v774
      %873 = vst [vmem:[%s179 + $0x1a8] sm:$0xff] %v777
      %874 = vst [vmem:[%s179 + $0x1b0] sm:$0xff] %v782
      %875 = vst [vmem:[%s179 + $0x1b8] sm:$0xff] %v785
      %876 = vst [vmem:[%s179 + $0x1c0] sm:$0xff] %v790
      %877 = vst [vmem:[%s179 + $0x1c8] sm:$0xff] %v793
      %878 = vst [vmem:[%s179 + $0x1d0] sm:$0xff] %v798
      %879 = vst [vmem:[%s179 + $0x1d8] sm:$0xff] %v801
      %880 = vst [vmem:[%s179 + $0x1e0] sm:$0xff] %v806
      %881 = vst [vmem:[%s179 + $0x1e8] sm:$0xff] %v809
      %882 = vst [vmem:[%s179 + $0x1f0] sm:$0xff] %v814
      %883 = vst [vmem:[%s179 + $0x1f8] sm:$0xff] %v817
      %v884 = vadd.f32 %v566, %v569
      %v885 = vadd.f32 %v884, %v574
      %v886 = vadd.f32 %v885, %v577
      %v887 = vadd.f32 %v886, %v582
      %v888 = vadd.f32 %v887, %v585
      %v889 = vadd.f32 %v888, %v590
      %v890 = vadd.f32 %v889, %v593
      %v891 = vadd.f32 %v890, %v598
      %v892 = vadd.f32 %v891, %v601
      %v893 = vadd.f32 %v892, %v606
      %v894 = vadd.f32 %v893, %v609
      %v895 = vadd.f32 %v894, %v614
      %v896 = vadd.f32 %v895, %v617
      %v897 = vadd.f32 %v896, %v622
      %v898 = vadd.f32 %v897, %v625
      %v899 = vadd.f32 %v898, %v630
      %v900 = vadd.f32 %v899, %v633
      %v901 = vadd.f32 %v900, %v638
      %v902 = vadd.f32 %v901, %v641
      %v903 = vadd.f32 %v902, %v646
      %v904 = vadd.f32 %v903, %v649
      %v905 = vadd.f32 %v904, %v654
      %v906 = vadd.f32 %v905, %v657
      %v907 = vadd.f32 %v906, %v662
      %v908 = vadd.f32 %v907, %v665
      %v909 = vadd.f32 %v908, %v670
      %v910 = vadd.f32 %v909, %v673
      %v911 = vadd.f32 %v910, %v678
      %v912 = vadd.f32 %v911, %v681
      %v913 = vadd.f32 %v912, %v686
      %v914 = vadd.f32 %v913, %v689
      %v915 = vadd.f32 %v914, %v694
      %v916 = vadd.f32 %v915, %v697
      %v917 = vadd.f32 %v916, %v702
      %v918 = vadd.f32 %v917, %v705
      %v919 = vadd.f32 %v918, %v710
      %v920 = vadd.f32 %v919, %v713
      %v921 = vadd.f32 %v920, %v718
      %v922 = vadd.f32 %v921, %v721
      %v923 = vadd.f32 %v922, %v726
      %v924 = vadd.f32 %v923, %v729
      %v925 = vadd.f32 %v924, %v734
      %v926 = vadd.f32 %v925, %v737
      %v927 = vadd.f32 %v926, %v742
      %v928 = vadd.f32 %v927, %v745
      %v929 = vadd.f32 %v928, %v750
      %v930 = vadd.f32 %v929, %v753
      %v931 = vadd.f32 %v930, %v758
      %v932 = vadd.f32 %v931, %v761
      %v933 = vadd.f32 %v932, %v766
      %v934 = vadd.f32 %v933, %v769
      %v935 = vadd.f32 %v934, %v774
      %v936 = vadd.f32 %v935, %v777
      %v937 = vadd.f32 %v936, %v782
      %v938 = vadd.f32 %v937, %v785
      %v939 = vadd.f32 %v938, %v790
      %v940 = vadd.f32 %v939, %v793
      %v941 = vadd.f32 %v940, %v798
      %v942 = vadd.f32 %v941, %v801
      %v943 = vadd.f32 %v942, %v806
      %v944 = vadd.f32 %v943, %v809
      %v945 = vadd.f32 %v944, %v814
      %v946 = vadd.f32 %v945, %v817
      %v947 = vrot.slane %v946, 4
      %v948 = vadd.f32 %v946, %v947
      %v949 = vrot.slane %v948, 2
      %v950 = vadd.f32 %v948, %v949
      %v951 = vrot.slane %v950, 1
      %v952 = vadd.f32 %v950, %v951
      %v953 = vmul.f32 %v566, %v566
      %v954 = vmul.f32 %v569, %v569
      %v955 = vmul.f32 %v574, %v574
      %v956 = vmul.f32 %v577, %v577
      %v957 = vmul.f32 %v582, %v582
      %v958 = vmul.f32 %v585, %v585
      %v959 = vmul.f32 %v590, %v590
      %v960 = vmul.f32 %v593, %v593
      %v961 = vmul.f32 %v598, %v598
      %v962 = vmul.f32 %v601, %v601
      %v963 = vmul.f32 %v606, %v606
      %v964 = vmul.f32 %v609, %v609
      %v965 = vmul.f32 %v614, %v614
      %v966 = vmul.f32 %v617, %v617
      %v967 = vmul.f32 %v622, %v622
      %v968 = vmul.f32 %v625, %v625
      %v969 = vmul.f32 %v630, %v630
      %v970 = vmul.f32 %v633, %v633
      %v971 = vmul.f32 %v638, %v638
      %v972 = vmul.f32 %v641, %v641
      %v973 = vmul.f32 %v646, %v646
      %v974 = vmul.f32 %v649, %v649
      %v975 = vmul.f32 %v654, %v654
      %v976 = vmul.f32 %v657, %v657
      %v977 = vmul.f32 %v662, %v662
      %v978 = vmul.f32 %v665, %v665
      %v979 = vmul.f32 %v670, %v670
      %v980 = vmul.f32 %v673, %v673
      %v981 = vmul.f32 %v678, %v678
      %v982 = vmul.f32 %v681, %v681
      %v983 = vmul.f32 %v686, %v686
      %v984 = vmul.f32 %v689, %v689
      %v985 = vmul.f32 %v694, %v694
      %v986 = vmul.f32 %v697, %v697
      %v987 = vmul.f32 %v702, %v702
      %v988 = vmul.f32 %v705, %v705
      %v989 = vmul.f32 %v710, %v710
      %v990 = vmul.f32 %v713, %v713
      %v991 = vmul.f32 %v718, %v718
      %v992 = vmul.f32 %v721, %v721
      %v993 = vmul.f32 %v726, %v726
      %v994 = vmul.f32 %v729, %v729
      %v995 = vmul.f32 %v734, %v734
      %v996 = vmul.f32 %v737, %v737
      %v997 = vmul.f32 %v742, %v742
      %v998 = vmul.f32 %v745, %v745
      %v999 = vmul.f32 %v750, %v750
      %v1000 = vmul.f32 %v753, %v753
      %v1001 = vmul.f32 %v758, %v758
      %v1002 = vmul.f32 %v761, %v761
      %v1003 = vmul.f32 %v766, %v766
      %v1004 = vmul.f32 %v769, %v769
      %v1005 = vmul.f32 %v774, %v774
      %v1006 = vmul.f32 %v777, %v777
      %v1007 = vmul.f32 %v782, %v782
      %v1008 = vmul.f32 %v785, %v785
      %v1009 = vmul.f32 %v790, %v790
      %v1010 = vmul.f32 %v793, %v793
      %v1011 = vmul.f32 %v798, %v798
      %v1012 = vmul.f32 %v801, %v801
      %v1013 = vmul.f32 %v806, %v806
      %v1014 = vmul.f32 %v809, %v809
      %v1015 = vmul.f32 %v814, %v814
      %v1016 = vmul.f32 %v817, %v817
      %v1017 = vadd.f32 %v953, %v954
      %v1018 = vadd.f32 %v1017, %v955
      %v1019 = vadd.f32 %v1018, %v956
      %v1020 = vadd.f32 %v1019, %v957
      %v1021 = vadd.f32 %v1020, %v958
      %v1022 = vadd.f32 %v1021, %v959
      %v1023 = vadd.f32 %v1022, %v960
      %v1024 = vadd.f32 %v1023, %v961
      %v1025 = vadd.f32 %v1024, %v962
      %v1026 = vadd.f32 %v1025, %v963
      %v1027 = vadd.f32 %v1026, %v964
      %v1028 = vadd.f32 %v1027, %v965
      %v1029 = vadd.f32 %v1028, %v966
      %v1030 = vadd.f32 %v1029, %v967
      %v1031 = vadd.f32 %v1030, %v968
      %v1032 = vadd.f32 %v1031, %v969
      %v1033 = vadd.f32 %v1032, %v970
      %v1034 = vadd.f32 %v1033, %v971
      %v1035 = vadd.f32 %v1034, %v972
      %v1036 = vadd.f32 %v1035, %v973
      %v1037 = vadd.f32 %v1036, %v974
      %v1038 = vadd.f32 %v1037, %v975
      %v1039 = vadd.f32 %v1038, %v976
      %v1040 = vadd.f32 %v1039, %v977
      %v1041 = vadd.f32 %v1040, %v978
      %v1042 = vadd.f32 %v1041, %v979
      %v1043 = vadd.f32 %v1042, %v980
      %v1044 = vadd.f32 %v1043, %v981
      %v1045 = vadd.f32 %v1044, %v982
      %v1046 = vadd.f32 %v1045, %v983
      %v1047 = vadd.f32 %v1046, %v984
      %v1048 = vadd.f32 %v1047, %v985
      %v1049 = vadd.f32 %v1048, %v986
      %v1050 = vadd.f32 %v1049, %v987
      %v1051 = vadd.f32 %v1050, %v988
      %v1052 = vadd.f32 %v1051, %v989
      %v1053 = vadd.f32 %v1052, %v990
      %v1054 = vadd.f32 %v1053, %v991
      %v1055 = vadd.f32 %v1054, %v992
      %v1056 = vadd.f32 %v1055, %v993
      %v1057 = vadd.f32 %v1056, %v994
      %v1058 = vadd.f32 %v1057, %v995
      %v1059 = vadd.f32 %v1058, %v996
      %v1060 = vadd.f32 %v1059, %v997
      %v1061 = vadd.f32 %v1060, %v998
      %v1062 = vadd.f32 %v1061, %v999
      %v1063 = vadd.f32 %v1062, %v1000
      %v1064 = vadd.f32 %v1063, %v1001
      %v1065 = vadd.f32 %v1064, %v1002
      %v1066 = vadd.f32 %v1065, %v1003
      %v1067 = vadd.f32 %v1066, %v1004
      %v1068 = vadd.f32 %v1067, %v1005
      %v1069 = vadd.f32 %v1068, %v1006
      %v1070 = vadd.f32 %v1069, %v1007
      %v1071 = vadd.f32 %v1070, %v1008
      %v1072 = vadd.f32 %v1071, %v1009
      %v1073 = vadd.f32 %v1072, %v1010
      %v1074 = vadd.f32 %v1073, %v1011
      %v1075 = vadd.f32 %v1074, %v1012
      %v1076 = vadd.f32 %v1075, %v1013
      %v1077 = vadd.f32 %v1076, %v1014
      %v1078 = vadd.f32 %v1077, %v1015
      %v1079 = vadd.f32 %v1078, %v1016
      %v1080 = vrot.slane %v1079, 4
      %v1081 = vadd.f32 %v1079, %v1080
      %v1082 = vrot.slane %v1081, 2
      %v1083 = vadd.f32 %v1081, %v1082
      %v1084 = vrot.slane %v1083, 1
      %v1085 = vadd.f32 %v1083, %v1084
      %vm1086 = vcmask 1040384
      %v1087 = vsel %vm1086, %v952, %v1085
      %vm1088 = vcmask 1041408
      %v1089 = vsel %vm1088, %v1087, 0.0
      %1090 = vst [vmem:[%s184] sm:$0xff] %v1089
      %s1091 = smul.u32 64, %s15
      %p1092 = scmp.lt.s32.totalorder %s1091, 447
      %s1093 = scalar_select %p1092, %s1091, 447
      %s1094 = smul.addr %s1093, 8
      %s1095 = scalar_lea.vmem %s2, %s1094
      %p1096 = scmp.lt.s32.totalorder %s15, 6
      %s1097 = scalar_select %p1096, %s15, 6
      %s1098 = smul.addr %s1097, 8
      %s1099 = scalar_lea.vmem %s3, %s1098
      // Predicated region
      $region29: #{forward.7} parent=27 // pred_check
        %p1100 = pneg %p80
      $region30: #{forward.7} parent=27 // pred_check_branch
        %1102 = sbr.rel (%p1100) target = $region32
      $region31: #{forward.7} parent=27 // pred_region
        %s1103 = smul.u32 64, %s15
      $region32: #{forward.7} parent=27 // pred_fallthru
        _
      // Predicated region
      $region33: #{forward.7} parent=27 // pred_check
        %p1104 = pneg %p106
      $region34: #{forward.7} parent=27 // pred_check_branch
        %1106 = sbr.rel (%p1104) target = $region36
      $region35: #{forward.7} parent=27 // pred_region
        _
      $region36: #{forward.7} parent=27 // pred_fallthru
        _
    $region28: #{forward.7} parent=5 // pred_fallthru
      _
    %p1107 = scmp.le.s32.totalorder 2, %s10
    // Predicated region
    $region37: #{forward.7} parent=5 // pred_check
      %p1108 = pneg %p1107
    $region38: #{forward.7} parent=5 // pred_check_branch
      %1110 = sbr.rel (%p1108) target = $region40
    $region39: #{forward.7} parent=5 // pred_region
      %s1111 = ssub.s32 %s10, 2
      // Predicated region
      $region41: #{forward.7} parent=39 // pred_check
        %p1112 = pneg %p86
      $region42: #{forward.7} parent=39 // pred_check_branch
        %1114 = sbr.rel (%p1112) target = $region44
      $region43: #{forward.7} parent=39 // pred_region
        %s1115 = smul.u32 64, %s16
        %p1116 = scmp.lt.s32.totalorder %s1115, 447
        %s1117 = scalar_select %p1116, %s1115, 447
        %s1118 = smul.addr %s1117, 8
        %s1119 = scalar_lea.vmem %s2, %s1118
      $region44: #{forward.7} parent=39 // pred_fallthru
        _
      // Predicated region
      $region45: #{forward.7} parent=39 // pred_check
        %p1120 = pneg %p112
      $region46: #{forward.7} parent=39 // pred_check_branch
        %1122 = sbr.rel (%p1120) target = $region48
      $region47: #{forward.7} parent=39 // pred_region
        %p1123 = scmp.lt.s32.totalorder %s16, 6
        %s1124 = scalar_select %p1123, %s16, 6
        %s1125 = smul.addr %s1124, 8
        %s1126 = scalar_lea.vmem %s3, %s1125
      $region48: #{forward.7} parent=39 // pred_fallthru
        _
    $region40: #{forward.7} parent=5 // pred_fallthru
      _
  $region6: #{forward.7} parent=0 // loop_footer
    %s14 = sadd.s32 1, %s10
  $region7: #{forward.7} parent=0 // loop_footer_branch
    %9 = sbr.rel target = $region3
  $region8: #{forward.7} parent=0 // loop_exit
    _

// kernel: forward.8
$region0: #{forward.8}
  #allocation0 [shape = 'u32[]', space=smem, size = 0x4, offset = 0x4, fixed_abs, tag = 'smem constant byte address 0x4 - core index']
  #allocation1 [shape = 'u32[144,128]{1,0:T(1,128)}', space=vmem, size = 0x12000, scoped, tag = 'internal scratch']
  %s0 = inlined_call_operand.vmem [shape: f32[3584,128], index: 0, kind: input, shape index: {}]
  %s1 = inlined_call_operand.vmem [shape: f32[1,128], index: 1, kind: input, shape index: {}]
  %s2 = inlined_call_operand.vmem [shape: f32[1,128], index: 2, kind: input, shape index: {}]
  %s3 = inlined_call_operand.vmem [shape: bf16[3584,128], index: 3, kind: output, shape index: {}]
  %s4 = sld [smem:[#allocation0]]
  $region45: #{forward.8} parent=0
    _
  %s6 = ssub.s32 1, %s4
  %s7 = scalar_select 0, %s6, %s4
  loop: start=0, step=1, limit=9
  $region2: #{forward.8} parent=0 // loop_pre_header
    _
  $region3: #{forward.8} parent=0 // loop_header
    %s9 = sphi 0, %s13
    %p10 = scmp.ge.s32.totalorder %s9, 9
    %s19 = sphi 0, %s21
    %s22 = sphi 0, %s19
    %s23 = sphi 0, %s22
    %s39 = sphi 0, %s23
    %s43 = sphi 0, %s43
    %s45 = sphi 0, %s43
    %s46 = sphi 0, %s45
    %s60 = sphi 0, %s46
    %s64 = sphi 0, %s64
    %s66 = sphi 0, %s64
    %s67 = sphi 0, %s66
    %s81 = sphi 0, %s67
    %s87 = sphi 0, %s89
    %s90 = sphi 0, %s87
    %s91 = sphi 0, %s90
    %s107 = sphi 0, %s91
  $region4: #{forward.8} parent=0 // loop_header_branch
    %12 = sbr.rel (%p10) target = $region8
  $region5: #{forward.8} parent=0 // loop_body
    %s14 = ssub.s32 %s9, 1
    %s15 = ssub.s32 %s9, 2
    %s16 = sadd.s32 %s9, 1
    %s17 = ssub.s32 %s9, %s16
    %p18 = scmp.eq.s32.totalorder %s17, 0
    %s20 = sadd.s32 %s19, 1
    %s21 = scalar_select %p18, %s19, %s20
    %p24 = pneg %p18
    %p25 = scmp.eq.s32.totalorder %s9, 6
    %p26 = por %p24, %p25
    %p27 = scmp.ne.s32.totalorder %s19, %s22
    %p28 = scmp.eq.s32.totalorder %s9, 0
    %p29 = por %p27, %p28
    %p30 = scmp.ne.s32.totalorder %s19, %s22
    %p31 = scmp.eq.s32.totalorder %s14, 6
    %p32 = por %p30, %p31
    %p33 = scmp.ne.s32.totalorder %s22, %s23
    %p34 = scmp.eq.s32.totalorder %s14, 0
    %p35 = por %p33, %p34
    %p36 = scmp.ne.s32.totalorder %s22, %s23
    %p37 = scmp.eq.s32.totalorder %s15, 6
    %p38 = por %p36, %p37
    %p40 = scmp.ne.s32.totalorder %s23, %s39
    %p41 = scmp.eq.s32.totalorder %s15, 0
    %p42 = por %p40, %p41
    %s44 = sadd.s32 %s43, 1
    %p47 = scmp.eq.s32.totalorder %s9, 6
    %p48 = scmp.ne.s32.totalorder %s43, %s45
    %p49 = scmp.eq.s32.totalorder %s9, 0
    %p50 = por %p48, %p49
    %p51 = scmp.ne.s32.totalorder %s43, %s45
    %p52 = scmp.eq.s32.totalorder %s14, 6
    %p53 = por %p51, %p52
    %p54 = scmp.ne.s32.totalorder %s45, %s46
    %p55 = scmp.eq.s32.totalorder %s14, 0
    %p56 = por %p54, %p55
    %p57 = scmp.ne.s32.totalorder %s45, %s46
    %p58 = scmp.eq.s32.totalorder %s15, 6
    %p59 = por %p57, %p58
    %p61 = scmp.ne.s32.totalorder %s46, %s60
    %p62 = scmp.eq.s32.totalorder %s15, 0
    %p63 = por %p61, %p62
    %s65 = sadd.s32 %s64, 1
    %p68 = scmp.eq.s32.totalorder %s9, 6
    %p69 = scmp.ne.s32.totalorder %s64, %s66
    %p70 = scmp.eq.s32.totalorder %s9, 0
    %p71 = por %p69, %p70
    %p72 = scmp.ne.s32.totalorder %s64, %s66
    %p73 = scmp.eq.s32.totalorder %s14, 6
    %p74 = por %p72, %p73
    %p75 = scmp.ne.s32.totalorder %s66, %s67
    %p76 = scmp.eq.s32.totalorder %s14, 0
    %p77 = por %p75, %p76
    %p78 = scmp.ne.s32.totalorder %s66, %s67
    %p79 = scmp.eq.s32.totalorder %s15, 6
    %p80 = por %p78, %p79
    %p82 = scmp.ne.s32.totalorder %s67, %s81
    %p83 = scmp.eq.s32.totalorder %s15, 0
    %p84 = por %p82, %p83
    %s85 = ssub.s32 %s9, %s16
    %p86 = scmp.eq.s32.totalorder %s85, 0
    %s88 = sadd.s32 %s87, 1
    %s89 = scalar_select %p86, %s87, %s88
    %p92 = pneg %p86
    %p93 = scmp.eq.s32.totalorder %s9, 6
    %p94 = por %p92, %p93
    %p95 = scmp.ne.s32.totalorder %s87, %s90
    %p96 = scmp.eq.s32.totalorder %s9, 0
    %p97 = por %p95, %p96
    %p98 = scmp.ne.s32.totalorder %s87, %s90
    %p99 = scmp.eq.s32.totalorder %s14, 6
    %p100 = por %p98, %p99
    %p101 = scmp.ne.s32.totalorder %s90, %s91
    %p102 = scmp.eq.s32.totalorder %s14, 0
    %p103 = por %p101, %p102
    %p104 = scmp.ne.s32.totalorder %s90, %s91
    %p105 = scmp.eq.s32.totalorder %s15, 6
    %p106 = por %p104, %p105
    %p108 = scmp.ne.s32.totalorder %s91, %s107
    %p109 = scmp.eq.s32.totalorder %s15, 0
    %p110 = por %p108, %p109
    %p111 = scmp.le.s32.totalorder 1, %s9
    %p112 = scmp.lt.s32.totalorder %s9, 8
    %p113 = pnand %p111, %p112
    %p114 = pneg %p113
    // Predicated region
    $region9: #{forward.8} parent=5 // pred_check
      _
    $region10: #{forward.8} parent=5 // pred_check_branch
      %116 = sbr.rel (%p113) target = $region12
    $region11: #{forward.8} parent=5 // pred_region
      %s117 = ssub.s32 %s9, 1
      // Predicated region
      $region13: #{forward.8} parent=11 // pred_check
        %p118 = pneg %p56
      $region14: #{forward.8} parent=11 // pred_check_branch
        %120 = sbr.rel (%p118) target = $region16
      $region15: #{forward.8} parent=11 // pred_region
        _
      $region16: #{forward.8} parent=11 // pred_fallthru
        _
      // Predicated region
      $region17: #{forward.8} parent=11 // pred_check
        %p121 = pneg %p77
      $region18: #{forward.8} parent=11 // pred_check_branch
        %123 = sbr.rel (%p121) target = $region20
      $region19: #{forward.8} parent=11 // pred_region
        _
      $region20: #{forward.8} parent=11 // pred_fallthru
        _
    $region12: #{forward.8} parent=5 // pred_fallthru
      _
    %p124 = scmp.lt.s32.totalorder %s9, 7
    // Predicated region
    $region21: #{forward.8} parent=5 // pred_check
      %p125 = pneg %p124
    $region22: #{forward.8} parent=5 // pred_check_branch
      %127 = sbr.rel (%p125) target = $region24
    $region23: #{forward.8} parent=5 // pred_region
      // Predicated region
      $region25: #{forward.8} parent=23 // pred_check
        %p128 = pneg %p29
      $region26: #{forward.8} parent=23 // pred_check_branch
        %130 = sbr.rel (%p128) target = $region28
      $region27: #{forward.8} parent=23 // pred_region
        %s131 = smul.u32 64, %s9
        %p132 = scmp.lt.s32.totalorder %s131, 447
        %s133 = scalar_select %p132, %s131, 447
        %s134 = smul.addr %s133, 8
        %s135 = scalar_lea.vmem %s0, %s134
        %s136 = smul.u32 64, %s9
      $region28: #{forward.8} parent=23 // pred_fallthru
        _
    $region24: #{forward.8} parent=5 // pred_fallthru
      _
    %p137 = scmp.le.s32.totalorder 1, %s9
    %p138 = scmp.lt.s32.totalorder %s9, 8
    %p139 = pnand %p137, %p138
    %p140 = pneg %p139
    // Predicated region
    $region29: #{forward.8} parent=5 // pred_check
      _
    $region30: #{forward.8} parent=5 // pred_check_branch
      %142 = sbr.rel (%p139) target = $region32
    $region31: #{forward.8} parent=5 // pred_region
      %s143 = ssub.s32 %s9, 1
      %s144 = smul.u32 64, %s14
      %p145 = scmp.lt.s32.totalorder %s144, 447
      %s146 = scalar_select %p145, %s144, 447
      %s147 = smul.addr %s146, 8
      %s148 = scalar_lea.vmem %s0, %s147
      %p149 = pneg %p35
      %p150 = pneg %p32
      %p151 = pneg %p56
      %p152 = pneg %p53
      %p153 = pneg %p77
      %p154 = pneg %p74
      %p155 = pneg %p103
      %p156 = pneg %p100
      %s157 = smul.u32 64, %s14
      %p158 = scmp.lt.s32.totalorder %s157, 447
      %s159 = scalar_select %p158, %s157, 447
      %s160 = smul.addr %s159, 4
      %s161 = scalar_lea.vmem %s3, %s160
      %s162 = smul.u32 64, %s14
      %p163 = scmp.lt.s32.totalorder %s162, 447
      %s164 = scalar_select %p163, %s162, 447
      %s165 = smul.addr %s164, 8
      %s166 = scalar_lea.vmem %s0, %s165
      %s167 = smul.u32 64, %s14
      %s168 = smul.u32 64, %s14
      %p169 = scmp.lt.s32.totalorder %s168, 447
      %s170 = scalar_select %p169, %s168, 447
      %s171 = smul.addr %s170, 4
      %s172 = scalar_lea.vmem %s3, %s171
      %s173 = smul.u32 64, %s14
      %v174 = vld [vmem:[%s166] sm:$0xff]
      %v175 = vld [vmem:[%s166 + $0x8] sm:$0xff]
      %v176 = vld [vmem:[%s166 + $0x10] sm:$0xff]
      %v177 = vld [vmem:[%s166 + $0x18] sm:$0xff]
      %v178 = vld [vmem:[%s166 + $0x20] sm:$0xff]
      %v179 = vld [vmem:[%s166 + $0x28] sm:$0xff]
      %v180 = vld [vmem:[%s166 + $0x30] sm:$0xff]
      %v181 = vld [vmem:[%s166 + $0x38] sm:$0xff]
      %v182 = vld [vmem:[%s166 + $0x40] sm:$0xff]
      %v183 = vld [vmem:[%s166 + $0x48] sm:$0xff]
      %v184 = vld [vmem:[%s166 + $0x50] sm:$0xff]
      %v185 = vld [vmem:[%s166 + $0x58] sm:$0xff]
      %v186 = vld [vmem:[%s166 + $0x60] sm:$0xff]
      %v187 = vld [vmem:[%s166 + $0x68] sm:$0xff]
      %v188 = vld [vmem:[%s166 + $0x70] sm:$0xff]
      %v189 = vld [vmem:[%s166 + $0x78] sm:$0xff]
      %v190 = vld [vmem:[%s166 + $0x80] sm:$0xff]
      %v191 = vld [vmem:[%s166 + $0x88] sm:$0xff]
      %v192 = vld [vmem:[%s166 + $0x90] sm:$0xff]
      %v193 = vld [vmem:[%s166 + $0x98] sm:$0xff]
      %v194 = vld [vmem:[%s166 + $0xa0] sm:$0xff]
      %v195 = vld [vmem:[%s166 + $0xa8] sm:$0xff]
      %v196 = vld [vmem:[%s166 + $0xb0] sm:$0xff]
      %v197 = vld [vmem:[%s166 + $0xb8] sm:$0xff]
      %v198 = vld [vmem:[%s166 + $0xc0] sm:$0xff]
      %v199 = vld [vmem:[%s166 + $0xc8] sm:$0xff]
      %v200 = vld [vmem:[%s166 + $0xd0] sm:$0xff]
      %v201 = vld [vmem:[%s166 + $0xd8] sm:$0xff]
      %v202 = vld [vmem:[%s166 + $0xe0] sm:$0xff]
      %v203 = vld [vmem:[%s166 + $0xe8] sm:$0xff]
      %v204 = vld [vmem:[%s166 + $0xf0] sm:$0xff]
      %v205 = vld [vmem:[%s166 + $0xf8] sm:$0xff]
      %v206 = vld [vmem:[%s166 + $0x100] sm:$0xff]
      %v207 = vld [vmem:[%s166 + $0x108] sm:$0xff]
      %v208 = vld [vmem:[%s166 + $0x110] sm:$0xff]
      %v209 = vld [vmem:[%s166 + $0x118] sm:$0xff]
      %v210 = vld [vmem:[%s166 + $0x120] sm:$0xff]
      %v211 = vld [vmem:[%s166 + $0x128] sm:$0xff]
      %v212 = vld [vmem:[%s166 + $0x130] sm:$0xff]
      %v213 = vld [vmem:[%s166 + $0x138] sm:$0xff]
      %v214 = vld [vmem:[%s166 + $0x140] sm:$0xff]
      %v215 = vld [vmem:[%s166 + $0x148] sm:$0xff]
      %v216 = vld [vmem:[%s166 + $0x150] sm:$0xff]
      %v217 = vld [vmem:[%s166 + $0x158] sm:$0xff]
      %v218 = vld [vmem:[%s166 + $0x160] sm:$0xff]
      %v219 = vld [vmem:[%s166 + $0x168] sm:$0xff]
      %v220 = vld [vmem:[%s166 + $0x170] sm:$0xff]
      %v221 = vld [vmem:[%s166 + $0x178] sm:$0xff]
      %v222 = vld [vmem:[%s166 + $0x180] sm:$0xff]
      %v223 = vld [vmem:[%s166 + $0x188] sm:$0xff]
      %v224 = vld [vmem:[%s166 + $0x190] sm:$0xff]
      %v225 = vld [vmem:[%s166 + $0x198] sm:$0xff]
      %v226 = vld [vmem:[%s166 + $0x1a0] sm:$0xff]
      %v227 = vld [vmem:[%s166 + $0x1a8] sm:$0xff]
      %v228 = vld [vmem:[%s166 + $0x1b0] sm:$0xff]
      %v229 = vld [vmem:[%s166 + $0x1b8] sm:$0xff]
      %v230 = vld [vmem:[%s166 + $0x1c0] sm:$0xff]
      %v231 = vld [vmem:[%s166 + $0x1c8] sm:$0xff]
      %v232 = vld [vmem:[%s166 + $0x1d0] sm:$0xff]
      %v233 = vld [vmem:[%s166 + $0x1d8] sm:$0xff]
      %v234 = vld [vmem:[%s166 + $0x1e0] sm:$0xff]
      %v235 = vld [vmem:[%s166 + $0x1e8] sm:$0xff]
      %v236 = vld [vmem:[%s166 + $0x1f0] sm:$0xff]
      %v237 = vld [vmem:[%s166 + $0x1f8] sm:$0xff]
      %v238 = vld [vmem:[%s1] sm:$0x1]
      %v240 = vlaneseq
      %v241 = vshrl.u32 %v240, 7
      %v242 = vsub.s32 0, %v241
      %v243 = vrot.slane %v238, %v242
      %v245 = vmul.f32 %v174, %v243
      %v246 = vmul.f32 %v175, %v243
      %v247 = vmul.f32 %v176, %v243
      %v248 = vmul.f32 %v177, %v243
      %v249 = vmul.f32 %v178, %v243
      %v250 = vmul.f32 %v179, %v243
      %v251 = vmul.f32 %v180, %v243
      %v252 = vmul.f32 %v181, %v243
      %v253 = vmul.f32 %v182, %v243
      %v254 = vmul.f32 %v183, %v243
      %v255 = vmul.f32 %v184, %v243
      %v256 = vmul.f32 %v185, %v243
      %v257 = vmul.f32 %v186, %v243
      %v258 = vmul.f32 %v187, %v243
      %v259 = vmul.f32 %v188, %v243
      %v260 = vmul.f32 %v189, %v243
      %v261 = vmul.f32 %v190, %v243
      %v262 = vmul.f32 %v191, %v243
      %v263 = vmul.f32 %v192, %v243
      %v264 = vmul.f32 %v193, %v243
      %v265 = vmul.f32 %v194, %v243
      %v266 = vmul.f32 %v195, %v243
      %v267 = vmul.f32 %v196, %v243
      %v268 = vmul.f32 %v197, %v243
      %v269 = vmul.f32 %v198, %v243
      %v270 = vmul.f32 %v199, %v243
      %v271 = vmul.f32 %v200, %v243
      %v272 = vmul.f32 %v201, %v243
      %v273 = vmul.f32 %v202, %v243
      %v274 = vmul.f32 %v203, %v243
      %v275 = vmul.f32 %v204, %v243
      %v276 = vmul.f32 %v205, %v243
      %v277 = vmul.f32 %v206, %v243
      %v278 = vmul.f32 %v207, %v243
      %v279 = vmul.f32 %v208, %v243
      %v280 = vmul.f32 %v209, %v243
      %v281 = vmul.f32 %v210, %v243
      %v282 = vmul.f32 %v211, %v243
      %v283 = vmul.f32 %v212, %v243
      %v284 = vmul.f32 %v213, %v243
      %v285 = vmul.f32 %v214, %v243
      %v286 = vmul.f32 %v215, %v243
      %v287 = vmul.f32 %v216, %v243
      %v288 = vmul.f32 %v217, %v243
      %v289 = vmul.f32 %v218, %v243
      %v290 = vmul.f32 %v219, %v243
      %v291 = vmul.f32 %v220, %v243
      %v292 = vmul.f32 %v221, %v243
      %v293 = vmul.f32 %v222, %v243
      %v294 = vmul.f32 %v223, %v243
      %v295 = vmul.f32 %v224, %v243
      %v296 = vmul.f32 %v225, %v243
      %v297 = vmul.f32 %v226, %v243
      %v298 = vmul.f32 %v227, %v243
      %v299 = vmul.f32 %v228, %v243
      %v300 = vmul.f32 %v229, %v243
      %v301 = vmul.f32 %v230, %v243
      %v302 = vmul.f32 %v231, %v243
      %v303 = vmul.f32 %v232, %v243
      %v304 = vmul.f32 %v233, %v243
      %v305 = vmul.f32 %v234, %v243
      %v306 = vmul.f32 %v235, %v243
      %v307 = vmul.f32 %v236, %v243
      %v308 = vmul.f32 %v237, %v243
      %v309 = vld [vmem:[%s2] sm:$0x1]
      %v311 = vlaneseq
      %v312 = vshrl.u32 %v311, 7
      %v313 = vsub.s32 0, %v312
      %v314 = vrot.slane %v309, %v313
      %v316 = vadd.f32 %v245, %v314
      %v317 = vadd.f32 %v246, %v314
      %v318 = vadd.f32 %v247, %v314
      %v319 = vadd.f32 %v248, %v314
      %v320 = vadd.f32 %v249, %v314
      %v321 = vadd.f32 %v250, %v314
      %v322 = vadd.f32 %v251, %v314
      %v323 = vadd.f32 %v252, %v314
      %v324 = vadd.f32 %v253, %v314
      %v325 = vadd.f32 %v254, %v314
      %v326 = vadd.f32 %v255, %v314
      %v327 = vadd.f32 %v256, %v314
      %v328 = vadd.f32 %v257, %v314
      %v329 = vadd.f32 %v258, %v314
      %v330 = vadd.f32 %v259, %v314
      %v331 = vadd.f32 %v260, %v314
      %v332 = vadd.f32 %v261, %v314
      %v333 = vadd.f32 %v262, %v314
      %v334 = vadd.f32 %v263, %v314
      %v335 = vadd.f32 %v264, %v314
      %v336 = vadd.f32 %v265, %v314
      %v337 = vadd.f32 %v266, %v314
      %v338 = vadd.f32 %v267, %v314
      %v339 = vadd.f32 %v268, %v314
      %v340 = vadd.f32 %v269, %v314
      %v341 = vadd.f32 %v270, %v314
      %v342 = vadd.f32 %v271, %v314
      %v343 = vadd.f32 %v272, %v314
      %v344 = vadd.f32 %v273, %v314
      %v345 = vadd.f32 %v274, %v314
      %v346 = vadd.f32 %v275, %v314
      %v347 = vadd.f32 %v276, %v314
      %v348 = vadd.f32 %v277, %v314
      %v349 = vadd.f32 %v278, %v314
      %v350 = vadd.f32 %v279, %v314
      %v351 = vadd.f32 %v280, %v314
      %v352 = vadd.f32 %v281, %v314
      %v353 = vadd.f32 %v282, %v314
      %v354 = vadd.f32 %v283, %v314
      %v355 = vadd.f32 %v284, %v314
      %v356 = vadd.f32 %v285, %v314
      %v357 = vadd.f32 %v286, %v314
      %v358 = vadd.f32 %v287, %v314
      %v359 = vadd.f32 %v288, %v314
      %v360 = vadd.f32 %v289, %v314
      %v361 = vadd.f32 %v290, %v314
      %v362 = vadd.f32 %v291, %v314
      %v363 = vadd.f32 %v292, %v314
      %v364 = vadd.f32 %v293, %v314
      %v365 = vadd.f32 %v294, %v314
      %v366 = vadd.f32 %v295, %v314
      %v367 = vadd.f32 %v296, %v314
      %v368 = vadd.f32 %v297, %v314
      %v369 = vadd.f32 %v298, %v314
      %v370 = vadd.f32 %v299, %v314
      %v371 = vadd.f32 %v300, %v314
      %v372 = vadd.f32 %v301, %v314
      %v373 = vadd.f32 %v302, %v314
      %v374 = vadd.f32 %v303, %v314
      %v375 = vadd.f32 %v304, %v314
      %v376 = vadd.f32 %v305, %v314
      %v377 = vadd.f32 %v306, %v314
      %v378 = vadd.f32 %v307, %v314
      %v379 = vadd.f32 %v308, %v314
      %v380 = vmax.f32 %v316, 0.0
      %v381 = vmax.f32 %v317, 0.0
      %v382 = vmax.f32 %v318, 0.0
      %v383 = vmax.f32 %v319, 0.0
      %v384 = vmax.f32 %v320, 0.0
      %v385 = vmax.f32 %v321, 0.0
      %v386 = vmax.f32 %v322, 0.0
      %v387 = vmax.f32 %v323, 0.0
      %v388 = vmax.f32 %v324, 0.0
      %v389 = vmax.f32 %v325, 0.0
      %v390 = vmax.f32 %v326, 0.0
      %v391 = vmax.f32 %v327, 0.0
      %v392 = vmax.f32 %v328, 0.0
      %v393 = vmax.f32 %v329, 0.0
      %v394 = vmax.f32 %v330, 0.0
      %v395 = vmax.f32 %v331, 0.0
      %v396 = vmax.f32 %v332, 0.0
      %v397 = vmax.f32 %v333, 0.0
      %v398 = vmax.f32 %v334, 0.0
      %v399 = vmax.f32 %v335, 0.0
      %v400 = vmax.f32 %v336, 0.0
      %v401 = vmax.f32 %v337, 0.0
      %v402 = vmax.f32 %v338, 0.0
      %v403 = vmax.f32 %v339, 0.0
      %v404 = vmax.f32 %v340, 0.0
      %v405 = vmax.f32 %v341, 0.0
      %v406 = vmax.f32 %v342, 0.0
      %v407 = vmax.f32 %v343, 0.0
      %v408 = vmax.f32 %v344, 0.0
      %v409 = vmax.f32 %v345, 0.0
      %v410 = vmax.f32 %v346, 0.0
      %v411 = vmax.f32 %v347, 0.0
      %v412 = vmax.f32 %v348, 0.0
      %v413 = vmax.f32 %v349, 0.0
      %v414 = vmax.f32 %v350, 0.0
      %v415 = vmax.f32 %v351, 0.0
      %v416 = vmax.f32 %v352, 0.0
      %v417 = vmax.f32 %v353, 0.0
      %v418 = vmax.f32 %v354, 0.0
      %v419 = vmax.f32 %v355, 0.0
      %v420 = vmax.f32 %v356, 0.0
      %v421 = vmax.f32 %v357, 0.0
      %v422 = vmax.f32 %v358, 0.0
      %v423 = vmax.f32 %v359, 0.0
      %v424 = vmax.f32 %v360, 0.0
      %v425 = vmax.f32 %v361, 0.0
      %v426 = vmax.f32 %v362, 0.0
      %v427 = vmax.f32 %v363, 0.0
      %v428 = vmax.f32 %v364, 0.0
      %v429 = vmax.f32 %v365, 0.0
      %v430 = vmax.f32 %v366, 0.0
      %v431 = vmax.f32 %v367, 0.0
      %v432 = vmax.f32 %v368, 0.0
      %v433 = vmax.f32 %v369, 0.0
      %v434 = vmax.f32 %v370, 0.0
      %v435 = vmax.f32 %v371, 0.0
      %v436 = vmax.f32 %v372, 0.0
      %v437 = vmax.f32 %v373, 0.0
      %v438 = vmax.f32 %v374, 0.0
      %v439 = vmax.f32 %v375, 0.0
      %v440 = vmax.f32 %v376, 0.0
      %v441 = vmax.f32 %v377, 0.0
      %v442 = vmax.f32 %v378, 0.0
      %v443 = vmax.f32 %v379, 0.0
      %v444 = vpack.c.bf16 %v381, %v380
      %v445 = vpack.c.bf16 %v383, %v382
      %v446 = vpack.c.bf16 %v385, %v384
      %v447 = vpack.c.bf16 %v387, %v386
      %v448 = vpack.c.bf16 %v389, %v388
      %v449 = vpack.c.bf16 %v391, %v390
      %v450 = vpack.c.bf16 %v393, %v392
      %v451 = vpack.c.bf16 %v395, %v394
      %v452 = vpack.c.bf16 %v397, %v396
      %v453 = vpack.c.bf16 %v399, %v398
      %v454 = vpack.c.bf16 %v401, %v400
      %v455 = vpack.c.bf16 %v403, %v402
      %v456 = vpack.c.bf16 %v405, %v404
      %v457 = vpack.c.bf16 %v407, %v406
      %v458 = vpack.c.bf16 %v409, %v408
      %v459 = vpack.c.bf16 %v411, %v410
      %v460 = vpack.c.bf16 %v413, %v412
      %v461 = vpack.c.bf16 %v415, %v414
      %v462 = vpack.c.bf16 %v417, %v416
      %v463 = vpack.c.bf16 %v419, %v418
      %v464 = vpack.c.bf16 %v421, %v420
      %v465 = vpack.c.bf16 %v423, %v422
      %v466 = vpack.c.bf16 %v425, %v424
      %v467 = vpack.c.bf16 %v427, %v426
      %v468 = vpack.c.bf16 %v429, %v428
      %v469 = vpack.c.bf16 %v431, %v430
      %v470 = vpack.c.bf16 %v433, %v432
      %v471 = vpack.c.bf16 %v435, %v434
      %v472 = vpack.c.bf16 %v437, %v436
      %v473 = vpack.c.bf16 %v439, %v438
      %v474 = vpack.c.bf16 %v441, %v440
      %v475 = vpack.c.bf16 %v443, %v442
      %v508 = vunpack.c.l.b16 %v444
      %v509 = vunpack.c.h.b16 %v444
      %v510 = vunpack.c.l.b16 %v445
      %v511 = vunpack.c.h.b16 %v445
      %v512 = vunpack.c.l.b16 %v446
      %v513 = vunpack.c.h.b16 %v446
      %v514 = vunpack.c.l.b16 %v447
      %v515 = vunpack.c.h.b16 %v447
      %v516 = vunpack.c.l.b16 %v448
      %v517 = vunpack.c.h.b16 %v448
      %v518 = vunpack.c.l.b16 %v449
      %v519 = vunpack.c.h.b16 %v449
      %v520 = vunpack.c.l.b16 %v450
      %v521 = vunpack.c.h.b16 %v450
      %v522 = vunpack.c.l.b16 %v451
      %v523 = vunpack.c.h.b16 %v451
      %v524 = vunpack.c.l.b16 %v452
      %v525 = vunpack.c.h.b16 %v452
      %v526 = vunpack.c.l.b16 %v453
      %v527 = vunpack.c.h.b16 %v453
      %v528 = vunpack.c.l.b16 %v454
      %v529 = vunpack.c.h.b16 %v454
      %v530 = vunpack.c.l.b16 %v455
      %v531 = vunpack.c.h.b16 %v455
      %v532 = vunpack.c.l.b16 %v456
      %v533 = vunpack.c.h.b16 %v456
      %v534 = vunpack.c.l.b16 %v457
      %v535 = vunpack.c.h.b16 %v457
      %v536 = vunpack.c.l.b16 %v458
      %v537 = vunpack.c.h.b16 %v458
      %v538 = vunpack.c.l.b16 %v459
      %v539 = vunpack.c.h.b16 %v459
      %v540 = vunpack.c.l.b16 %v460
      %v541 = vunpack.c.h.b16 %v460
      %v542 = vunpack.c.l.b16 %v461
      %v543 = vunpack.c.h.b16 %v461
      %v544 = vunpack.c.l.b16 %v462
      %v545 = vunpack.c.h.b16 %v462
      %v546 = vunpack.c.l.b16 %v463
      %v547 = vunpack.c.h.b16 %v463
      %v548 = vunpack.c.l.b16 %v464
      %v549 = vunpack.c.h.b16 %v464
      %v550 = vunpack.c.l.b16 %v465
      %v551 = vunpack.c.h.b16 %v465
      %v552 = vunpack.c.l.b16 %v466
      %v553 = vunpack.c.h.b16 %v466
      %v554 = vunpack.c.l.b16 %v467
      %v555 = vunpack.c.h.b16 %v467
      %v556 = vunpack.c.l.b16 %v468
      %v557 = vunpack.c.h.b16 %v468
      %v558 = vunpack.c.l.b16 %v469
      %v559 = vunpack.c.h.b16 %v469
      %v560 = vunpack.c.l.b16 %v470
      %v561 = vunpack.c.h.b16 %v470
      %v562 = vunpack.c.l.b16 %v471
      %v563 = vunpack.c.h.b16 %v471
      %v564 = vunpack.c.l.b16 %v472
      %v565 = vunpack.c.h.b16 %v472
      %v566 = vunpack.c.l.b16 %v473
      %v567 = vunpack.c.h.b16 %v473
      %v568 = vunpack.c.l.b16 %v474
      %v569 = vunpack.c.h.b16 %v474
      %v570 = vunpack.c.l.b16 %v475
      %v571 = vunpack.c.h.b16 %v475
      %v572 = vpack.c.b16 %v508, %v508
      %v573 = vpack.c.b16 %v509, %v509
      %v574 = vpack.c.b16 %v510, %v510
      %v575 = vpack.c.b16 %v511, %v511
      %v576 = vpack.c.b16 %v512, %v512
      %v577 = vpack.c.b16 %v513, %v513
      %v578 = vpack.c.b16 %v514, %v514
      %v579 = vpack.c.b16 %v515, %v515
      %v580 = vpack.c.b16 %v516, %v516
      %v581 = vpack.c.b16 %v517, %v517
      %v582 = vpack.c.b16 %v518, %v518
      %v583 = vpack.c.b16 %v519, %v519
      %v584 = vpack.c.b16 %v520, %v520
      %v585 = vpack.c.b16 %v521, %v521
      %v586 = vpack.c.b16 %v522, %v522
      %v587 = vpack.c.b16 %v523, %v523
      %v588 = vpack.c.b16 %v524, %v524
      %v589 = vpack.c.b16 %v525, %v525
      %v590 = vpack.c.b16 %v526, %v526
      %v591 = vpack.c.b16 %v527, %v527
      %v592 = vpack.c.b16 %v528, %v528
      %v593 = vpack.c.b16 %v529, %v529
      %v594 = vpack.c.b16 %v530, %v530
      %v595 = vpack.c.b16 %v531, %v531
      %v596 = vpack.c.b16 %v532, %v532
      %v597 = vpack.c.b16 %v533, %v533
      %v598 = vpack.c.b16 %v534, %v534
      %v599 = vpack.c.b16 %v535, %v535
      %v600 = vpack.c.b16 %v536, %v536
      %v601 = vpack.c.b16 %v537, %v537
      %v602 = vpack.c.b16 %v538, %v538
      %v603 = vpack.c.b16 %v539, %v539
      %v604 = vpack.c.b16 %v540, %v540
      %v605 = vpack.c.b16 %v541, %v541
      %v606 = vpack.c.b16 %v542, %v542
      %v607 = vpack.c.b16 %v543, %v543
      %v608 = vpack.c.b16 %v544, %v544
      %v609 = vpack.c.b16 %v545, %v545
      %v610 = vpack.c.b16 %v546, %v546
      %v611 = vpack.c.b16 %v547, %v547
      %v612 = vpack.c.b16 %v548, %v548
      %v613 = vpack.c.b16 %v549, %v549
      %v614 = vpack.c.b16 %v550, %v550
      %v615 = vpack.c.b16 %v551, %v551
      %v616 = vpack.c.b16 %v552, %v552
      %v617 = vpack.c.b16 %v553, %v553
      %v618 = vpack.c.b16 %v554, %v554
      %v619 = vpack.c.b16 %v555, %v555
      %v620 = vpack.c.b16 %v556, %v556
      %v621 = vpack.c.b16 %v557, %v557
      %v622 = vpack.c.b16 %v558, %v558
      %v623 = vpack.c.b16 %v559, %v559
      %v624 = vpack.c.b16 %v560, %v560
      %v625 = vpack.c.b16 %v561, %v561
      %v626 = vpack.c.b16 %v562, %v562
      %v627 = vpack.c.b16 %v563, %v563
      %v628 = vpack.c.b16 %v564, %v564
      %v629 = vpack.c.b16 %v565, %v565
      %v630 = vpack.c.b16 %v566, %v566
      %v631 = vpack.c.b16 %v567, %v567
      %v632 = vpack.c.b16 %v568, %v568
      %v633 = vpack.c.b16 %v569, %v569
      %v634 = vpack.c.b16 %v570, %v570
      %v635 = vpack.c.b16 %v571, %v571
      %700 = vst [vmem:[%s172] sm:$0xf] %v572
      %701 = vst [vmem:[%s172 + $0x4] sm:$0xf] %v573
      %702 = vst [vmem:[%s172 + $0x8] sm:$0xf] %v574
      %703 = vst [vmem:[%s172 + $0xc] sm:$0xf] %v575
      %704 = vst [vmem:[%s172 + $0x10] sm:$0xf] %v576
      %705 = vst [vmem:[%s172 + $0x14] sm:$0xf] %v577
      %706 = vst [vmem:[%s172 + $0x18] sm:$0xf] %v578
      %707 = vst [vmem:[%s172 + $0x1c] sm:$0xf] %v579
      %708 = vst [vmem:[%s172 + $0x20] sm:$0xf] %v580
      %709 = vst [vmem:[%s172 + $0x24] sm:$0xf] %v581
      %710 = vst [vmem:[%s172 + $0x28] sm:$0xf] %v582
      %711 = vst [vmem:[%s172 + $0x2c] sm:$0xf] %v583
      %712 = vst [vmem:[%s172 + $0x30] sm:$0xf] %v584
      %713 = vst [vmem:[%s172 + $0x34] sm:$0xf] %v585
      %714 = vst [vmem:[%s172 + $0x38] sm:$0xf] %v586
      %715 = vst [vmem:[%s172 + $0x3c] sm:$0xf] %v587
      %716 = vst [vmem:[%s172 + $0x40] sm:$0xf] %v588
      %717 = vst [vmem:[%s172 + $0x44] sm:$0xf] %v589
      %718 = vst [vmem:[%s172 + $0x48] sm:$0xf] %v590
      %719 = vst [vmem:[%s172 + $0x4c] sm:$0xf] %v591
      %720 = vst [vmem:[%s172 + $0x50] sm:$0xf] %v592
      %721 = vst [vmem:[%s172 + $0x54] sm:$0xf] %v593
      %722 = vst [vmem:[%s172 + $0x58] sm:$0xf] %v594
      %723 = vst [vmem:[%s172 + $0x5c] sm:$0xf] %v595
      %724 = vst [vmem:[%s172 + $0x60] sm:$0xf] %v596
      %725 = vst [vmem:[%s172 + $0x64] sm:$0xf] %v597
      %726 = vst [vmem:[%s172 + $0x68] sm:$0xf] %v598
      %727 = vst [vmem:[%s172 + $0x6c] sm:$0xf] %v599
      %728 = vst [vmem:[%s172 + $0x70] sm:$0xf] %v600
      %729 = vst [vmem:[%s172 + $0x74] sm:$0xf] %v601
      %730 = vst [vmem:[%s172 + $0x78] sm:$0xf] %v602
      %731 = vst [vmem:[%s172 + $0x7c] sm:$0xf] %v603
      %732 = vst [vmem:[%s172 + $0x80] sm:$0xf] %v604
      %733 = vst [vmem:[%s172 + $0x84] sm:$0xf] %v605
      %734 = vst [vmem:[%s172 + $0x88] sm:$0xf] %v606
      %735 = vst [vmem:[%s172 + $0x8c] sm:$0xf] %v607
      %736 = vst [vmem:[%s172 + $0x90] sm:$0xf] %v608
      %737 = vst [vmem:[%s172 + $0x94] sm:$0xf] %v609
      %738 = vst [vmem:[%s172 + $0x98] sm:$0xf] %v610
      %739 = vst [vmem:[%s172 + $0x9c] sm:$0xf] %v611
      %740 = vst [vmem:[%s172 + $0xa0] sm:$0xf] %v612
      %741 = vst [vmem:[%s172 + $0xa4] sm:$0xf] %v613
      %742 = vst [vmem:[%s172 + $0xa8] sm:$0xf] %v614
      %743 = vst [vmem:[%s172 + $0xac] sm:$0xf] %v615
      %744 = vst [vmem:[%s172 + $0xb0] sm:$0xf] %v616
      %745 = vst [vmem:[%s172 + $0xb4] sm:$0xf] %v617
      %746 = vst [vmem:[%s172 + $0xb8] sm:$0xf] %v618
      %747 = vst [vmem:[%s172 + $0xbc] sm:$0xf] %v619
      %748 = vst [vmem:[%s172 + $0xc0] sm:$0xf] %v620
      %749 = vst [vmem:[%s172 + $0xc4] sm:$0xf] %v621
      %750 = vst [vmem:[%s172 + $0xc8] sm:$0xf] %v622
      %751 = vst [vmem:[%s172 + $0xcc] sm:$0xf] %v623
      %752 = vst [vmem:[%s172 + $0xd0] sm:$0xf] %v624
      %753 = vst [vmem:[%s172 + $0xd4] sm:$0xf] %v625
      %754 = vst [vmem:[%s172 + $0xd8] sm:$0xf] %v626
      %755 = vst [vmem:[%s172 + $0xdc] sm:$0xf] %v627
      %756 = vst [vmem:[%s172 + $0xe0] sm:$0xf] %v628
      %757 = vst [vmem:[%s172 + $0xe4] sm:$0xf] %v629
      %758 = vst [vmem:[%s172 + $0xe8] sm:$0xf] %v630
      %759 = vst [vmem:[%s172 + $0xec] sm:$0xf] %v631
      %760 = vst [vmem:[%s172 + $0xf0] sm:$0xf] %v632
      %761 = vst [vmem:[%s172 + $0xf4] sm:$0xf] %v633
      %762 = vst [vmem:[%s172 + $0xf8] sm:$0xf] %v634
      %763 = vst [vmem:[%s172 + $0xfc] sm:$0xf] %v635
      %s764 = smul.u32 64, %s14
      %p765 = scmp.lt.s32.totalorder %s764, 447
      %s766 = scalar_select %p765, %s764, 447
      %s767 = smul.addr %s766, 4
      %s768 = scalar_lea.vmem %s3, %s767
      // Predicated region
      $region33: #{forward.8} parent=31 // pred_check
        %p769 = pneg %p100
      $region34: #{forward.8} parent=31 // pred_check_branch
        %771 = sbr.rel (%p769) target = $region36
      $region35: #{forward.8} parent=31 // pred_region
        %s772 = smul.u32 64, %s14
      $region36: #{forward.8} parent=31 // pred_fallthru
        _
    $region32: #{forward.8} parent=5 // pred_fallthru
      _
    %p773 = scmp.le.s32.totalorder 2, %s9
    // Predicated region
    $region37: #{forward.8} parent=5 // pred_check
      %p774 = pneg %p773
    $region38: #{forward.8} parent=5 // pred_check_branch
      %776 = sbr.rel (%p774) target = $region40
    $region39: #{forward.8} parent=5 // pred_region
      %s777 = ssub.s32 %s9, 2
      // Predicated region
      $region41: #{forward.8} parent=39 // pred_check
        %p778 = pneg %p106
      $region42: #{forward.8} parent=39 // pred_check_branch
        %780 = sbr.rel (%p778) target = $region44
      $region43: #{forward.8} parent=39 // pred_region
        %s781 = smul.u32 64, %s15
        %p782 = scmp.lt.s32.totalorder %s781, 447
        %s783 = scalar_select %p782, %s781, 447
        %s784 = smul.addr %s783, 4
        %s785 = scalar_lea.vmem %s3, %s784
      $region44: #{forward.8} parent=39 // pred_fallthru
        _
    $region40: #{forward.8} parent=5 // pred_fallthru
      _
  $region6: #{forward.8} parent=0 // loop_footer
    %s13 = sadd.s32 1, %s9
  $region7: #{forward.8} parent=0 // loop_footer_branch
    %8 = sbr.rel target = $region3
  $region8: #{forward.8} parent=0 // loop_exit
    _

// kernel: forward.9
$region0: #{forward.9}
  #allocation0 [shape = 'u32[]', space=smem, size = 0x4, offset = 0x4, fixed_abs, tag = 'smem constant byte address 0x4 - core index']
  #allocation1 [shape = 'u32[144,128]{1,0:T(1,128)}', space=vmem, size = 0x12000, scoped, tag = 'internal scratch']
  %s0 = inlined_call_operand.vmem [shape: bf16[576,72], index: 0, kind: input, shape index: {}]
  %s1 = inlined_call_operand.vmem [shape: bf16[72,128], index: 1, kind: input, shape index: {}]
  %s2 = inlined_call_operand.vmem [shape: f32[576,128], index: 2, kind: output, shape index: {0}]
  %s3 = inlined_call_operand.vmem [shape: f32[16,128], index: 3, kind: output, shape index: {1}]
  %4 = xla_tuple %s2, %s3
  %s5 = sld [smem:[#allocation0]]
  $region49: #{forward.9} parent=0
    _
  %s7 = ssub.s32 1, %s5
  %s8 = scalar_select 0, %s7, %s5
  loop: start=0, step=1, limit=4
  $region2: #{forward.9} parent=0 // loop_pre_header
    _
  $region3: #{forward.9} parent=0 // loop_header
    %s10 = sphi 0, %s14
    %p11 = scmp.ge.s32.totalorder %s10, 4
    %s20 = sphi 0, %s22
    %s23 = sphi 0, %s20
    %s24 = sphi 0, %s23
    %s40 = sphi 0, %s24
    %s44 = sphi 0, %s44
    %s46 = sphi 0, %s44
    %s47 = sphi 0, %s46
    %s61 = sphi 0, %s47
    %s67 = sphi 0, %s69
    %s70 = sphi 0, %s67
    %s71 = sphi 0, %s70
    %s87 = sphi 0, %s71
    %s93 = sphi 0, %s95
    %s96 = sphi 0, %s93
    %s97 = sphi 0, %s96
    %s113 = sphi 0, %s97
  $region4: #{forward.9} parent=0 // loop_header_branch
    %13 = sbr.rel (%p11) target = $region8
  $region5: #{forward.9} parent=0 // loop_body
    %s15 = ssub.s32 %s10, 1
    %s16 = ssub.s32 %s10, 2
    %s17 = sadd.s32 %s10, 1
    %s18 = ssub.s32 %s10, %s17
    %p19 = scmp.eq.s32.totalorder %s18, 0
    %s21 = sadd.s32 %s20, 1
    %s22 = scalar_select %p19, %s20, %s21
    %p25 = pneg %p19
    %p26 = scmp.eq.s32.totalorder %s10, 1
    %p27 = por %p25, %p26
    %p28 = scmp.ne.s32.totalorder %s20, %s23
    %p29 = scmp.eq.s32.totalorder %s10, 0
    %p30 = por %p28, %p29
    %p31 = scmp.ne.s32.totalorder %s20, %s23
    %p32 = scmp.eq.s32.totalorder %s15, 1
    %p33 = por %p31, %p32
    %p34 = scmp.ne.s32.totalorder %s23, %s24
    %p35 = scmp.eq.s32.totalorder %s15, 0
    %p36 = por %p34, %p35
    %p37 = scmp.ne.s32.totalorder %s23, %s24
    %p38 = scmp.eq.s32.totalorder %s16, 1
    %p39 = por %p37, %p38
    %p41 = scmp.ne.s32.totalorder %s24, %s40
    %p42 = scmp.eq.s32.totalorder %s16, 0
    %p43 = por %p41, %p42
    %s45 = sadd.s32 %s44, 1
    %p48 = scmp.eq.s32.totalorder %s10, 1
    %p49 = scmp.ne.s32.totalorder %s44, %s46
    %p50 = scmp.eq.s32.totalorder %s10, 0
    %p51 = por %p49, %p50
    %p52 = scmp.ne.s32.totalorder %s44, %s46
    %p53 = scmp.eq.s32.totalorder %s15, 1
    %p54 = por %p52, %p53
    %p55 = scmp.ne.s32.totalorder %s46, %s47
    %p56 = scmp.eq.s32.totalorder %s15, 0
    %p57 = por %p55, %p56
    %p58 = scmp.ne.s32.totalorder %s46, %s47
    %p59 = scmp.eq.s32.totalorder %s16, 1
    %p60 = por %p58, %p59
    %p62 = scmp.ne.s32.totalorder %s47, %s61
    %p63 = scmp.eq.s32.totalorder %s16, 0
    %p64 = por %p62, %p63
    %s65 = ssub.s32 %s10, %s17
    %p66 = scmp.eq.s32.totalorder %s65, 0
    %s68 = sadd.s32 %s67, 1
    %s69 = scalar_select %p66, %s67, %s68
    %p72 = pneg %p66
    %p73 = scmp.eq.s32.totalorder %s10, 1
    %p74 = por %p72, %p73
    %p75 = scmp.ne.s32.totalorder %s67, %s70
    %p76 = scmp.eq.s32.totalorder %s10, 0
    %p77 = por %p75, %p76
    %p78 = scmp.ne.s32.totalorder %s67, %s70
    %p79 = scmp.eq.s32.totalorder %s15, 1
    %p80 = por %p78, %p79
    %p81 = scmp.ne.s32.totalorder %s70, %s71
    %p82 = scmp.eq.s32.totalorder %s15, 0
    %p83 = por %p81, %p82
    %p84 = scmp.ne.s32.totalorder %s70, %s71
    %p85 = scmp.eq.s32.totalorder %s16, 1
    %p86 = por %p84, %p85
    %p88 = scmp.ne.s32.totalorder %s71, %s87
    %p89 = scmp.eq.s32.totalorder %s16, 0
    %p90 = por %p88, %p89
    %s91 = ssub.s32 %s10, %s17
    %p92 = scmp.eq.s32.totalorder %s91, 0
    %s94 = sadd.s32 %s93, 1
    %s95 = scalar_select %p92, %s93, %s94
    %p98 = pneg %p92
    %p99 = scmp.eq.s32.totalorder %s10, 1
    %p100 = por %p98, %p99
    %p101 = scmp.ne.s32.totalorder %s93, %s96
    %p102 = scmp.eq.s32.totalorder %s10, 0
    %p103 = por %p101, %p102
    %p104 = scmp.ne.s32.totalorder %s93, %s96
    %p105 = scmp.eq.s32.totalorder %s15, 1
    %p106 = por %p104, %p105
    %p107 = scmp.ne.s32.totalorder %s96, %s97
    %p108 = scmp.eq.s32.totalorder %s15, 0
    %p109 = por %p107, %p108
    %p110 = scmp.ne.s32.totalorder %s96, %s97
    %p111 = scmp.eq.s32.totalorder %s16, 1
    %p112 = por %p110, %p111
    %p114 = scmp.ne.s32.totalorder %s97, %s113
    %p115 = scmp.eq.s32.totalorder %s16, 0
    %p116 = por %p114, %p115
    %p117 = scmp.le.s32.totalorder 1, %s10
    %p118 = scmp.lt.s32.totalorder %s10, 3
    %p119 = pnand %p117, %p118
    %p120 = pneg %p119
    // Predicated region
    $region9: #{forward.9} parent=5 // pred_check
      _
    $region10: #{forward.9} parent=5 // pred_check_branch
      %122 = sbr.rel (%p119) target = $region12
    $region11: #{forward.9} parent=5 // pred_region
      %s123 = ssub.s32 %s10, 1
      // Predicated region
      $region13: #{forward.9} parent=11 // pred_check
        %p124 = pneg %p57
      $region14: #{forward.9} parent=11 // pred_check_branch
        %126 = sbr.rel (%p124) target = $region16
      $region15: #{forward.9} parent=11 // pred_region
        _
      $region16: #{forward.9} parent=11 // pred_fallthru
        _
    $region12: #{forward.9} parent=5 // pred_fallthru
      _
    %p127 = scmp.lt.s32.totalorder %s10, 2
    // Predicated region
    $region17: #{forward.9} parent=5 // pred_check
      %p128 = pneg %p127
    $region18: #{forward.9} parent=5 // pred_check_branch
      %130 = sbr.rel (%p128) target = $region20
    $region19: #{forward.9} parent=5 // pred_region
      // Predicated region
      $region21: #{forward.9} parent=19 // pred_check
        %p131 = pneg %p30
      $region22: #{forward.9} parent=19 // pred_check_branch
        %133 = sbr.rel (%p131) target = $region24
      $region23: #{forward.9} parent=19 // pred_region
        %s134 = smul.u32 36, %s10
        %p135 = scmp.lt.s32.totalorder %s134, 71
        %s136 = scalar_select %p135, %s134, 71
        %s137 = smul.addr %s136, 4
        %s138 = scalar_lea.vmem %s0, %s137
        %s139 = smul.u32 36, %s10
      $region24: #{forward.9} parent=19 // pred_fallthru
        _
    $region20: #{forward.9} parent=5 // pred_fallthru
      _
    %p140 = scmp.le.s32.totalorder 1, %s10
    %p141 = scmp.lt.s32.totalorder %s10, 3
    %p142 = pnand %p140, %p141
    %p143 = pneg %p142
    // Predicated region
    $region25: #{forward.9} parent=5 // pred_check
      _
    $region26: #{forward.9} parent=5 // pred_check_branch
      %145 = sbr.rel (%p142) target = $region28
    $region27: #{forward.9} parent=5 // pred_region
      %s146 = ssub.s32 %s10, 1
      %s147 = smul.u32 36, %s15
      %p148 = scmp.lt.s32.totalorder %s147, 71
      %s149 = scalar_select %p148, %s147, 71
      %s150 = smul.addr %s149, 4
      %s151 = scalar_lea.vmem %s0, %s150
      %p152 = pneg %p36
      %p153 = pneg %p33
      %p154 = pneg %p57
      %p155 = pneg %p54
      %p156 = pneg %p83
      %p157 = pneg %p80
      %s158 = smul.u32 36, %s15
      %p159 = scmp.lt.s32.totalorder %s158, 71
      %s160 = scalar_select %p159, %s158, 71
      %s161 = smul.addr %s160, 8
      %s162 = scalar_lea.vmem %s2, %s161
      %p163 = pneg %p109
      %p164 = pneg %p106
      %p165 = scmp.lt.s32.totalorder %s15, 1
      %s166 = scalar_select %p165, %s15, 1
      %s167 = smul.addr %s166, 8
      %s168 = scalar_lea.vmem %s3, %s167
      %s169 = smul.u32 36, %s15
      %p170 = scmp.lt.s32.totalorder %s169, 71
      %s171 = scalar_select %p170, %s169, 71
      %s172 = smul.addr %s171, 4
      %s173 = scalar_lea.vmem %s0, %s172
      %s174 = smul.u32 36, %s15
      %s175 = smul.u32 36, %s15
      %p176 = scmp.lt.s32.totalorder %s175, 71
      %s177 = scalar_select %p176, %s175, 71
      %s178 = smul.addr %s177, 8
      %s179 = scalar_lea.vmem %s2, %s178
      %s180 = smul.u32 36, %s15
      %p181 = scmp.lt.s32.totalorder %s15, 1
      %s182 = scalar_select %p181, %s15, 1
      %s183 = smul.addr %s182, 8
      %s184 = scalar_lea.vmem %s3, %s183
      %v186 = vld [vmem:[%s173] sm:$0xf]
      %v187 = vld [vmem:[%s173 + $0x4] sm:$0xf]
      %v188 = vld [vmem:[%s173 + $0x8] sm:$0xf]
      %v189 = vld [vmem:[%s173 + $0xc] sm:$0xf]
      %v190 = vld [vmem:[%s173 + $0x10] sm:$0xf]
      %v191 = vld [vmem:[%s173 + $0x14] sm:$0xf]
      %v192 = vld [vmem:[%s173 + $0x18] sm:$0xf]
      %v193 = vld [vmem:[%s173 + $0x1c] sm:$0xf]
      %v194 = vld [vmem:[%s173 + $0x20] sm:$0xf]
      %v195 = vld [vmem:[%s173 + $0x24] sm:$0xf]
      %v196 = vld [vmem:[%s173 + $0x28] sm:$0xf]
      %v197 = vld [vmem:[%s173 + $0x2c] sm:$0xf]
      %v198 = vld [vmem:[%s173 + $0x30] sm:$0xf]
      %v199 = vld [vmem:[%s173 + $0x34] sm:$0xf]
      %v200 = vld [vmem:[%s173 + $0x38] sm:$0xf]
      %v201 = vld [vmem:[%s173 + $0x3c] sm:$0xf]
      %v202 = vld [vmem:[%s173 + $0x40] sm:$0xf]
      %v203 = vld [vmem:[%s173 + $0x44] sm:$0xf]
      %v204 = vld [vmem:[%s173 + $0x48] sm:$0xf]
      %v205 = vld [vmem:[%s173 + $0x4c] sm:$0xf]
      %v206 = vld [vmem:[%s173 + $0x50] sm:$0xf]
      %v207 = vld [vmem:[%s173 + $0x54] sm:$0xf]
      %v208 = vld [vmem:[%s173 + $0x58] sm:$0xf]
      %v209 = vld [vmem:[%s173 + $0x5c] sm:$0xf]
      %v210 = vld [vmem:[%s173 + $0x60] sm:$0xf]
      %v211 = vld [vmem:[%s173 + $0x64] sm:$0xf]
      %v212 = vld [vmem:[%s173 + $0x68] sm:$0xf]
      %v213 = vld [vmem:[%s173 + $0x6c] sm:$0xf]
      %v214 = vld [vmem:[%s173 + $0x70] sm:$0xf]
      %v215 = vld [vmem:[%s173 + $0x74] sm:$0xf]
      %v216 = vld [vmem:[%s173 + $0x78] sm:$0xf]
      %v217 = vld [vmem:[%s173 + $0x7c] sm:$0xf]
      %v218 = vld [vmem:[%s173 + $0x80] sm:$0xf]
      %v219 = vld [vmem:[%s173 + $0x84] sm:$0xf]
      %v220 = vld [vmem:[%s173 + $0x88] sm:$0xf]
      %v221 = vld [vmem:[%s173 + $0x8c] sm:$0xf]
      %v222 = vld [vmem:[%s1] sm:$0xf]
      %v223 = vld [vmem:[%s1 + $0x4] sm:$0xf]
      %v224 = vld [vmem:[%s1 + $0x8] sm:$0xf]
      %v225 = vld [vmem:[%s1 + $0xc] sm:$0xf]
      %v226 = vld [vmem:[%s1 + $0x10] sm:$0xf]
      %v227 = vld [vmem:[%s1 + $0x14] sm:$0xf]
      %v228 = vld [vmem:[%s1 + $0x18] sm:$0xf]
      %v229 = vld [vmem:[%s1 + $0x1c] sm:$0xf]
      %v230 = vld [vmem:[%s1 + $0x20] sm:$0xf]
      %v267 = vunpack.c.l.b16 %v186
      %v268 = vunpack.c.l.b16 %v187
      %v269 = vunpack.c.l.b16 %v188
      %v270 = vunpack.c.l.b16 %v189
      %v271 = vunpack.c.l.b16 %v190
      %v272 = vunpack.c.l.b16 %v191
      %v273 = vunpack.c.l.b16 %v192
      %v274 = vunpack.c.l.b16 %v193
      %v275 = vunpack.c.l.b16 %v194
      %v276 = vunpack.c.l.b16 %v195
      %v277 = vunpack.c.l.b16 %v196
      %v278 = vunpack.c.l.b16 %v197
      %v279 = vunpack.c.l.b16 %v198
      %v280 = vunpack.c.l.b16 %v199
      %v281 = vunpack.c.l.b16 %v200
      %v282 = vunpack.c.l.b16 %v201
      %v283 = vunpack.c.l.b16 %v202
      %v284 = vunpack.c.l.b16 %v203
      %v285 = vunpack.c.l.b16 %v204
      %v286 = vunpack.c.l.b16 %v205
      %v287 = vunpack.c.l.b16 %v206
      %v288 = vunpack.c.l.b16 %v207
      %v289 = vunpack.c.l.b16 %v208
      %v290 = vunpack.c.l.b16 %v209
      %v291 = vunpack.c.l.b16 %v210
      %v292 = vunpack.c.l.b16 %v211
      %v293 = vunpack.c.l.b16 %v212
      %v294 = vunpack.c.l.b16 %v213
      %v295 = vunpack.c.l.b16 %v214
      %v296 = vunpack.c.l.b16 %v215
      %v297 = vunpack.c.l.b16 %v216
      %v298 = vunpack.c.l.b16 %v217
      %v299 = vunpack.c.l.b16 %v218
      %v300 = vunpack.c.l.b16 %v219
      %v301 = vunpack.c.l.b16 %v220
      %v302 = vunpack.c.l.b16 %v221
      %v303 = vpack.c.b16 %v268, %v267
      %v304 = vpack.c.b16 %v270, %v269
      %v305 = vpack.c.b16 %v272, %v271
      %v306 = vpack.c.b16 %v274, %v273
      %v307 = vpack.c.b16 %v276, %v275
      %v308 = vpack.c.b16 %v278, %v277
      %v309 = vpack.c.b16 %v280, %v279
      %v310 = vpack.c.b16 %v282, %v281
      %v311 = vpack.c.b16 %v284, %v283
      %v312 = vpack.c.b16 %v286, %v285
      %v313 = vpack.c.b16 %v288, %v287
      %v314 = vpack.c.b16 %v290, %v289
      %v315 = vpack.c.b16 %v292, %v291
      %v316 = vpack.c.b16 %v294, %v293
      %v317 = vpack.c.b16 %v296, %v295
      %v318 = vpack.c.b16 %v298, %v297
      %v319 = vpack.c.b16 %v300, %v299
      %v320 = vpack.c.b16 %v302, %v301
      %v330 = vunpack.c.l.b16 %v222
      %v331 = vunpack.c.l.b16 %v223
      %v332 = vunpack.c.l.b16 %v224
      %v333 = vunpack.c.l.b16 %v225
      %v334 = vunpack.c.l.b16 %v226
      %v335 = vunpack.c.l.b16 %v227
      %v336 = vunpack.c.l.b16 %v228
      %v337 = vunpack.c.l.b16 %v229
      %v338 = vunpack.c.l.b16 %v230
      %v339 = vpack.c.b16 %v331, %v330
      %v340 = vpack.c.b16 %v333, %v332
      %v341 = vpack.c.b16 %v335, %v334
      %v342 = vpack.c.b16 %v337, %v336
      %v343 = vpack.c.b16 %v338, %v338
      %vm348 = vcmask 588800
      %v350 = vsel %vm348, %v303, 0
      %v353 = vsel %vm348, %v304, 0
      %v356 = vsel %vm348, %v305, 0
      %v359 = vsel %vm348, %v306, 0
      %v362 = vsel %vm348, %v307, 0
      %v365 = vsel %vm348, %v308, 0
      %v368 = vsel %vm348, %v309, 0
      %v371 = vsel %vm348, %v310, 0
      %v374 = vsel %vm348, %v311, 0
      %v377 = vsel %vm348, %v312, 0
      %v380 = vsel %vm348, %v313, 0
      %v383 = vsel %vm348, %v314, 0
      %v386 = vsel %vm348, %v315, 0
      %v389 = vsel %vm348, %v316, 0
      %v392 = vsel %vm348, %v317, 0
      %v395 = vsel %vm348, %v318, 0
      %v398 = vsel %vm348, %v319, 0
      %v401 = vsel %vm348, %v320, 0
      %vm403 = vcmask 1043456
      %v405 = vsel %vm403, %v343, 0
      %407 = vmatprep.subr.bf16.mxu0 0
      %408 = vmatpush1.bf16.msra.mxu0 0
      %409 = vmatprep.subr.bf16.mxu0 0
      %410 = vmatpush1.bf16.msra.mxu0 0
      %411 = vmatprep.subr.bf16.mxu0 0
      %412 = vmatpush1.bf16.msra.mxu0 0
      %413 = vmatprep.subr.bf16.mxu0 0
      %414 = vmatpush1.bf16.msra.mxu0 %v405
      %415 = vmatprep.subr.bf16.mxu0 0
      %416 = vmatpush1.bf16.msra.mxu0 %v342
      %417 = vmatprep.subr.bf16.mxu0 0
      %418 = vmatpush1.bf16.msra.mxu0 %v341
      %419 = vmatprep.subr.bf16.mxu0 0
      %420 = vmatpush1.bf16.msra.mxu0 %v340
      %421 = vmatprep.subr.bf16.mxu0 0
      %422 = vmatpush1.bf16.msra.mxu0 %v339
      %423 = vmatprep.subr.bf16.mxu0 0
      %424 = vmatpush2.bf16.msra.mxu0 0
      %425 = vmatprep.subr.bf16.mxu0 0
      %426 = vmatpush2.bf16.msra.mxu0 0
      %427 = vmatprep.subr.bf16.mxu0 0
      %428 = vmatpush2.bf16.msra.mxu0 0
      %429 = vmatprep.subr.bf16.mxu0 0
      %430 = vmatpush2.bf16.msra.mxu0 0
      %431 = vmatprep.subr.bf16.mxu0 0
      %432 = vmatpush2.bf16.msra.mxu0 0
      %433 = vmatprep.subr.bf16.mxu0 0
      %434 = vmatpush2.bf16.msra.mxu0 0
      %435 = vmatprep.subr.bf16.mxu0 0
      %436 = vmatpush2.bf16.msra.mxu0 0
      %437 = vmatprep.subr.bf16.mxu0 0
      %438 = vmatpush2.bf16.msra.mxu0 0
      %439 = vmatprep.mubr.bf16.mxu0 0
      %440 = vmatmul.mubr.bf16.gmra.mxu0 %v350
      %v441 = vpop.f32.mrf.mxu0
      %v442 = vadd.f32 0.0, %v441
      %v443 = vpop.f32.mrf.mxu0
      %v444 = vpop.f32.mrf.mxu0
      %v445 = vadd.f32 0.0, %v444
      %v446 = vpop.f32.mrf.mxu0
      %447 = vmatprep.mubr.bf16.mxu0 0
      %448 = vmatmul.mubr.bf16.gmra.mxu0 %v353
      %v449 = vpop.f32.mrf.mxu0
      %v450 = vadd.f32 0.0, %v449
      %v451 = vpop.f32.mrf.mxu0
      %v452 = vpop.f32.mrf.mxu0
      %v453 = vadd.f32 0.0, %v452
      %v454 = vpop.f32.mrf.mxu0
      %455 = vmatprep.mubr.bf16.mxu0 0
      %456 = vmatmul.mubr.bf16.gmra.mxu0 %v356
      %v457 = vpop.f32.mrf.mxu0
      %v458 = vadd.f32 0.0, %v457
      %v459 = vpop.f32.mrf.mxu0
      %v460 = vpop.f32.mrf.mxu0
      %v461 = vadd.f32 0.0, %v460
      %v462 = vpop.f32.mrf.mxu0
      %463 = vmatprep.mubr.bf16.mxu0 0
      %464 = vmatmul.mubr.bf16.gmra.mxu0 %v359
      %v465 = vpop.f32.mrf.mxu0
      %v466 = vadd.f32 0.0, %v465
      %v467 = vpop.f32.mrf.mxu0
      %v468 = vpop.f32.mrf.mxu0
      %v469 = vadd.f32 0.0, %v468
      %v470 = vpop.f32.mrf.mxu0
      %471 = vmatprep.mubr.bf16.mxu0 0
      %472 = vmatmul.mubr.bf16.gmra.mxu0 %v362
      %v473 = vpop.f32.mrf.mxu0
      %v474 = vadd.f32 0.0, %v473
      %v475 = vpop.f32.mrf.mxu0
      %v476 = vpop.f32.mrf.mxu0
      %v477 = vadd.f32 0.0, %v476
      %v478 = vpop.f32.mrf.mxu0
      %479 = vmatprep.mubr.bf16.mxu0 0
      %480 = vmatmul.mubr.bf16.gmra.mxu0 %v365
      %v481 = vpop.f32.mrf.mxu0
      %v482 = vadd.f32 0.0, %v481
      %v483 = vpop.f32.mrf.mxu0
      %v484 = vpop.f32.mrf.mxu0
      %v485 = vadd.f32 0.0, %v484
      %v486 = vpop.f32.mrf.mxu0
      %487 = vmatprep.mubr.bf16.mxu0 0
      %488 = vmatmul.mubr.bf16.gmra.mxu0 %v368
      %v489 = vpop.f32.mrf.mxu0
      %v490 = vadd.f32 0.0, %v489
      %v491 = vpop.f32.mrf.mxu0
      %v492 = vpop.f32.mrf.mxu0
      %v493 = vadd.f32 0.0, %v492
      %v494 = vpop.f32.mrf.mxu0
      %495 = vmatprep.mubr.bf16.mxu0 0
      %496 = vmatmul.mubr.bf16.gmra.mxu0 %v371
      %v497 = vpop.f32.mrf.mxu0
      %v498 = vadd.f32 0.0, %v497
      %v499 = vpop.f32.mrf.mxu0
      %v500 = vpop.f32.mrf.mxu0
      %v501 = vadd.f32 0.0, %v500
      %v502 = vpop.f32.mrf.mxu0
      %503 = vmatprep.mubr.bf16.mxu0 0
      %504 = vmatmul.mubr.bf16.gmra.mxu0 %v374
      %v505 = vpop.f32.mrf.mxu0
      %v506 = vadd.f32 0.0, %v505
      %v507 = vpop.f32.mrf.mxu0
      %v508 = vpop.f32.mrf.mxu0
      %v509 = vadd.f32 0.0, %v508
      %v510 = vpop.f32.mrf.mxu0
      %511 = vmatprep.mubr.bf16.mxu0 0
      %512 = vmatmul.mubr.bf16.gmra.mxu0 %v377
      %v513 = vpop.f32.mrf.mxu0
      %v514 = vadd.f32 0.0, %v513
      %v515 = vpop.f32.mrf.mxu0
      %v516 = vpop.f32.mrf.mxu0
      %v517 = vadd.f32 0.0, %v516
      %v518 = vpop.f32.mrf.mxu0
      %519 = vmatprep.mubr.bf16.mxu0 0
      %520 = vmatmul.mubr.bf16.gmra.mxu0 %v380
      %v521 = vpop.f32.mrf.mxu0
      %v522 = vadd.f32 0.0, %v521
      %v523 = vpop.f32.mrf.mxu0
      %v524 = vpop.f32.mrf.mxu0
      %v525 = vadd.f32 0.0, %v524
      %v526 = vpop.f32.mrf.mxu0
      %527 = vmatprep.mubr.bf16.mxu0 0
      %528 = vmatmul.mubr.bf16.gmra.mxu0 %v383
      %v529 = vpop.f32.mrf.mxu0
      %v530 = vadd.f32 0.0, %v529
      %v531 = vpop.f32.mrf.mxu0
      %v532 = vpop.f32.mrf.mxu0
      %v533 = vadd.f32 0.0, %v532
      %v534 = vpop.f32.mrf.mxu0
      %535 = vmatprep.mubr.bf16.mxu0 0
      %536 = vmatmul.mubr.bf16.gmra.mxu0 %v386
      %v537 = vpop.f32.mrf.mxu0
      %v538 = vadd.f32 0.0, %v537
      %v539 = vpop.f32.mrf.mxu0
      %v540 = vpop.f32.mrf.mxu0
      %v541 = vadd.f32 0.0, %v540
      %v542 = vpop.f32.mrf.mxu0
      %543 = vmatprep.mubr.bf16.mxu0 0
      %544 = vmatmul.mubr.bf16.gmra.mxu0 %v389
      %v545 = vpop.f32.mrf.mxu0
      %v546 = vadd.f32 0.0, %v545
      %v547 = vpop.f32.mrf.mxu0
      %v548 = vpop.f32.mrf.mxu0
      %v549 = vadd.f32 0.0, %v548
      %v550 = vpop.f32.mrf.mxu0
      %551 = vmatprep.mubr.bf16.mxu0 0
      %552 = vmatmul.mubr.bf16.gmra.mxu0 %v392
      %v553 = vpop.f32.mrf.mxu0
      %v554 = vadd.f32 0.0, %v553
      %v555 = vpop.f32.mrf.mxu0
      %v556 = vpop.f32.mrf.mxu0
      %v557 = vadd.f32 0.0, %v556
      %v558 = vpop.f32.mrf.mxu0
      %559 = vmatprep.mubr.bf16.mxu0 0
      %560 = vmatmul.mubr.bf16.gmra.mxu0 %v395
      %v561 = vpop.f32.mrf.mxu0
      %v562 = vadd.f32 0.0, %v561
      %v563 = vpop.f32.mrf.mxu0
      %v564 = vpop.f32.mrf.mxu0
      %v565 = vadd.f32 0.0, %v564
      %v566 = vpop.f32.mrf.mxu0
      %567 = vmatprep.mubr.bf16.mxu0 0
      %568 = vmatmul.mubr.bf16.gmra.mxu0 %v398
      %v569 = vpop.f32.mrf.mxu0
      %v570 = vadd.f32 0.0, %v569
      %v571 = vpop.f32.mrf.mxu0
      %v572 = vpop.f32.mrf.mxu0
      %v573 = vadd.f32 0.0, %v572
      %v574 = vpop.f32.mrf.mxu0
      %575 = vmatprep.mubr.bf16.mxu0 0
      %576 = vmatmul.mubr.bf16.gmra.mxu0 %v401
      %v577 = vpop.f32.mrf.mxu0
      %v578 = vadd.f32 0.0, %v577
      %v579 = vpop.f32.mrf.mxu0
      %v580 = vpop.f32.mrf.mxu0
      %v581 = vadd.f32 0.0, %v580
      %v582 = vpop.f32.mrf.mxu0
      %583 = vdwg.mxu0
      %584 = vst [vmem:[%s179] sm:$0xff] %v442
      %585 = vst [vmem:[%s179 + $0x8] sm:$0xff] %v445
      %586 = vst [vmem:[%s179 + $0x10] sm:$0xff] %v450
      %587 = vst [vmem:[%s179 + $0x18] sm:$0xff] %v453
      %588 = vst [vmem:[%s179 + $0x20] sm:$0xff] %v458
      %589 = vst [vmem:[%s179 + $0x28] sm:$0xff] %v461
      %590 = vst [vmem:[%s179 + $0x30] sm:$0xff] %v466
      %591 = vst [vmem:[%s179 + $0x38] sm:$0xff] %v469
      %592 = vst [vmem:[%s179 + $0x40] sm:$0xff] %v474
      %593 = vst [vmem:[%s179 + $0x48] sm:$0xff] %v477
      %594 = vst [vmem:[%s179 + $0x50] sm:$0xff] %v482
      %595 = vst [vmem:[%s179 + $0x58] sm:$0xff] %v485
      %596 = vst [vmem:[%s179 + $0x60] sm:$0xff] %v490
      %597 = vst [vmem:[%s179 + $0x68] sm:$0xff] %v493
      %598 = vst [vmem:[%s179 + $0x70] sm:$0xff] %v498
      %599 = vst [vmem:[%s179 + $0x78] sm:$0xff] %v501
      %600 = vst [vmem:[%s179 + $0x80] sm:$0xff] %v506
      %601 = vst [vmem:[%s179 + $0x88] sm:$0xff] %v509
      %602 = vst [vmem:[%s179 + $0x90] sm:$0xff] %v514
      %603 = vst [vmem:[%s179 + $0x98] sm:$0xff] %v517
      %604 = vst [vmem:[%s179 + $0xa0] sm:$0xff] %v522
      %605 = vst [vmem:[%s179 + $0xa8] sm:$0xff] %v525
      %606 = vst [vmem:[%s179 + $0xb0] sm:$0xff] %v530
      %607 = vst [vmem:[%s179 + $0xb8] sm:$0xff] %v533
      %608 = vst [vmem:[%s179 + $0xc0] sm:$0xff] %v538
      %609 = vst [vmem:[%s179 + $0xc8] sm:$0xff] %v541
      %610 = vst [vmem:[%s179 + $0xd0] sm:$0xff] %v546
      %611 = vst [vmem:[%s179 + $0xd8] sm:$0xff] %v549
      %612 = vst [vmem:[%s179 + $0xe0] sm:$0xff] %v554
      %613 = vst [vmem:[%s179 + $0xe8] sm:$0xff] %v557
      %614 = vst [vmem:[%s179 + $0xf0] sm:$0xff] %v562
      %615 = vst [vmem:[%s179 + $0xf8] sm:$0xff] %v565
      %616 = vst [vmem:[%s179 + $0x100] sm:$0xff] %v570
      %617 = vst [vmem:[%s179 + $0x108] sm:$0xff] %v573
      %618 = vst [vmem:[%s179 + $0x110] sm:$0xff] %v578
      %619 = vst [vmem:[%s179 + $0x118] sm:$0xff] %v581
      %v620 = vadd.f32 %v442, %v445
      %v621 = vadd.f32 %v620, %v450
      %v622 = vadd.f32 %v621, %v453
      %v623 = vadd.f32 %v622, %v458
      %v624 = vadd.f32 %v623, %v461
      %v625 = vadd.f32 %v624, %v466
      %v626 = vadd.f32 %v625, %v469
      %v627 = vadd.f32 %v626, %v474
      %v628 = vadd.f32 %v627, %v477
      %v629 = vadd.f32 %v628, %v482
      %v630 = vadd.f32 %v629, %v485
      %v631 = vadd.f32 %v630, %v490
      %v632 = vadd.f32 %v631, %v493
      %v633 = vadd.f32 %v632, %v498
      %v634 = vadd.f32 %v633, %v501
      %v635 = vadd.f32 %v634, %v506
      %v636 = vadd.f32 %v635, %v509
      %v637 = vadd.f32 %v636, %v514
      %v638 = vadd.f32 %v637, %v517
      %v639 = vadd.f32 %v638, %v522
      %v640 = vadd.f32 %v639, %v525
      %v641 = vadd.f32 %v640, %v530
      %v642 = vadd.f32 %v641, %v533
      %v643 = vadd.f32 %v642, %v538
      %v644 = vadd.f32 %v643, %v541
      %v645 = vadd.f32 %v644, %v546
      %v646 = vadd.f32 %v645, %v549
      %v647 = vadd.f32 %v646, %v554
      %v648 = vadd.f32 %v647, %v557
      %v649 = vadd.f32 %v648, %v562
      %v650 = vadd.f32 %v649, %v565
      %v651 = vadd.f32 %v650, %v570
      %v652 = vadd.f32 %v651, %v573
      %v653 = vadd.f32 %v652, %v578
      %v654 = vadd.f32 %v653, %v581
      %v655 = vrot.slane %v654, 4
      %v656 = vadd.f32 %v654, %v655
      %v657 = vrot.slane %v656, 2
      %v658 = vadd.f32 %v656, %v657
      %v659 = vrot.slane %v658, 1
      %v660 = vadd.f32 %v658, %v659
      %v661 = vmul.f32 %v442, %v442
      %v662 = vmul.f32 %v445, %v445
      %v663 = vmul.f32 %v450, %v450
      %v664 = vmul.f32 %v453, %v453
      %v665 = vmul.f32 %v458, %v458
      %v666 = vmul.f32 %v461, %v461
      %v667 = vmul.f32 %v466, %v466
      %v668 = vmul.f32 %v469, %v469
      %v669 = vmul.f32 %v474, %v474
      %v670 = vmul.f32 %v477, %v477
      %v671 = vmul.f32 %v482, %v482
      %v672 = vmul.f32 %v485, %v485
      %v673 = vmul.f32 %v490, %v490
      %v674 = vmul.f32 %v493, %v493
      %v675 = vmul.f32 %v498, %v498
      %v676 = vmul.f32 %v501, %v501
      %v677 = vmul.f32 %v506, %v506
      %v678 = vmul.f32 %v509, %v509
      %v679 = vmul.f32 %v514, %v514
      %v680 = vmul.f32 %v517, %v517
      %v681 = vmul.f32 %v522, %v522
      %v682 = vmul.f32 %v525, %v525
      %v683 = vmul.f32 %v530, %v530
      %v684 = vmul.f32 %v533, %v533
      %v685 = vmul.f32 %v538, %v538
      %v686 = vmul.f32 %v541, %v541
      %v687 = vmul.f32 %v546, %v546
      %v688 = vmul.f32 %v549, %v549
      %v689 = vmul.f32 %v554, %v554
      %v690 = vmul.f32 %v557, %v557
      %v691 = vmul.f32 %v562, %v562
      %v692 = vmul.f32 %v565, %v565
      %v693 = vmul.f32 %v570, %v570
      %v694 = vmul.f32 %v573, %v573
      %v695 = vmul.f32 %v578, %v578
      %v696 = vmul.f32 %v581, %v581
      %v697 = vadd.f32 %v661, %v662
      %v698 = vadd.f32 %v697, %v663
      %v699 = vadd.f32 %v698, %v664
      %v700 = vadd.f32 %v699, %v665
      %v701 = vadd.f32 %v700, %v666
      %v702 = vadd.f32 %v701, %v667
      %v703 = vadd.f32 %v702, %v668
      %v704 = vadd.f32 %v703, %v669
      %v705 = vadd.f32 %v704, %v670
      %v706 = vadd.f32 %v705, %v671
      %v707 = vadd.f32 %v706, %v672
      %v708 = vadd.f32 %v707, %v673
      %v709 = vadd.f32 %v708, %v674
      %v710 = vadd.f32 %v709, %v675
      %v711 = vadd.f32 %v710, %v676
      %v712 = vadd.f32 %v711, %v677
      %v713 = vadd.f32 %v712, %v678
      %v714 = vadd.f32 %v713, %v679
      %v715 = vadd.f32 %v714, %v680
      %v716 = vadd.f32 %v715, %v681
      %v717 = vadd.f32 %v716, %v682
      %v718 = vadd.f32 %v717, %v683
      %v719 = vadd.f32 %v718, %v684
      %v720 = vadd.f32 %v719, %v685
      %v721 = vadd.f32 %v720, %v686
      %v722 = vadd.f32 %v721, %v687
      %v723 = vadd.f32 %v722, %v688
      %v724 = vadd.f32 %v723, %v689
      %v725 = vadd.f32 %v724, %v690
      %v726 = vadd.f32 %v725, %v691
      %v727 = vadd.f32 %v726, %v692
      %v728 = vadd.f32 %v727, %v693
      %v729 = vadd.f32 %v728, %v694
      %v730 = vadd.f32 %v729, %v695
      %v731 = vadd.f32 %v730, %v696
      %v732 = vrot.slane %v731, 4
      %v733 = vadd.f32 %v731, %v732
      %v734 = vrot.slane %v733, 2
      %v735 = vadd.f32 %v733, %v734
      %v736 = vrot.slane %v735, 1
      %v737 = vadd.f32 %v735, %v736
      %vm738 = vcmask 1040384
      %v739 = vsel %vm738, %v660, %v737
      %vm740 = vcmask 1041408
      %v741 = vsel %vm740, %v739, 0.0
      %742 = vst [vmem:[%s184] sm:$0xff] %v741
      %s743 = smul.u32 36, %s15
      %p744 = scmp.lt.s32.totalorder %s743, 71
      %s745 = scalar_select %p744, %s743, 71
      %s746 = smul.addr %s745, 8
      %s747 = scalar_lea.vmem %s2, %s746
      %p748 = scmp.lt.s32.totalorder %s15, 1
      %s749 = scalar_select %p748, %s15, 1
      %s750 = smul.addr %s749, 8
      %s751 = scalar_lea.vmem %s3, %s750
      // Predicated region
      $region29: #{forward.9} parent=27 // pred_check
        %p752 = pneg %p80
      $region30: #{forward.9} parent=27 // pred_check_branch
        %754 = sbr.rel (%p752) target = $region32
      $region31: #{forward.9} parent=27 // pred_region
        %s755 = smul.u32 36, %s15
      $region32: #{forward.9} parent=27 // pred_fallthru
        _
      // Predicated region
      $region33: #{forward.9} parent=27 // pred_check
        %p756 = pneg %p106
      $region34: #{forward.9} parent=27 // pred_check_branch
        %758 = sbr.rel (%p756) target = $region36
      $region35: #{forward.9} parent=27 // pred_region
        _
      $region36: #{forward.9} parent=27 // pred_fallthru
        _
    $region28: #{forward.9} parent=5 // pred_fallthru
      _
    %p759 = scmp.le.s32.totalorder 2, %s10
    // Predicated region
    $region37: #{forward.9} parent=5 // pred_check
      %p760 = pneg %p759
    $region38: #{forward.9} parent=5 // pred_check_branch
      %762 = sbr.rel (%p760) target = $region40
    $region39: #{forward.9} parent=5 // pred_region
      %s763 = ssub.s32 %s10, 2
      // Predicated region
      $region41: #{forward.9} parent=39 // pred_check
        %p764 = pneg %p86
      $region42: #{forward.9} parent=39 // pred_check_branch
        %766 = sbr.rel (%p764) target = $region44
      $region43: #{forward.9} parent=39 // pred_region
        %s767 = smul.u32 36, %s16
        %p768 = scmp.lt.s32.totalorder %s767, 71
        %s769 = scalar_select %p768, %s767, 71
        %s770 = smul.addr %s769, 8
        %s771 = scalar_lea.vmem %s2, %s770
      $region44: #{forward.9} parent=39 // pred_fallthru
        _
      // Predicated region
      $region45: #{forward.9} parent=39 // pred_check
        %p772 = pneg %p112
      $region46: #{forward.9} parent=39 // pred_check_branch
        %774 = sbr.rel (%p772) target = $region48
      $region47: #{forward.9} parent=39 // pred_region
        %p775 = scmp.lt.s32.totalorder %s16, 1
        %s776 = scalar_select %p775, %s16, 1
        %s777 = smul.addr %s776, 8
        %s778 = scalar_lea.vmem %s3, %s777
      $region48: #{forward.9} parent=39 // pred_fallthru
        _
    $region40: #{forward.9} parent=5 // pred_fallthru
      _
  $region6: #{forward.9} parent=0 // loop_footer
    %s14 = sadd.s32 1, %s10
  $region7: #{forward.9} parent=0 // loop_footer_branch
    %9 = sbr.rel target = $region3
  $region8: #{forward.9} parent=0 // loop_exit
    _

// kernel: forward.10
$region0: #{forward.10}
  #allocation0 [shape = 'u32[]', space=smem, size = 0x4, offset = 0x4, fixed_abs, tag = 'smem constant byte address 0x4 - core index']
  #allocation1 [shape = 'u32[144,128]{1,0:T(1,128)}', space=vmem, size = 0x12000, scoped, tag = 'internal scratch']
  %s0 = inlined_call_operand.vmem [shape: f32[576,128], index: 0, kind: input, shape index: {}]
  %s1 = inlined_call_operand.vmem [shape: f32[1,128], index: 1, kind: input, shape index: {}]
  %s2 = inlined_call_operand.vmem [shape: f32[1,128], index: 2, kind: input, shape index: {}]
  %s3 = inlined_call_operand.vmem [shape: bf16[576,128], index: 3, kind: output, shape index: {}]
  %s4 = sld [smem:[#allocation0]]
  $region45: #{forward.10} parent=0
    _
  %s6 = ssub.s32 1, %s4
  %s7 = scalar_select 0, %s6, %s4
  loop: start=0, step=1, limit=4
  $region2: #{forward.10} parent=0 // loop_pre_header
    _
  $region3: #{forward.10} parent=0 // loop_header
    %s9 = sphi 0, %s13
    %p10 = scmp.ge.s32.totalorder %s9, 4
    %s19 = sphi 0, %s21
    %s22 = sphi 0, %s19
    %s23 = sphi 0, %s22
    %s39 = sphi 0, %s23
    %s43 = sphi 0, %s43
    %s45 = sphi 0, %s43
    %s46 = sphi 0, %s45
    %s60 = sphi 0, %s46
    %s64 = sphi 0, %s64
    %s66 = sphi 0, %s64
    %s67 = sphi 0, %s66
    %s81 = sphi 0, %s67
    %s87 = sphi 0, %s89
    %s90 = sphi 0, %s87
    %s91 = sphi 0, %s90
    %s107 = sphi 0, %s91
  $region4: #{forward.10} parent=0 // loop_header_branch
    %12 = sbr.rel (%p10) target = $region8
  $region5: #{forward.10} parent=0 // loop_body
    %s14 = ssub.s32 %s9, 1
    %s15 = ssub.s32 %s9, 2
    %s16 = sadd.s32 %s9, 1
    %s17 = ssub.s32 %s9, %s16
    %p18 = scmp.eq.s32.totalorder %s17, 0
    %s20 = sadd.s32 %s19, 1
    %s21 = scalar_select %p18, %s19, %s20
    %p24 = pneg %p18
    %p25 = scmp.eq.s32.totalorder %s9, 1
    %p26 = por %p24, %p25
    %p27 = scmp.ne.s32.totalorder %s19, %s22
    %p28 = scmp.eq.s32.totalorder %s9, 0
    %p29 = por %p27, %p28
    %p30 = scmp.ne.s32.totalorder %s19, %s22
    %p31 = scmp.eq.s32.totalorder %s14, 1
    %p32 = por %p30, %p31
    %p33 = scmp.ne.s32.totalorder %s22, %s23
    %p34 = scmp.eq.s32.totalorder %s14, 0
    %p35 = por %p33, %p34
    %p36 = scmp.ne.s32.totalorder %s22, %s23
    %p37 = scmp.eq.s32.totalorder %s15, 1
    %p38 = por %p36, %p37
    %p40 = scmp.ne.s32.totalorder %s23, %s39
    %p41 = scmp.eq.s32.totalorder %s15, 0
    %p42 = por %p40, %p41
    %s44 = sadd.s32 %s43, 1
    %p47 = scmp.eq.s32.totalorder %s9, 1
    %p48 = scmp.ne.s32.totalorder %s43, %s45
    %p49 = scmp.eq.s32.totalorder %s9, 0
    %p50 = por %p48, %p49
    %p51 = scmp.ne.s32.totalorder %s43, %s45
    %p52 = scmp.eq.s32.totalorder %s14, 1
    %p53 = por %p51, %p52
    %p54 = scmp.ne.s32.totalorder %s45, %s46
    %p55 = scmp.eq.s32.totalorder %s14, 0
    %p56 = por %p54, %p55
    %p57 = scmp.ne.s32.totalorder %s45, %s46
    %p58 = scmp.eq.s32.totalorder %s15, 1
    %p59 = por %p57, %p58
    %p61 = scmp.ne.s32.totalorder %s46, %s60
    %p62 = scmp.eq.s32.totalorder %s15, 0
    %p63 = por %p61, %p62
    %s65 = sadd.s32 %s64, 1
    %p68 = scmp.eq.s32.totalorder %s9, 1
    %p69 = scmp.ne.s32.totalorder %s64, %s66
    %p70 = scmp.eq.s32.totalorder %s9, 0
    %p71 = por %p69, %p70
    %p72 = scmp.ne.s32.totalorder %s64, %s66
    %p73 = scmp.eq.s32.totalorder %s14, 1
    %p74 = por %p72, %p73
    %p75 = scmp.ne.s32.totalorder %s66, %s67
    %p76 = scmp.eq.s32.totalorder %s14, 0
    %p77 = por %p75, %p76
    %p78 = scmp.ne.s32.totalorder %s66, %s67
    %p79 = scmp.eq.s32.totalorder %s15, 1
    %p80 = por %p78, %p79
    %p82 = scmp.ne.s32.totalorder %s67, %s81
    %p83 = scmp.eq.s32.totalorder %s15, 0
    %p84 = por %p82, %p83
    %s85 = ssub.s32 %s9, %s16
    %p86 = scmp.eq.s32.totalorder %s85, 0
    %s88 = sadd.s32 %s87, 1
    %s89 = scalar_select %p86, %s87, %s88
    %p92 = pneg %p86
    %p93 = scmp.eq.s32.totalorder %s9, 1
    %p94 = por %p92, %p93
    %p95 = scmp.ne.s32.totalorder %s87, %s90
    %p96 = scmp.eq.s32.totalorder %s9, 0
    %p97 = por %p95, %p96
    %p98 = scmp.ne.s32.totalorder %s87, %s90
    %p99 = scmp.eq.s32.totalorder %s14, 1
    %p100 = por %p98, %p99
    %p101 = scmp.ne.s32.totalorder %s90, %s91
    %p102 = scmp.eq.s32.totalorder %s14, 0
    %p103 = por %p101, %p102
    %p104 = scmp.ne.s32.totalorder %s90, %s91
    %p105 = scmp.eq.s32.totalorder %s15, 1
    %p106 = por %p104, %p105
    %p108 = scmp.ne.s32.totalorder %s91, %s107
    %p109 = scmp.eq.s32.totalorder %s15, 0
    %p110 = por %p108, %p109
    %p111 = scmp.le.s32.totalorder 1, %s9
    %p112 = scmp.lt.s32.totalorder %s9, 3
    %p113 = pnand %p111, %p112
    %p114 = pneg %p113
    // Predicated region
    $region9: #{forward.10} parent=5 // pred_check
      _
    $region10: #{forward.10} parent=5 // pred_check_branch
      %116 = sbr.rel (%p113) target = $region12
    $region11: #{forward.10} parent=5 // pred_region
      %s117 = ssub.s32 %s9, 1
      // Predicated region
      $region13: #{forward.10} parent=11 // pred_check
        %p118 = pneg %p56
      $region14: #{forward.10} parent=11 // pred_check_branch
        %120 = sbr.rel (%p118) target = $region16
      $region15: #{forward.10} parent=11 // pred_region
        _
      $region16: #{forward.10} parent=11 // pred_fallthru
        _
      // Predicated region
      $region17: #{forward.10} parent=11 // pred_check
        %p121 = pneg %p77
      $region18: #{forward.10} parent=11 // pred_check_branch
        %123 = sbr.rel (%p121) target = $region20
      $region19: #{forward.10} parent=11 // pred_region
        _
      $region20: #{forward.10} parent=11 // pred_fallthru
        _
    $region12: #{forward.10} parent=5 // pred_fallthru
      _
    %p124 = scmp.lt.s32.totalorder %s9, 2
    // Predicated region
    $region21: #{forward.10} parent=5 // pred_check
      %p125 = pneg %p124
    $region22: #{forward.10} parent=5 // pred_check_branch
      %127 = sbr.rel (%p125) target = $region24
    $region23: #{forward.10} parent=5 // pred_region
      // Predicated region
      $region25: #{forward.10} parent=23 // pred_check
        %p128 = pneg %p29
      $region26: #{forward.10} parent=23 // pred_check_branch
        %130 = sbr.rel (%p128) target = $region28
      $region27: #{forward.10} parent=23 // pred_region
        %s131 = smul.u32 36, %s9
        %p132 = scmp.lt.s32.totalorder %s131, 71
        %s133 = scalar_select %p132, %s131, 71
        %s134 = smul.addr %s133, 8
        %s135 = scalar_lea.vmem %s0, %s134
        %s136 = smul.u32 36, %s9
      $region28: #{forward.10} parent=23 // pred_fallthru
        _
    $region24: #{forward.10} parent=5 // pred_fallthru
      _
    %p137 = scmp.le.s32.totalorder 1, %s9
    %p138 = scmp.lt.s32.totalorder %s9, 3
    %p139 = pnand %p137, %p138
    %p140 = pneg %p139
    // Predicated region
    $region29: #{forward.10} parent=5 // pred_check
      _
    $region30: #{forward.10} parent=5 // pred_check_branch
      %142 = sbr.rel (%p139) target = $region32
    $region31: #{forward.10} parent=5 // pred_region
      %s143 = ssub.s32 %s9, 1
      %s144 = smul.u32 36, %s14
      %p145 = scmp.lt.s32.totalorder %s144, 71
      %s146 = scalar_select %p145, %s144, 71
      %s147 = smul.addr %s146, 8
      %s148 = scalar_lea.vmem %s0, %s147
      %p149 = pneg %p35
      %p150 = pneg %p32
      %p151 = pneg %p56
      %p152 = pneg %p53
      %p153 = pneg %p77
      %p154 = pneg %p74
      %p155 = pneg %p103
      %p156 = pneg %p100
      %s157 = smul.u32 36, %s14
      %p158 = scmp.lt.s32.totalorder %s157, 71
      %s159 = scalar_select %p158, %s157, 71
      %s160 = smul.addr %s159, 4
      %s161 = scalar_lea.vmem %s3, %s160
      %s162 = smul.u32 36, %s14
      %p163 = scmp.lt.s32.totalorder %s162, 71
      %s164 = scalar_select %p163, %s162, 71
      %s165 = smul.addr %s164, 8
      %s166 = scalar_lea.vmem %s0, %s165
      %s167 = smul.u32 36, %s14
      %s168 = smul.u32 36, %s14
      %p169 = scmp.lt.s32.totalorder %s168, 71
      %s170 = scalar_select %p169, %s168, 71
      %s171 = smul.addr %s170, 4
      %s172 = scalar_lea.vmem %s3, %s171
      %s173 = smul.u32 36, %s14
      %v174 = vld [vmem:[%s166] sm:$0xff]
      %v175 = vld [vmem:[%s166 + $0x8] sm:$0xff]
      %v176 = vld [vmem:[%s166 + $0x10] sm:$0xff]
      %v177 = vld [vmem:[%s166 + $0x18] sm:$0xff]
      %v178 = vld [vmem:[%s166 + $0x20] sm:$0xff]
      %v179 = vld [vmem:[%s166 + $0x28] sm:$0xff]
      %v180 = vld [vmem:[%s166 + $0x30] sm:$0xff]
      %v181 = vld [vmem:[%s166 + $0x38] sm:$0xff]
      %v182 = vld [vmem:[%s166 + $0x40] sm:$0xff]
      %v183 = vld [vmem:[%s166 + $0x48] sm:$0xff]
      %v184 = vld [vmem:[%s166 + $0x50] sm:$0xff]
      %v185 = vld [vmem:[%s166 + $0x58] sm:$0xff]
      %v186 = vld [vmem:[%s166 + $0x60] sm:$0xff]
      %v187 = vld [vmem:[%s166 + $0x68] sm:$0xff]
      %v188 = vld [vmem:[%s166 + $0x70] sm:$0xff]
      %v189 = vld [vmem:[%s166 + $0x78] sm:$0xff]
      %v190 = vld [vmem:[%s166 + $0x80] sm:$0xff]
      %v191 = vld [vmem:[%s166 + $0x88] sm:$0xff]
      %v192 = vld [vmem:[%s166 + $0x90] sm:$0xff]
      %v193 = vld [vmem:[%s166 + $0x98] sm:$0xff]
      %v194 = vld [vmem:[%s166 + $0xa0] sm:$0xff]
      %v195 = vld [vmem:[%s166 + $0xa8] sm:$0xff]
      %v196 = vld [vmem:[%s166 + $0xb0] sm:$0xff]
      %v197 = vld [vmem:[%s166 + $0xb8] sm:$0xff]
      %v198 = vld [vmem:[%s166 + $0xc0] sm:$0xff]
      %v199 = vld [vmem:[%s166 + $0xc8] sm:$0xff]
      %v200 = vld [vmem:[%s166 + $0xd0] sm:$0xff]
      %v201 = vld [vmem:[%s166 + $0xd8] sm:$0xff]
      %v202 = vld [vmem:[%s166 + $0xe0] sm:$0xff]
      %v203 = vld [vmem:[%s166 + $0xe8] sm:$0xff]
      %v204 = vld [vmem:[%s166 + $0xf0] sm:$0xff]
      %v205 = vld [vmem:[%s166 + $0xf8] sm:$0xff]
      %v206 = vld [vmem:[%s166 + $0x100] sm:$0xff]
      %v207 = vld [vmem:[%s166 + $0x108] sm:$0xff]
      %v208 = vld [vmem:[%s166 + $0x110] sm:$0xff]
      %v209 = vld [vmem:[%s166 + $0x118] sm:$0xff]
      %v210 = vld [vmem:[%s1] sm:$0x1]
      %v212 = vlaneseq
      %v213 = vshrl.u32 %v212, 7
      %v214 = vsub.s32 0, %v213
      %v215 = vrot.slane %v210, %v214
      %v217 = vmul.f32 %v174, %v215
      %v218 = vmul.f32 %v175, %v215
      %v219 = vmul.f32 %v176, %v215
      %v220 = vmul.f32 %v177, %v215
      %v221 = vmul.f32 %v178, %v215
      %v222 = vmul.f32 %v179, %v215
      %v223 = vmul.f32 %v180, %v215
      %v224 = vmul.f32 %v181, %v215
      %v225 = vmul.f32 %v182, %v215
      %v226 = vmul.f32 %v183, %v215
      %v227 = vmul.f32 %v184, %v215
      %v228 = vmul.f32 %v185, %v215
      %v229 = vmul.f32 %v186, %v215
      %v230 = vmul.f32 %v187, %v215
      %v231 = vmul.f32 %v188, %v215
      %v232 = vmul.f32 %v189, %v215
      %v233 = vmul.f32 %v190, %v215
      %v234 = vmul.f32 %v191, %v215
      %v235 = vmul.f32 %v192, %v215
      %v236 = vmul.f32 %v193, %v215
      %v237 = vmul.f32 %v194, %v215
      %v238 = vmul.f32 %v195, %v215
      %v239 = vmul.f32 %v196, %v215
      %v240 = vmul.f32 %v197, %v215
      %v241 = vmul.f32 %v198, %v215
      %v242 = vmul.f32 %v199, %v215
      %v243 = vmul.f32 %v200, %v215
      %v244 = vmul.f32 %v201, %v215
      %v245 = vmul.f32 %v202, %v215
      %v246 = vmul.f32 %v203, %v215
      %v247 = vmul.f32 %v204, %v215
      %v248 = vmul.f32 %v205, %v215
      %v249 = vmul.f32 %v206, %v215
      %v250 = vmul.f32 %v207, %v215
      %v251 = vmul.f32 %v208, %v215
      %v252 = vmul.f32 %v209, %v215
      %v253 = vld [vmem:[%s2] sm:$0x1]
      %v255 = vlaneseq
      %v256 = vshrl.u32 %v255, 7
      %v257 = vsub.s32 0, %v256
      %v258 = vrot.slane %v253, %v257
      %v260 = vadd.f32 %v217, %v258
      %v261 = vadd.f32 %v218, %v258
      %v262 = vadd.f32 %v219, %v258
      %v263 = vadd.f32 %v220, %v258
      %v264 = vadd.f32 %v221, %v258
      %v265 = vadd.f32 %v222, %v258
      %v266 = vadd.f32 %v223, %v258
      %v267 = vadd.f32 %v224, %v258
      %v268 = vadd.f32 %v225, %v258
      %v269 = vadd.f32 %v226, %v258
      %v270 = vadd.f32 %v227, %v258
      %v271 = vadd.f32 %v228, %v258
      %v272 = vadd.f32 %v229, %v258
      %v273 = vadd.f32 %v230, %v258
      %v274 = vadd.f32 %v231, %v258
      %v275 = vadd.f32 %v232, %v258
      %v276 = vadd.f32 %v233, %v258
      %v277 = vadd.f32 %v234, %v258
      %v278 = vadd.f32 %v235, %v258
      %v279 = vadd.f32 %v236, %v258
      %v280 = vadd.f32 %v237, %v258
      %v281 = vadd.f32 %v238, %v258
      %v282 = vadd.f32 %v239, %v258
      %v283 = vadd.f32 %v240, %v258
      %v284 = vadd.f32 %v241, %v258
      %v285 = vadd.f32 %v242, %v258
      %v286 = vadd.f32 %v243, %v258
      %v287 = vadd.f32 %v244, %v258
      %v288 = vadd.f32 %v245, %v258
      %v289 = vadd.f32 %v246, %v258
      %v290 = vadd.f32 %v247, %v258
      %v291 = vadd.f32 %v248, %v258
      %v292 = vadd.f32 %v249, %v258
      %v293 = vadd.f32 %v250, %v258
      %v294 = vadd.f32 %v251, %v258
      %v295 = vadd.f32 %v252, %v258
      %v296 = vmax.f32 %v260, 0.0
      %v297 = vmax.f32 %v261, 0.0
      %v298 = vmax.f32 %v262, 0.0
      %v299 = vmax.f32 %v263, 0.0
      %v300 = vmax.f32 %v264, 0.0
      %v301 = vmax.f32 %v265, 0.0
      %v302 = vmax.f32 %v266, 0.0
      %v303 = vmax.f32 %v267, 0.0
      %v304 = vmax.f32 %v268, 0.0
      %v305 = vmax.f32 %v269, 0.0
      %v306 = vmax.f32 %v270, 0.0
      %v307 = vmax.f32 %v271, 0.0
      %v308 = vmax.f32 %v272, 0.0
      %v309 = vmax.f32 %v273, 0.0
      %v310 = vmax.f32 %v274, 0.0
      %v311 = vmax.f32 %v275, 0.0
      %v312 = vmax.f32 %v276, 0.0
      %v313 = vmax.f32 %v277, 0.0
      %v314 = vmax.f32 %v278, 0.0
      %v315 = vmax.f32 %v279, 0.0
      %v316 = vmax.f32 %v280, 0.0
      %v317 = vmax.f32 %v281, 0.0
      %v318 = vmax.f32 %v282, 0.0
      %v319 = vmax.f32 %v283, 0.0
      %v320 = vmax.f32 %v284, 0.0
      %v321 = vmax.f32 %v285, 0.0
      %v322 = vmax.f32 %v286, 0.0
      %v323 = vmax.f32 %v287, 0.0
      %v324 = vmax.f32 %v288, 0.0
      %v325 = vmax.f32 %v289, 0.0
      %v326 = vmax.f32 %v290, 0.0
      %v327 = vmax.f32 %v291, 0.0
      %v328 = vmax.f32 %v292, 0.0
      %v329 = vmax.f32 %v293, 0.0
      %v330 = vmax.f32 %v294, 0.0
      %v331 = vmax.f32 %v295, 0.0
      %v332 = vpack.c.bf16 %v297, %v296
      %v333 = vpack.c.bf16 %v299, %v298
      %v334 = vpack.c.bf16 %v301, %v300
      %v335 = vpack.c.bf16 %v303, %v302
      %v336 = vpack.c.bf16 %v305, %v304
      %v337 = vpack.c.bf16 %v307, %v306
      %v338 = vpack.c.bf16 %v309, %v308
      %v339 = vpack.c.bf16 %v311, %v310
      %v340 = vpack.c.bf16 %v313, %v312
      %v341 = vpack.c.bf16 %v315, %v314
      %v342 = vpack.c.bf16 %v317, %v316
      %v343 = vpack.c.bf16 %v319, %v318
      %v344 = vpack.c.bf16 %v321, %v320
      %v345 = vpack.c.bf16 %v323, %v322
      %v346 = vpack.c.bf16 %v325, %v324
      %v347 = vpack.c.bf16 %v327, %v326
      %v348 = vpack.c.bf16 %v329, %v328
      %v349 = vpack.c.bf16 %v331, %v330
      %v368 = vunpack.c.l.b16 %v332
      %v369 = vunpack.c.h.b16 %v332
      %v370 = vunpack.c.l.b16 %v333
      %v371 = vunpack.c.h.b16 %v333
      %v372 = vunpack.c.l.b16 %v334
      %v373 = vunpack.c.h.b16 %v334
      %v374 = vunpack.c.l.b16 %v335
      %v375 = vunpack.c.h.b16 %v335
      %v376 = vunpack.c.l.b16 %v336
      %v377 = vunpack.c.h.b16 %v336
      %v378 = vunpack.c.l.b16 %v337
      %v379 = vunpack.c.h.b16 %v337
      %v380 = vunpack.c.l.b16 %v338
      %v381 = vunpack.c.h.b16 %v338
      %v382 = vunpack.c.l.b16 %v339
      %v383 = vunpack.c.h.b16 %v339
      %v384 = vunpack.c.l.b16 %v340
      %v385 = vunpack.c.h.b16 %v340
      %v386 = vunpack.c.l.b16 %v341
      %v387 = vunpack.c.h.b16 %v341
      %v388 = vunpack.c.l.b16 %v342
      %v389 = vunpack.c.h.b16 %v342
      %v390 = vunpack.c.l.b16 %v343
      %v391 = vunpack.c.h.b16 %v343
      %v392 = vunpack.c.l.b16 %v344
      %v393 = vunpack.c.h.b16 %v344
      %v394 = vunpack.c.l.b16 %v345
      %v395 = vunpack.c.h.b16 %v345
      %v396 = vunpack.c.l.b16 %v346
      %v397 = vunpack.c.h.b16 %v346
      %v398 = vunpack.c.l.b16 %v347
      %v399 = vunpack.c.h.b16 %v347
      %v400 = vunpack.c.l.b16 %v348
      %v401 = vunpack.c.h.b16 %v348
      %v402 = vunpack.c.l.b16 %v349
      %v403 = vunpack.c.h.b16 %v349
      %v404 = vpack.c.b16 %v368, %v368
      %v405 = vpack.c.b16 %v369, %v369
      %v406 = vpack.c.b16 %v370, %v370
      %v407 = vpack.c.b16 %v371, %v371
      %v408 = vpack.c.b16 %v372, %v372
      %v409 = vpack.c.b16 %v373, %v373
      %v410 = vpack.c.b16 %v374, %v374
      %v411 = vpack.c.b16 %v375, %v375
      %v412 = vpack.c.b16 %v376, %v376
      %v413 = vpack.c.b16 %v377, %v377
      %v414 = vpack.c.b16 %v378, %v378
      %v415 = vpack.c.b16 %v379, %v379
      %v416 = vpack.c.b16 %v380, %v380
      %v417 = vpack.c.b16 %v381, %v381
      %v418 = vpack.c.b16 %v382, %v382
      %v419 = vpack.c.b16 %v383, %v383
      %v420 = vpack.c.b16 %v384, %v384
      %v421 = vpack.c.b16 %v385, %v385
      %v422 = vpack.c.b16 %v386, %v386
      %v423 = vpack.c.b16 %v387, %v387
      %v424 = vpack.c.b16 %v388, %v388
      %v425 = vpack.c.b16 %v389, %v389
      %v426 = vpack.c.b16 %v390, %v390
      %v427 = vpack.c.b16 %v391, %v391
      %v428 = vpack.c.b16 %v392, %v392
      %v429 = vpack.c.b16 %v393, %v393
      %v430 = vpack.c.b16 %v394, %v394
      %v431 = vpack.c.b16 %v395, %v395
      %v432 = vpack.c.b16 %v396, %v396
      %v433 = vpack.c.b16 %v397, %v397
      %v434 = vpack.c.b16 %v398, %v398
      %v435 = vpack.c.b16 %v399, %v399
      %v436 = vpack.c.b16 %v400, %v400
      %v437 = vpack.c.b16 %v401, %v401
      %v438 = vpack.c.b16 %v402, %v402
      %v439 = vpack.c.b16 %v403, %v403
      %476 = vst [vmem:[%s172] sm:$0xf] %v404
      %477 = vst [vmem:[%s172 + $0x4] sm:$0xf] %v405
      %478 = vst [vmem:[%s172 + $0x8] sm:$0xf] %v406
      %479 = vst [vmem:[%s172 + $0xc] sm:$0xf] %v407
      %480 = vst [vmem:[%s172 + $0x10] sm:$0xf] %v408
      %481 = vst [vmem:[%s172 + $0x14] sm:$0xf] %v409
      %482 = vst [vmem:[%s172 + $0x18] sm:$0xf] %v410
      %483 = vst [vmem:[%s172 + $0x1c] sm:$0xf] %v411
      %484 = vst [vmem:[%s172 + $0x20] sm:$0xf] %v412
      %485 = vst [vmem:[%s172 + $0x24] sm:$0xf] %v413
      %486 = vst [vmem:[%s172 + $0x28] sm:$0xf] %v414
      %487 = vst [vmem:[%s172 + $0x2c] sm:$0xf] %v415
      %488 = vst [vmem:[%s172 + $0x30] sm:$0xf] %v416
      %489 = vst [vmem:[%s172 + $0x34] sm:$0xf] %v417
      %490 = vst [vmem:[%s172 + $0x38] sm:$0xf] %v418
      %491 = vst [vmem:[%s172 + $0x3c] sm:$0xf] %v419
      %492 = vst [vmem:[%s172 + $0x40] sm:$0xf] %v420
      %493 = vst [vmem:[%s172 + $0x44] sm:$0xf] %v421
      %494 = vst [vmem:[%s172 + $0x48] sm:$0xf] %v422
      %495 = vst [vmem:[%s172 + $0x4c] sm:$0xf] %v423
      %496 = vst [vmem:[%s172 + $0x50] sm:$0xf] %v424
      %497 = vst [vmem:[%s172 + $0x54] sm:$0xf] %v425
      %498 = vst [vmem:[%s172 + $0x58] sm:$0xf] %v426
      %499 = vst [vmem:[%s172 + $0x5c] sm:$0xf] %v427
      %500 = vst [vmem:[%s172 + $0x60] sm:$0xf] %v428
      %501 = vst [vmem:[%s172 + $0x64] sm:$0xf] %v429
      %502 = vst [vmem:[%s172 + $0x68] sm:$0xf] %v430
      %503 = vst [vmem:[%s172 + $0x6c] sm:$0xf] %v431
      %504 = vst [vmem:[%s172 + $0x70] sm:$0xf] %v432
      %505 = vst [vmem:[%s172 + $0x74] sm:$0xf] %v433
      %506 = vst [vmem:[%s172 + $0x78] sm:$0xf] %v434
      %507 = vst [vmem:[%s172 + $0x7c] sm:$0xf] %v435
      %508 = vst [vmem:[%s172 + $0x80] sm:$0xf] %v436
      %509 = vst [vmem:[%s172 + $0x84] sm:$0xf] %v437
      %510 = vst [vmem:[%s172 + $0x88] sm:$0xf] %v438
      %511 = vst [vmem:[%s172 + $0x8c] sm:$0xf] %v439
      %s512 = smul.u32 36, %s14
      %p513 = scmp.lt.s32.totalorder %s512, 71
      %s514 = scalar_select %p513, %s512, 71
      %s515 = smul.addr %s514, 4
      %s516 = scalar_lea.vmem %s3, %s515
      // Predicated region
      $region33: #{forward.10} parent=31 // pred_check
        %p517 = pneg %p100
      $region34: #{forward.10} parent=31 // pred_check_branch
        %519 = sbr.rel (%p517) target = $region36
      $region35: #{forward.10} parent=31 // pred_region
        %s520 = smul.u32 36, %s14
      $region36: #{forward.10} parent=31 // pred_fallthru
        _
    $region32: #{forward.10} parent=5 // pred_fallthru
      _
    %p521 = scmp.le.s32.totalorder 2, %s9
    // Predicated region
    $region37: #{forward.10} parent=5 // pred_check
      %p522 = pneg %p521
    $region38: #{forward.10} parent=5 // pred_check_branch
      %524 = sbr.rel (%p522) target = $region40
    $region39: #{forward.10} parent=5 // pred_region
      %s525 = ssub.s32 %s9, 2
      // Predicated region
      $region41: #{forward.10} parent=39 // pred_check
        %p526 = pneg %p106
      $region42: #{forward.10} parent=39 // pred_check_branch
        %528 = sbr.rel (%p526) target = $region44
      $region43: #{forward.10} parent=39 // pred_region
        %s529 = smul.u32 36, %s15
        %p530 = scmp.lt.s32.totalorder %s529, 71
        %s531 = scalar_select %p530, %s529, 71
        %s532 = smul.addr %s531, 4
        %s533 = scalar_lea.vmem %s3, %s532
      $region44: #{forward.10} parent=39 // pred_fallthru
        _
    $region40: #{forward.10} parent=5 // pred_fallthru
      _
  $region6: #{forward.10} parent=0 // loop_footer
    %s13 = sadd.s32 1, %s9
  $region7: #{forward.10} parent=0 // loop_footer_branch
    %8 = sbr.rel target = $region3
  $region8: #{forward.10} parent=0 // loop_exit
    _

// kernel: forward.11
$region0: #{forward.11}
  #allocation0 [shape = 'u32[]', space=smem, size = 0x4, offset = 0x4, fixed_abs, tag = 'smem constant byte address 0x4 - core index']
  #allocation1 [shape = 'u32[144,128]{1,0:T(1,128)}', space=vmem, size = 0x12000, scoped, tag = 'internal scratch']
  %s0 = inlined_call_operand.vmem [shape: bf16[128,64], index: 0, kind: input, shape index: {}]
  %s1 = inlined_call_operand.vmem [shape: bf16[64,128], index: 1, kind: input, shape index: {}]
  %s2 = inlined_call_operand.vmem [shape: f32[128,128], index: 2, kind: output, shape index: {0}]
  %s3 = inlined_call_operand.vmem [shape: f32[8,128], index: 3, kind: output, shape index: {1}]
  %4 = xla_tuple %s2, %s3
  %s5 = sld [smem:[#allocation0]]
  $region26: #{forward.11} parent=0
    _
  %s7 = ssub.s32 1, %s5
  %s8 = scalar_select 0, %s7, %s5
  // Predicated region
  $region2: #{forward.11} parent=0 // pred_check
    _
  $region3: #{forward.11} parent=0 // pred_check_branch
    %10 = sbr.rel (0) target = $region5
  $region4: #{forward.11} parent=0 // pred_region
    _
  $region5: #{forward.11} parent=0 // pred_fallthru
    _
  // Predicated region
  $region6: #{forward.11} parent=0 // pred_check
    _
  $region7: #{forward.11} parent=0 // pred_check_branch
    %12 = sbr.rel (0) target = $region9
  $region8: #{forward.11} parent=0 // pred_region
    _
  $region9: #{forward.11} parent=0 // pred_fallthru
    _
  %v14 = vld [vmem:[%s0] sm:$0xf]
  %v15 = vld [vmem:[%s0 + $0x4] sm:$0xf]
  %v16 = vld [vmem:[%s0 + $0x8] sm:$0xf]
  %v17 = vld [vmem:[%s0 + $0xc] sm:$0xf]
  %v18 = vld [vmem:[%s0 + $0x10] sm:$0xf]
  %v19 = vld [vmem:[%s0 + $0x14] sm:$0xf]
  %v20 = vld [vmem:[%s0 + $0x18] sm:$0xf]
  %v21 = vld [vmem:[%s0 + $0x1c] sm:$0xf]
  %v22 = vld [vmem:[%s0 + $0x20] sm:$0xf]
  %v23 = vld [vmem:[%s0 + $0x24] sm:$0xf]
  %v24 = vld [vmem:[%s0 + $0x28] sm:$0xf]
  %v25 = vld [vmem:[%s0 + $0x2c] sm:$0xf]
  %v26 = vld [vmem:[%s0 + $0x30] sm:$0xf]
  %v27 = vld [vmem:[%s0 + $0x34] sm:$0xf]
  %v28 = vld [vmem:[%s0 + $0x38] sm:$0xf]
  %v29 = vld [vmem:[%s0 + $0x3c] sm:$0xf]
  %v30 = vld [vmem:[%s1] sm:$0xf]
  %v31 = vld [vmem:[%s1 + $0x4] sm:$0xf]
  %v32 = vld [vmem:[%s1 + $0x8] sm:$0xf]
  %v33 = vld [vmem:[%s1 + $0xc] sm:$0xf]
  %v34 = vld [vmem:[%s1 + $0x10] sm:$0xf]
  %v35 = vld [vmem:[%s1 + $0x14] sm:$0xf]
  %v36 = vld [vmem:[%s1 + $0x18] sm:$0xf]
  %v37 = vld [vmem:[%s1 + $0x1c] sm:$0xf]
  %v54 = vunpack.c.l.b16 %v14
  %v55 = vunpack.c.l.b16 %v15
  %v56 = vunpack.c.l.b16 %v16
  %v57 = vunpack.c.l.b16 %v17
  %v58 = vunpack.c.l.b16 %v18
  %v59 = vunpack.c.l.b16 %v19
  %v60 = vunpack.c.l.b16 %v20
  %v61 = vunpack.c.l.b16 %v21
  %v62 = vunpack.c.l.b16 %v22
  %v63 = vunpack.c.l.b16 %v23
  %v64 = vunpack.c.l.b16 %v24
  %v65 = vunpack.c.l.b16 %v25
  %v66 = vunpack.c.l.b16 %v26
  %v67 = vunpack.c.l.b16 %v27
  %v68 = vunpack.c.l.b16 %v28
  %v69 = vunpack.c.l.b16 %v29
  %v70 = vpack.c.b16 %v55, %v54
  %v71 = vpack.c.b16 %v57, %v56
  %v72 = vpack.c.b16 %v59, %v58
  %v73 = vpack.c.b16 %v61, %v60
  %v74 = vpack.c.b16 %v63, %v62
  %v75 = vpack.c.b16 %v65, %v64
  %v76 = vpack.c.b16 %v67, %v66
  %v77 = vpack.c.b16 %v69, %v68
  %v86 = vunpack.c.l.b16 %v30
  %v87 = vunpack.c.l.b16 %v31
  %v88 = vunpack.c.l.b16 %v32
  %v89 = vunpack.c.l.b16 %v33
  %v90 = vunpack.c.l.b16 %v34
  %v91 = vunpack.c.l.b16 %v35
  %v92 = vunpack.c.l.b16 %v36
  %v93 = vunpack.c.l.b16 %v37
  %v94 = vpack.c.b16 %v87, %v86
  %v95 = vpack.c.b16 %v89, %v88
  %v96 = vpack.c.b16 %v91, %v90
  %v97 = vpack.c.b16 %v93, %v92
  %vm102 = vcmask 523264
  %v104 = vsel %vm102, %v70, 0
  %v107 = vsel %vm102, %v71, 0
  %v110 = vsel %vm102, %v72, 0
  %v113 = vsel %vm102, %v73, 0
  %v116 = vsel %vm102, %v74, 0
  %v119 = vsel %vm102, %v75, 0
  %v122 = vsel %vm102, %v76, 0
  %v125 = vsel %vm102, %v77, 0
  %127 = vmatprep.subr.bf16.mxu0 0
  %128 = vmatpush1.bf16.msra.mxu0 0
  %129 = vmatprep.subr.bf16.mxu0 0
  %130 = vmatpush1.bf16.msra.mxu0 0
  %131 = vmatprep.subr.bf16.mxu0 0
  %132 = vmatpush1.bf16.msra.mxu0 0
  %133 = vmatprep.subr.bf16.mxu0 0
  %134 = vmatpush1.bf16.msra.mxu0 0
  %135 = vmatprep.subr.bf16.mxu0 0
  %136 = vmatpush1.bf16.msra.mxu0 %v97
  %137 = vmatprep.subr.bf16.mxu0 0
  %138 = vmatpush1.bf16.msra.mxu0 %v96
  %139 = vmatprep.subr.bf16.mxu0 0
  %140 = vmatpush1.bf16.msra.mxu0 %v95
  %141 = vmatprep.subr.bf16.mxu0 0
  %142 = vmatpush1.bf16.msra.mxu0 %v94
  %143 = vmatprep.subr.bf16.mxu0 0
  %144 = vmatpush2.bf16.msra.mxu0 0
  %145 = vmatprep.subr.bf16.mxu0 0
  %146 = vmatpush2.bf16.msra.mxu0 0
  %147 = vmatprep.subr.bf16.mxu0 0
  %148 = vmatpush2.bf16.msra.mxu0 0
  %149 = vmatprep.subr.bf16.mxu0 0
  %150 = vmatpush2.bf16.msra.mxu0 0
  %151 = vmatprep.subr.bf16.mxu0 0
  %152 = vmatpush2.bf16.msra.mxu0 0
  %153 = vmatprep.subr.bf16.mxu0 0
  %154 = vmatpush2.bf16.msra.mxu0 0
  %155 = vmatprep.subr.bf16.mxu0 0
  %156 = vmatpush2.bf16.msra.mxu0 0
  %157 = vmatprep.subr.bf16.mxu0 0
  %158 = vmatpush2.bf16.msra.mxu0 0
  %159 = vmatprep.mubr.bf16.mxu0 0
  %160 = vmatmul.mubr.bf16.gmra.mxu0 %v104
  %v161 = vpop.f32.mrf.mxu0
  %v162 = vadd.f32 0.0, %v161
  %v163 = vpop.f32.mrf.mxu0
  %v164 = vpop.f32.mrf.mxu0
  %v165 = vadd.f32 0.0, %v164
  %v166 = vpop.f32.mrf.mxu0
  %167 = vmatprep.mubr.bf16.mxu0 0
  %168 = vmatmul.mubr.bf16.gmra.mxu0 %v107
  %v169 = vpop.f32.mrf.mxu0
  %v170 = vadd.f32 0.0, %v169
  %v171 = vpop.f32.mrf.mxu0
  %v172 = vpop.f32.mrf.mxu0
  %v173 = vadd.f32 0.0, %v172
  %v174 = vpop.f32.mrf.mxu0
  %175 = vmatprep.mubr.bf16.mxu0 0
  %176 = vmatmul.mubr.bf16.gmra.mxu0 %v110
  %v177 = vpop.f32.mrf.mxu0
  %v178 = vadd.f32 0.0, %v177
  %v179 = vpop.f32.mrf.mxu0
  %v180 = vpop.f32.mrf.mxu0
  %v181 = vadd.f32 0.0, %v180
  %v182 = vpop.f32.mrf.mxu0
  %183 = vmatprep.mubr.bf16.mxu0 0
  %184 = vmatmul.mubr.bf16.gmra.mxu0 %v113
  %v185 = vpop.f32.mrf.mxu0
  %v186 = vadd.f32 0.0, %v185
  %v187 = vpop.f32.mrf.mxu0
  %v188 = vpop.f32.mrf.mxu0
  %v189 = vadd.f32 0.0, %v188
  %v190 = vpop.f32.mrf.mxu0
  %191 = vmatprep.mubr.bf16.mxu0 0
  %192 = vmatmul.mubr.bf16.gmra.mxu0 %v116
  %v193 = vpop.f32.mrf.mxu0
  %v194 = vadd.f32 0.0, %v193
  %v195 = vpop.f32.mrf.mxu0
  %v196 = vpop.f32.mrf.mxu0
  %v197 = vadd.f32 0.0, %v196
  %v198 = vpop.f32.mrf.mxu0
  %199 = vmatprep.mubr.bf16.mxu0 0
  %200 = vmatmul.mubr.bf16.gmra.mxu0 %v119
  %v201 = vpop.f32.mrf.mxu0
  %v202 = vadd.f32 0.0, %v201
  %v203 = vpop.f32.mrf.mxu0
  %v204 = vpop.f32.mrf.mxu0
  %v205 = vadd.f32 0.0, %v204
  %v206 = vpop.f32.mrf.mxu0
  %207 = vmatprep.mubr.bf16.mxu0 0
  %208 = vmatmul.mubr.bf16.gmra.mxu0 %v122
  %v209 = vpop.f32.mrf.mxu0
  %v210 = vadd.f32 0.0, %v209
  %v211 = vpop.f32.mrf.mxu0
  %v212 = vpop.f32.mrf.mxu0
  %v213 = vadd.f32 0.0, %v212
  %v214 = vpop.f32.mrf.mxu0
  %215 = vmatprep.mubr.bf16.mxu0 0
  %216 = vmatmul.mubr.bf16.gmra.mxu0 %v125
  %v217 = vpop.f32.mrf.mxu0
  %v218 = vadd.f32 0.0, %v217
  %v219 = vpop.f32.mrf.mxu0
  %v220 = vpop.f32.mrf.mxu0
  %v221 = vadd.f32 0.0, %v220
  %v222 = vpop.f32.mrf.mxu0
  %223 = vdwg.mxu0
  %224 = vst [vmem:[%s2] sm:$0xff] %v162
  %225 = vst [vmem:[%s2 + $0x8] sm:$0xff] %v165
  %226 = vst [vmem:[%s2 + $0x10] sm:$0xff] %v170
  %227 = vst [vmem:[%s2 + $0x18] sm:$0xff] %v173
  %228 = vst [vmem:[%s2 + $0x20] sm:$0xff] %v178
  %229 = vst [vmem:[%s2 + $0x28] sm:$0xff] %v181
  %230 = vst [vmem:[%s2 + $0x30] sm:$0xff] %v186
  %231 = vst [vmem:[%s2 + $0x38] sm:$0xff] %v189
  %232 = vst [vmem:[%s2 + $0x40] sm:$0xff] %v194
  %233 = vst [vmem:[%s2 + $0x48] sm:$0xff] %v197
  %234 = vst [vmem:[%s2 + $0x50] sm:$0xff] %v202
  %235 = vst [vmem:[%s2 + $0x58] sm:$0xff] %v205
  %236 = vst [vmem:[%s2 + $0x60] sm:$0xff] %v210
  %237 = vst [vmem:[%s2 + $0x68] sm:$0xff] %v213
  %238 = vst [vmem:[%s2 + $0x70] sm:$0xff] %v218
  %239 = vst [vmem:[%s2 + $0x78] sm:$0xff] %v221
  %v240 = vadd.f32 %v162, %v165
  %v241 = vadd.f32 %v240, %v170
  %v242 = vadd.f32 %v241, %v173
  %v243 = vadd.f32 %v242, %v178
  %v244 = vadd.f32 %v243, %v181
  %v245 = vadd.f32 %v244, %v186
  %v246 = vadd.f32 %v245, %v189
  %v247 = vadd.f32 %v246, %v194
  %v248 = vadd.f32 %v247, %v197
  %v249 = vadd.f32 %v248, %v202
  %v250 = vadd.f32 %v249, %v205
  %v251 = vadd.f32 %v250, %v210
  %v252 = vadd.f32 %v251, %v213
  %v253 = vadd.f32 %v252, %v218
  %v254 = vadd.f32 %v253, %v221
  %v255 = vrot.slane %v254, 4
  %v256 = vadd.f32 %v254, %v255
  %v257 = vrot.slane %v256, 2
  %v258 = vadd.f32 %v256, %v257
  %v259 = vrot.slane %v258, 1
  %v260 = vadd.f32 %v258, %v259
  %v261 = vmul.f32 %v162, %v162
  %v262 = vmul.f32 %v165, %v165
  %v263 = vmul.f32 %v170, %v170
  %v264 = vmul.f32 %v173, %v173
  %v265 = vmul.f32 %v178, %v178
  %v266 = vmul.f32 %v181, %v181
  %v267 = vmul.f32 %v186, %v186
  %v268 = vmul.f32 %v189, %v189
  %v269 = vmul.f32 %v194, %v194
  %v270 = vmul.f32 %v197, %v197
  %v271 = vmul.f32 %v202, %v202
  %v272 = vmul.f32 %v205, %v205
  %v273 = vmul.f32 %v210, %v210
  %v274 = vmul.f32 %v213, %v213
  %v275 = vmul.f32 %v218, %v218
  %v276 = vmul.f32 %v221, %v221
  %v277 = vadd.f32 %v261, %v262
  %v278 = vadd.f32 %v277, %v263
  %v279 = vadd.f32 %v278, %v264
  %v280 = vadd.f32 %v279, %v265
  %v281 = vadd.f32 %v280, %v266
  %v282 = vadd.f32 %v281, %v267
  %v283 = vadd.f32 %v282, %v268
  %v284 = vadd.f32 %v283, %v269
  %v285 = vadd.f32 %v284, %v270
  %v286 = vadd.f32 %v285, %v271
  %v287 = vadd.f32 %v286, %v272
  %v288 = vadd.f32 %v287, %v273
  %v289 = vadd.f32 %v288, %v274
  %v290 = vadd.f32 %v289, %v275
  %v291 = vadd.f32 %v290, %v276
  %v292 = vrot.slane %v291, 4
  %v293 = vadd.f32 %v291, %v292
  %v294 = vrot.slane %v293, 2
  %v295 = vadd.f32 %v293, %v294
  %v296 = vrot.slane %v295, 1
  %v297 = vadd.f32 %v295, %v296
  %vm298 = vcmask 1040384
  %v299 = vsel %vm298, %v260, %v297
  %vm300 = vcmask 1041408
  %v301 = vsel %vm300, %v299, 0.0
  %302 = vst [vmem:[%s3] sm:$0xff] %v301
  // Predicated region
  $region10: #{forward.11} parent=0 // pred_check
    _
  $region11: #{forward.11} parent=0 // pred_check_branch
    %304 = sbr.rel (0) target = $region13
  $region12: #{forward.11} parent=0 // pred_region
    _
  $region13: #{forward.11} parent=0 // pred_fallthru
    _
  // Predicated region
  $region14: #{forward.11} parent=0 // pred_check
    _
  $region15: #{forward.11} parent=0 // pred_check_branch
    %306 = sbr.rel (0) target = $region17
  $region16: #{forward.11} parent=0 // pred_region
    _
  $region17: #{forward.11} parent=0 // pred_fallthru
    _
  // Predicated region
  $region18: #{forward.11} parent=0 // pred_check
    _
  $region19: #{forward.11} parent=0 // pred_check_branch
    %308 = sbr.rel (0) target = $region21
  $region20: #{forward.11} parent=0 // pred_region
    _
  $region21: #{forward.11} parent=0 // pred_fallthru
    _
  // Predicated region
  $region22: #{forward.11} parent=0 // pred_check
    _
  $region23: #{forward.11} parent=0 // pred_check_branch
    %310 = sbr.rel (0) target = $region25
  $region24: #{forward.11} parent=0 // pred_region
    _
  $region25: #{forward.11} parent=0 // pred_fallthru
    _

// kernel: forward.12
$region0: #{forward.12}
  #allocation0 [shape = 'u32[]', space=smem, size = 0x4, offset = 0x4, fixed_abs, tag = 'smem constant byte address 0x4 - core index']
  #allocation1 [shape = 'u32[144,128]{1,0:T(1,128)}', space=vmem, size = 0x12000, scoped, tag = 'internal scratch']
  %s0 = inlined_call_operand.vmem [shape: f32[128,128], index: 0, kind: input, shape index: {}]
  %s1 = inlined_call_operand.vmem [shape: f32[1,128], index: 1, kind: input, shape index: {}]
  %s2 = inlined_call_operand.vmem [shape: f32[1,128], index: 2, kind: input, shape index: {}]
  %s3 = inlined_call_operand.vmem [shape: bf16[128,128], index: 3, kind: output, shape index: {}]
  %s4 = sld [smem:[#allocation0]]
  $region22: #{forward.12} parent=0
    _
  %s6 = ssub.s32 1, %s4
  %s7 = scalar_select 0, %s6, %s4
  // Predicated region
  $region2: #{forward.12} parent=0 // pred_check
    _
  $region3: #{forward.12} parent=0 // pred_check_branch
    %9 = sbr.rel (0) target = $region5
  $region4: #{forward.12} parent=0 // pred_region
    _
  $region5: #{forward.12} parent=0 // pred_fallthru
    _
  // Predicated region
  $region6: #{forward.12} parent=0 // pred_check
    _
  $region7: #{forward.12} parent=0 // pred_check_branch
    %11 = sbr.rel (0) target = $region9
  $region8: #{forward.12} parent=0 // pred_region
    _
  $region9: #{forward.12} parent=0 // pred_fallthru
    _
  // Predicated region
  $region10: #{forward.12} parent=0 // pred_check
    _
  $region11: #{forward.12} parent=0 // pred_check_branch
    %13 = sbr.rel (0) target = $region13
  $region12: #{forward.12} parent=0 // pred_region
    _
  $region13: #{forward.12} parent=0 // pred_fallthru
    _
  %v14 = vld [vmem:[%s0] sm:$0xff]
  %v15 = vld [vmem:[%s0 + $0x8] sm:$0xff]
  %v16 = vld [vmem:[%s0 + $0x10] sm:$0xff]
  %v17 = vld [vmem:[%s0 + $0x18] sm:$0xff]
  %v18 = vld [vmem:[%s0 + $0x20] sm:$0xff]
  %v19 = vld [vmem:[%s0 + $0x28] sm:$0xff]
  %v20 = vld [vmem:[%s0 + $0x30] sm:$0xff]
  %v21 = vld [vmem:[%s0 + $0x38] sm:$0xff]
  %v22 = vld [vmem:[%s0 + $0x40] sm:$0xff]
  %v23 = vld [vmem:[%s0 + $0x48] sm:$0xff]
  %v24 = vld [vmem:[%s0 + $0x50] sm:$0xff]
  %v25 = vld [vmem:[%s0 + $0x58] sm:$0xff]
  %v26 = vld [vmem:[%s0 + $0x60] sm:$0xff]
  %v27 = vld [vmem:[%s0 + $0x68] sm:$0xff]
  %v28 = vld [vmem:[%s0 + $0x70] sm:$0xff]
  %v29 = vld [vmem:[%s0 + $0x78] sm:$0xff]
  %v30 = vld [vmem:[%s1] sm:$0x1]
  %v32 = vlaneseq
  %v33 = vshrl.u32 %v32, 7
  %v34 = vsub.s32 0, %v33
  %v35 = vrot.slane %v30, %v34
  %v37 = vmul.f32 %v14, %v35
  %v38 = vmul.f32 %v15, %v35
  %v39 = vmul.f32 %v16, %v35
  %v40 = vmul.f32 %v17, %v35
  %v41 = vmul.f32 %v18, %v35
  %v42 = vmul.f32 %v19, %v35
  %v43 = vmul.f32 %v20, %v35
  %v44 = vmul.f32 %v21, %v35
  %v45 = vmul.f32 %v22, %v35
  %v46 = vmul.f32 %v23, %v35
  %v47 = vmul.f32 %v24, %v35
  %v48 = vmul.f32 %v25, %v35
  %v49 = vmul.f32 %v26, %v35
  %v50 = vmul.f32 %v27, %v35
  %v51 = vmul.f32 %v28, %v35
  %v52 = vmul.f32 %v29, %v35
  %v53 = vld [vmem:[%s2] sm:$0x1]
  %v55 = vlaneseq
  %v56 = vshrl.u32 %v55, 7
  %v57 = vsub.s32 0, %v56
  %v58 = vrot.slane %v53, %v57
  %v60 = vadd.f32 %v37, %v58
  %v61 = vadd.f32 %v38, %v58
  %v62 = vadd.f32 %v39, %v58
  %v63 = vadd.f32 %v40, %v58
  %v64 = vadd.f32 %v41, %v58
  %v65 = vadd.f32 %v42, %v58
  %v66 = vadd.f32 %v43, %v58
  %v67 = vadd.f32 %v44, %v58
  %v68 = vadd.f32 %v45, %v58
  %v69 = vadd.f32 %v46, %v58
  %v70 = vadd.f32 %v47, %v58
  %v71 = vadd.f32 %v48, %v58
  %v72 = vadd.f32 %v49, %v58
  %v73 = vadd.f32 %v50, %v58
  %v74 = vadd.f32 %v51, %v58
  %v75 = vadd.f32 %v52, %v58
  %v76 = vmax.f32 %v60, 0.0
  %v77 = vmax.f32 %v61, 0.0
  %v78 = vmax.f32 %v62, 0.0
  %v79 = vmax.f32 %v63, 0.0
  %v80 = vmax.f32 %v64, 0.0
  %v81 = vmax.f32 %v65, 0.0
  %v82 = vmax.f32 %v66, 0.0
  %v83 = vmax.f32 %v67, 0.0
  %v84 = vmax.f32 %v68, 0.0
  %v85 = vmax.f32 %v69, 0.0
  %v86 = vmax.f32 %v70, 0.0
  %v87 = vmax.f32 %v71, 0.0
  %v88 = vmax.f32 %v72, 0.0
  %v89 = vmax.f32 %v73, 0.0
  %v90 = vmax.f32 %v74, 0.0
  %v91 = vmax.f32 %v75, 0.0
  %v92 = vpack.c.bf16 %v77, %v76
  %v93 = vpack.c.bf16 %v79, %v78
  %v94 = vpack.c.bf16 %v81, %v80
  %v95 = vpack.c.bf16 %v83, %v82
  %v96 = vpack.c.bf16 %v85, %v84
  %v97 = vpack.c.bf16 %v87, %v86
  %v98 = vpack.c.bf16 %v89, %v88
  %v99 = vpack.c.bf16 %v91, %v90
  %v108 = vunpack.c.l.b16 %v92
  %v109 = vunpack.c.h.b16 %v92
  %v110 = vunpack.c.l.b16 %v93
  %v111 = vunpack.c.h.b16 %v93
  %v112 = vunpack.c.l.b16 %v94
  %v113 = vunpack.c.h.b16 %v94
  %v114 = vunpack.c.l.b16 %v95
  %v115 = vunpack.c.h.b16 %v95
  %v116 = vunpack.c.l.b16 %v96
  %v117 = vunpack.c.h.b16 %v96
  %v118 = vunpack.c.l.b16 %v97
  %v119 = vunpack.c.h.b16 %v97
  %v120 = vunpack.c.l.b16 %v98
  %v121 = vunpack.c.h.b16 %v98
  %v122 = vunpack.c.l.b16 %v99
  %v123 = vunpack.c.h.b16 %v99
  %v124 = vpack.c.b16 %v108, %v108
  %v125 = vpack.c.b16 %v109, %v109
  %v126 = vpack.c.b16 %v110, %v110
  %v127 = vpack.c.b16 %v111, %v111
  %v128 = vpack.c.b16 %v112, %v112
  %v129 = vpack.c.b16 %v113, %v113
  %v130 = vpack.c.b16 %v114, %v114
  %v131 = vpack.c.b16 %v115, %v115
  %v132 = vpack.c.b16 %v116, %v116
  %v133 = vpack.c.b16 %v117, %v117
  %v134 = vpack.c.b16 %v118, %v118
  %v135 = vpack.c.b16 %v119, %v119
  %v136 = vpack.c.b16 %v120, %v120
  %v137 = vpack.c.b16 %v121, %v121
  %v138 = vpack.c.b16 %v122, %v122
  %v139 = vpack.c.b16 %v123, %v123
  %156 = vst [vmem:[%s3] sm:$0xf] %v124
  %157 = vst [vmem:[%s3 + $0x4] sm:$0xf] %v125
  %158 = vst [vmem:[%s3 + $0x8] sm:$0xf] %v126
  %159 = vst [vmem:[%s3 + $0xc] sm:$0xf] %v127
  %160 = vst [vmem:[%s3 + $0x10] sm:$0xf] %v128
  %161 = vst [vmem:[%s3 + $0x14] sm:$0xf] %v129
  %162 = vst [vmem:[%s3 + $0x18] sm:$0xf] %v130
  %163 = vst [vmem:[%s3 + $0x1c] sm:$0xf] %v131
  %164 = vst [vmem:[%s3 + $0x20] sm:$0xf] %v132
  %165 = vst [vmem:[%s3 + $0x24] sm:$0xf] %v133
  %166 = vst [vmem:[%s3 + $0x28] sm:$0xf] %v134
  %167 = vst [vmem:[%s3 + $0x2c] sm:$0xf] %v135
  %168 = vst [vmem:[%s3 + $0x30] sm:$0xf] %v136
  %169 = vst [vmem:[%s3 + $0x34] sm:$0xf] %v137
  %170 = vst [vmem:[%s3 + $0x38] sm:$0xf] %v138
  %171 = vst [vmem:[%s3 + $0x3c] sm:$0xf] %v139
  // Predicated region
  $region14: #{forward.12} parent=0 // pred_check
    _
  $region15: #{forward.12} parent=0 // pred_check_branch
    %173 = sbr.rel (0) target = $region17
  $region16: #{forward.12} parent=0 // pred_region
    _
  $region17: #{forward.12} parent=0 // pred_fallthru
    _
  // Predicated region
  $region18: #{forward.12} parent=0 // pred_check
    _
  $region19: #{forward.12} parent=0 // pred_check_branch
    %175 = sbr.rel (0) target = $region21
  $region20: #{forward.12} parent=0 // pred_region
    _
  $region21: #{forward.12} parent=0 // pred_fallthru
    _

// kernel: forward.13
$region0: #{forward.13}
  #allocation0 [shape = 'u32[]', space=smem, size = 0x4, offset = 0x4, fixed_abs, tag = 'smem constant byte address 0x4 - core index']
  #allocation1 [shape = 'u32[144,128]{1,0:T(1,128)}', space=vmem, size = 0x12000, scoped, tag = 'internal scratch']
  %s0 = inlined_call_operand.vmem [shape: bf16[4,128], index: 0, kind: input, shape index: {}]
  %s1 = inlined_call_operand.vmem [shape: bf16[128,128], index: 1, kind: input, shape index: {}]
  %s2 = inlined_call_operand.vmem [shape: f32[1,128], index: 2, kind: input, shape index: {}]
  %s3 = inlined_call_operand.vmem [shape: f32[1,128], index: 3, kind: input, shape index: {}]
  %s4 = inlined_call_operand.vmem [shape: bf16[128,128], index: 4, kind: input, shape index: {}]
  %s5 = inlined_call_operand.vmem [shape: f32[1,128], index: 5, kind: input, shape index: {}]
  %s6 = inlined_call_operand.vmem [shape: f32[1,128], index: 6, kind: input, shape index: {}]
  %s7 = inlined_call_operand.vmem [shape: bf16[128,128], index: 7, kind: input, shape index: {}]
  %s8 = inlined_call_operand.hbm [shape: f32[4,128], index: 8, kind: output, shape index: {}]
  %s9 = sld [smem:[#allocation0]]
  $region42: #{forward.13} parent=0
    _
  %s11 = ssub.s32 1, %s9
  %s12 = scalar_select 0, %s11, %s9
  $region1: #{forward.13} parent=0
    #allocation2 [shape = 'u8[2048]{0}', space=vmem, size = 0x800, scoped, tag = 'output window, operand 0, single buffered']
    #allocation3 [shape = 's32[1]{0}', space=sflag, size = 0x4, scoped, tag = 'scoped memory for forward.13']
    %13 = vsyncpa [#allocation3], 0
    // Predicated region
    $region2: #{forward.13} parent=1 // pred_check
      _
    $region3: #{forward.13} parent=1 // pred_check_branch
      %15 = sbr.rel (0) target = $region5
    $region4: #{forward.13} parent=1 // pred_region
      _
    $region5: #{forward.13} parent=1 // pred_fallthru
      _
    // Predicated region
    $region6: #{forward.13} parent=1 // pred_check
      _
    $region7: #{forward.13} parent=1 // pred_check_branch
      %17 = sbr.rel (0) target = $region9
    $region8: #{forward.13} parent=1 // pred_region
      _
    $region9: #{forward.13} parent=1 // pred_fallthru
      _
    // Predicated region
    $region10: #{forward.13} parent=1 // pred_check
      _
    $region11: #{forward.13} parent=1 // pred_check_branch
      %19 = sbr.rel (0) target = $region13
    $region12: #{forward.13} parent=1 // pred_region
      _
    $region13: #{forward.13} parent=1 // pred_fallthru
      _
    // Predicated region
    $region14: #{forward.13} parent=1 // pred_check
      _
    $region15: #{forward.13} parent=1 // pred_check_branch
      %21 = sbr.rel (0) target = $region17
    $region16: #{forward.13} parent=1 // pred_region
      _
    $region17: #{forward.13} parent=1 // pred_fallthru
      _
    // Predicated region
    $region18: #{forward.13} parent=1 // pred_check
      _
    $region19: #{forward.13} parent=1 // pred_check_branch
      %23 = sbr.rel (0) target = $region21
    $region20: #{forward.13} parent=1 // pred_region
      _
    $region21: #{forward.13} parent=1 // pred_fallthru
      _
    // Predicated region
    $region22: #{forward.13} parent=1 // pred_check
      _
    $region23: #{forward.13} parent=1 // pred_check_branch
      %25 = sbr.rel (0) target = $region25
    $region24: #{forward.13} parent=1 // pred_region
      _
    $region25: #{forward.13} parent=1 // pred_fallthru
      _
    // Predicated region
    $region26: #{forward.13} parent=1 // pred_check
      _
    $region27: #{forward.13} parent=1 // pred_check_branch
      %27 = sbr.rel (0) target = $region29
    $region28: #{forward.13} parent=1 // pred_region
      _
    $region29: #{forward.13} parent=1 // pred_fallthru
      _
    // Predicated region
    $region30: #{forward.13} parent=1 // pred_check
      _
    $region31: #{forward.13} parent=1 // pred_check_branch
      %29 = sbr.rel (0) target = $region33
    $region32: #{forward.13} parent=1 // pred_region
      _
    $region33: #{forward.13} parent=1 // pred_fallthru
      _
    %v31 = vld [vmem:[%s0] sm:$0x3]
    %v32 = vld [vmem:[%s1] sm:$0xf]
    %v33 = vld [vmem:[%s1 + $0x4] sm:$0xf]
    %v34 = vld [vmem:[%s1 + $0x8] sm:$0xf]
    %v35 = vld [vmem:[%s1 + $0xc] sm:$0xf]
    %v36 = vld [vmem:[%s1 + $0x10] sm:$0xf]
    %v37 = vld [vmem:[%s1 + $0x14] sm:$0xf]
    %v38 = vld [vmem:[%s1 + $0x18] sm:$0xf]
    %v39 = vld [vmem:[%s1 + $0x1c] sm:$0xf]
    %v40 = vld [vmem:[%s1 + $0x20] sm:$0xf]
    %v41 = vld [vmem:[%s1 + $0x24] sm:$0xf]
    %v42 = vld [vmem:[%s1 + $0x28] sm:$0xf]
    %v43 = vld [vmem:[%s1 + $0x2c] sm:$0xf]
    %v44 = vld [vmem:[%s1 + $0x30] sm:$0xf]
    %v45 = vld [vmem:[%s1 + $0x34] sm:$0xf]
    %v46 = vld [vmem:[%s1 + $0x38] sm:$0xf]
    %v47 = vld [vmem:[%s1 + $0x3c] sm:$0xf]
    %v64 = vunpack.c.l.b16 %v32
    %v65 = vunpack.c.l.b16 %v33
    %v66 = vunpack.c.l.b16 %v34
    %v67 = vunpack.c.l.b16 %v35
    %v68 = vunpack.c.l.b16 %v36
    %v69 = vunpack.c.l.b16 %v37
    %v70 = vunpack.c.l.b16 %v38
    %v71 = vunpack.c.l.b16 %v39
    %v72 = vunpack.c.l.b16 %v40
    %v73 = vunpack.c.l.b16 %v41
    %v74 = vunpack.c.l.b16 %v42
    %v75 = vunpack.c.l.b16 %v43
    %v76 = vunpack.c.l.b16 %v44
    %v77 = vunpack.c.l.b16 %v45
    %v78 = vunpack.c.l.b16 %v46
    %v79 = vunpack.c.l.b16 %v47
    %v80 = vpack.c.b16 %v65, %v64
    %v81 = vpack.c.b16 %v67, %v66
    %v82 = vpack.c.b16 %v69, %v68
    %v83 = vpack.c.b16 %v71, %v70
    %v84 = vpack.c.b16 %v73, %v72
    %v85 = vpack.c.b16 %v75, %v74
    %v86 = vpack.c.b16 %v77, %v76
    %v87 = vpack.c.b16 %v79, %v78
    %96 = vmatprep.subr.bf16.mxu0 0
    %97 = vmatpush1.bf16.msra.mxu0 %v87
    %98 = vmatprep.subr.bf16.mxu0 0
    %99 = vmatpush1.bf16.msra.mxu0 %v86
    %100 = vmatprep.subr.bf16.mxu0 0
    %101 = vmatpush1.bf16.msra.mxu0 %v85
    %102 = vmatprep.subr.bf16.mxu0 0
    %103 = vmatpush1.bf16.msra.mxu0 %v84
    %104 = vmatprep.subr.bf16.mxu0 0
    %105 = vmatpush1.bf16.msra.mxu0 %v83
    %106 = vmatprep.subr.bf16.mxu0 0
    %107 = vmatpush1.bf16.msra.mxu0 %v82
    %108 = vmatprep.subr.bf16.mxu0 0
    %109 = vmatpush1.bf16.msra.mxu0 %v81
    %110 = vmatprep.subr.bf16.mxu0 0
    %111 = vmatpush1.bf16.msra.mxu0 %v80
    %112 = vmatprep.subr.bf16.mxu0 0
    %113 = vmatpush2.bf16.msra.mxu0 0
    %114 = vmatprep.subr.bf16.mxu0 0
    %115 = vmatpush2.bf16.msra.mxu0 0
    %116 = vmatprep.subr.bf16.mxu0 0
    %117 = vmatpush2.bf16.msra.mxu0 0
    %118 = vmatprep.subr.bf16.mxu0 0
    %119 = vmatpush2.bf16.msra.mxu0 0
    %120 = vmatprep.subr.bf16.mxu0 0
    %121 = vmatpush2.bf16.msra.mxu0 0
    %122 = vmatprep.subr.bf16.mxu0 0
    %123 = vmatpush2.bf16.msra.mxu0 0
    %124 = vmatprep.subr.bf16.mxu0 0
    %125 = vmatpush2.bf16.msra.mxu0 0
    %126 = vmatprep.subr.bf16.mxu0 0
    %127 = vmatpush2.bf16.msra.mxu0 0
    %128 = vmatprep.mubr.bf16.mxu0 0
    %129 = vmatmul.mubr.bf16.gmra.mxu0 %v31
    %v130 = vpop.f32.mrf.mxu0
    %v131 = vadd.f32 0.0, %v130
    %v132 = vpop.f32.mrf.mxu0
    %v133 = vpop.f32.mrf.mxu0
    %v134 = vpop.f32.mrf.mxu0
    %135 = vdwg.mxu0
    %v136 = vld [vmem:[%s2] sm:$0x1]
    %v137 = vld [vmem:[%s3] sm:$0x1]
    %vm138 = vcmask 1043456
    %v139 = vsel %vm138, %v131, 0.0
    %v140 = vrot.slane %v139, 4
    %v141 = vadd.f32 %v139, %v140
    %v142 = vrot.slane %v141, 2
    %v143 = vadd.f32 %v141, %v142
    %v144 = vrot.slane %v143, 1
    %v145 = vadd.f32 %v143, %v144
    %v146 = vrcp.pop 4.0
    %v147 = vmul.f32 %v145, %v146
    %v148 = vmul.f32 %v131, %v131
    %v149 = vsel %vm138, %v148, 0.0
    %v150 = vrot.slane %v149, 4
    %v151 = vadd.f32 %v149, %v150
    %v152 = vrot.slane %v151, 2
    %v153 = vadd.f32 %v151, %v152
    %v154 = vrot.slane %v153, 1
    %v155 = vadd.f32 %v153, %v154
    %v156 = vmul.f32 %v155, %v146
    %v157 = vmul.f32 %v147, %v147
    %v158 = vsub.f32 %v156, %v157
    %v159 = vmax.f32 %v158, 0.0
    %v160 = vsub.f32 %v131, %v147
    %v161 = vadd.f32 %v159, 1e-05
    %v162 = vrsqrt.pop %v161
    %v163 = vmul.f32 %v160, %v162
    %v165 = vlaneseq
    %v166 = vshrl.u32 %v165, 7
    %v167 = vsub.s32 0, %v166
    %v168 = vrot.slane %v136, %v167
    %v170 = vmul.f32 %v163, %v168
    %v172 = vlaneseq
    %v173 = vshrl.u32 %v172, 7
    %v174 = vsub.s32 0, %v173
    %v175 = vrot.slane %v137, %v174
    %v177 = vadd.f32 %v170, %v175
    %v178 = vmax.f32 %v177, 0.0
    %v179 = vpack.c.bf16 %v178, %v178
    %v180 = vld [vmem:[%s4] sm:$0xf]
    %v181 = vld [vmem:[%s4 + $0x4] sm:$0xf]
    %v182 = vld [vmem:[%s4 + $0x8] sm:$0xf]
    %v183 = vld [vmem:[%s4 + $0xc] sm:$0xf]
    %v184 = vld [vmem:[%s4 + $0x10] sm:$0xf]
    %v185 = vld [vmem:[%s4 + $0x14] sm:$0xf]
    %v186 = vld [vmem:[%s4 + $0x18] sm:$0xf]
    %v187 = vld [vmem:[%s4 + $0x1c] sm:$0xf]
    %v188 = vld [vmem:[%s4 + $0x20] sm:$0xf]
    %v189 = vld [vmem:[%s4 + $0x24] sm:$0xf]
    %v190 = vld [vmem:[%s4 + $0x28] sm:$0xf]
    %v191 = vld [vmem:[%s4 + $0x2c] sm:$0xf]
    %v192 = vld [vmem:[%s4 + $0x30] sm:$0xf]
    %v193 = vld [vmem:[%s4 + $0x34] sm:$0xf]
    %v194 = vld [vmem:[%s4 + $0x38] sm:$0xf]
    %v195 = vld [vmem:[%s4 + $0x3c] sm:$0xf]
    %v212 = vunpack.c.l.b16 %v180
    %v213 = vunpack.c.l.b16 %v181
    %v214 = vunpack.c.l.b16 %v182
    %v215 = vunpack.c.l.b16 %v183
    %v216 = vunpack.c.l.b16 %v184
    %v217 = vunpack.c.l.b16 %v185
    %v218 = vunpack.c.l.b16 %v186
    %v219 = vunpack.c.l.b16 %v187
    %v220 = vunpack.c.l.b16 %v188
    %v221 = vunpack.c.l.b16 %v189
    %v222 = vunpack.c.l.b16 %v190
    %v223 = vunpack.c.l.b16 %v191
    %v224 = vunpack.c.l.b16 %v192
    %v225 = vunpack.c.l.b16 %v193
    %v226 = vunpack.c.l.b16 %v194
    %v227 = vunpack.c.l.b16 %v195
    %v228 = vpack.c.b16 %v213, %v212
    %v229 = vpack.c.b16 %v215, %v214
    %v230 = vpack.c.b16 %v217, %v216
    %v231 = vpack.c.b16 %v219, %v218
    %v232 = vpack.c.b16 %v221, %v220
    %v233 = vpack.c.b16 %v223, %v222
    %v234 = vpack.c.b16 %v225, %v224
    %v235 = vpack.c.b16 %v227, %v226
    %244 = vmatprep.subr.bf16.mxu0 0
    %245 = vmatpush1.bf16.msra.mxu0 %v235
    %246 = vmatprep.subr.bf16.mxu0 0
    %247 = vmatpush1.bf16.msra.mxu0 %v234
    %248 = vmatprep.subr.bf16.mxu0 0
    %249 = vmatpush1.bf16.msra.mxu0 %v233
    %250 = vmatprep.subr.bf16.mxu0 0
    %251 = vmatpush1.bf16.msra.mxu0 %v232
    %252 = vmatprep.subr.bf16.mxu0 0
    %253 = vmatpush1.bf16.msra.mxu0 %v231
    %254 = vmatprep.subr.bf16.mxu0 0
    %255 = vmatpush1.bf16.msra.mxu0 %v230
    %256 = vmatprep.subr.bf16.mxu0 0
    %257 = vmatpush1.bf16.msra.mxu0 %v229
    %258 = vmatprep.subr.bf16.mxu0 0
    %259 = vmatpush1.bf16.msra.mxu0 %v228
    %260 = vmatprep.subr.bf16.mxu0 0
    %261 = vmatpush2.bf16.msra.mxu0 0
    %262 = vmatprep.subr.bf16.mxu0 0
    %263 = vmatpush2.bf16.msra.mxu0 0
    %264 = vmatprep.subr.bf16.mxu0 0
    %265 = vmatpush2.bf16.msra.mxu0 0
    %266 = vmatprep.subr.bf16.mxu0 0
    %267 = vmatpush2.bf16.msra.mxu0 0
    %268 = vmatprep.subr.bf16.mxu0 0
    %269 = vmatpush2.bf16.msra.mxu0 0
    %270 = vmatprep.subr.bf16.mxu0 0
    %271 = vmatpush2.bf16.msra.mxu0 0
    %272 = vmatprep.subr.bf16.mxu0 0
    %273 = vmatpush2.bf16.msra.mxu0 0
    %274 = vmatprep.subr.bf16.mxu0 0
    %275 = vmatpush2.bf16.msra.mxu0 0
    %276 = vmatprep.mubr.bf16.mxu0 0
    %277 = vmatmul.mubr.bf16.gmra.mxu0 %v179
    %v278 = vpop.f32.mrf.mxu0
    %v279 = vadd.f32 0.0, %v278
    %v280 = vpop.f32.mrf.mxu0
    %v281 = vpop.f32.mrf.mxu0
    %v282 = vpop.f32.mrf.mxu0
    %283 = vdwg.mxu0
    %v284 = vld [vmem:[%s5] sm:$0x1]
    %v285 = vld [vmem:[%s6] sm:$0x1]
    %v286 = vsel %vm138, %v279, 0.0
    %v287 = vrot.slane %v286, 4
    %v288 = vadd.f32 %v286, %v287
    %v289 = vrot.slane %v288, 2
    %v290 = vadd.f32 %v288, %v289
    %v291 = vrot.slane %v290, 1
    %v292 = vadd.f32 %v290, %v291
    %v293 = vmul.f32 %v292, %v146
    %v294 = vmul.f32 %v279, %v279
    %v295 = vsel %vm138, %v294, 0.0
    %v296 = vrot.slane %v295, 4
    %v297 = vadd.f32 %v295, %v296
    %v298 = vrot.slane %v297, 2
    %v299 = vadd.f32 %v297, %v298
    %v300 = vrot.slane %v299, 1
    %v301 = vadd.f32 %v299, %v300
    %v302 = vmul.f32 %v301, %v146
    %v303 = vmul.f32 %v293, %v293
    %v304 = vsub.f32 %v302, %v303
    %v305 = vmax.f32 %v304, 0.0
    %v306 = vsub.f32 %v279, %v293
    %v307 = vadd.f32 %v305, 1e-05
    %v308 = vrsqrt.pop %v307
    %v309 = vmul.f32 %v306, %v308
    %v311 = vlaneseq
    %v312 = vshrl.u32 %v311, 7
    %v313 = vsub.s32 0, %v312
    %v314 = vrot.slane %v284, %v313
    %v316 = vmul.f32 %v309, %v314
    %v318 = vlaneseq
    %v319 = vshrl.u32 %v318, 7
    %v320 = vsub.s32 0, %v319
    %v321 = vrot.slane %v285, %v320
    %v323 = vadd.f32 %v316, %v321
    %v324 = vmax.f32 %v323, 0.0
    %v325 = vpack.c.bf16 %v324, %v324
    %v326 = vld [vmem:[%s7] sm:$0xf]
    %v327 = vld [vmem:[%s7 + $0x4] sm:$0xf]
    %v328 = vld [vmem:[%s7 + $0x8] sm:$0xf]
    %v329 = vld [vmem:[%s7 + $0xc] sm:$0xf]
    %v330 = vld [vmem:[%s7 + $0x10] sm:$0xf]
    %v331 = vld [vmem:[%s7 + $0x14] sm:$0xf]
    %v332 = vld [vmem:[%s7 + $0x18] sm:$0xf]
    %v333 = vld [vmem:[%s7 + $0x1c] sm:$0xf]
    %v334 = vld [vmem:[%s7 + $0x20] sm:$0xf]
    %v335 = vld [vmem:[%s7 + $0x24] sm:$0xf]
    %v336 = vld [vmem:[%s7 + $0x28] sm:$0xf]
    %v337 = vld [vmem:[%s7 + $0x2c] sm:$0xf]
    %v338 = vld [vmem:[%s7 + $0x30] sm:$0xf]
    %v339 = vld [vmem:[%s7 + $0x34] sm:$0xf]
    %v340 = vld [vmem:[%s7 + $0x38] sm:$0xf]
    %v341 = vld [vmem:[%s7 + $0x3c] sm:$0xf]
    %v358 = vunpack.c.l.b16 %v326
    %v359 = vunpack.c.l.b16 %v327
    %v360 = vunpack.c.l.b16 %v328
    %v361 = vunpack.c.l.b16 %v329
    %v362 = vunpack.c.l.b16 %v330
    %v363 = vunpack.c.l.b16 %v331
    %v364 = vunpack.c.l.b16 %v332
    %v365 = vunpack.c.l.b16 %v333
    %v366 = vunpack.c.l.b16 %v334
    %v367 = vunpack.c.l.b16 %v335
    %v368 = vunpack.c.l.b16 %v336
    %v369 = vunpack.c.l.b16 %v337
    %v370 = vunpack.c.l.b16 %v338
    %v371 = vunpack.c.l.b16 %v339
    %v372 = vunpack.c.l.b16 %v340
    %v373 = vunpack.c.l.b16 %v341
    %v374 = vpack.c.b16 %v359, %v358
    %v375 = vpack.c.b16 %v361, %v360
    %v376 = vpack.c.b16 %v363, %v362
    %v377 = vpack.c.b16 %v365, %v364
    %v378 = vpack.c.b16 %v367, %v366
    %v379 = vpack.c.b16 %v369, %v368
    %v380 = vpack.c.b16 %v371, %v370
    %v381 = vpack.c.b16 %v373, %v372
    %390 = vmatprep.subr.bf16.mxu0 0
    %391 = vmatpush1.bf16.msra.mxu0 %v381
    %392 = vmatprep.subr.bf16.mxu0 0
    %393 = vmatpush1.bf16.msra.mxu0 %v380
    %394 = vmatprep.subr.bf16.mxu0 0
    %395 = vmatpush1.bf16.msra.mxu0 %v379
    %396 = vmatprep.subr.bf16.mxu0 0
    %397 = vmatpush1.bf16.msra.mxu0 %v378
    %398 = vmatprep.subr.bf16.mxu0 0
    %399 = vmatpush1.bf16.msra.mxu0 %v377
    %400 = vmatprep.subr.bf16.mxu0 0
    %401 = vmatpush1.bf16.msra.mxu0 %v376
    %402 = vmatprep.subr.bf16.mxu0 0
    %403 = vmatpush1.bf16.msra.mxu0 %v375
    %404 = vmatprep.subr.bf16.mxu0 0
    %405 = vmatpush1.bf16.msra.mxu0 %v374
    %406 = vmatprep.subr.bf16.mxu0 0
    %407 = vmatpush2.bf16.msra.mxu0 0
    %408 = vmatprep.subr.bf16.mxu0 0
    %409 = vmatpush2.bf16.msra.mxu0 0
    %410 = vmatprep.subr.bf16.mxu0 0
    %411 = vmatpush2.bf16.msra.mxu0 0
    %412 = vmatprep.subr.bf16.mxu0 0
    %413 = vmatpush2.bf16.msra.mxu0 0
    %414 = vmatprep.subr.bf16.mxu0 0
    %415 = vmatpush2.bf16.msra.mxu0 0
    %416 = vmatprep.subr.bf16.mxu0 0
    %417 = vmatpush2.bf16.msra.mxu0 0
    %418 = vmatprep.subr.bf16.mxu0 0
    %419 = vmatpush2.bf16.msra.mxu0 0
    %420 = vmatprep.subr.bf16.mxu0 0
    %421 = vmatpush2.bf16.msra.mxu0 0
    %422 = vmatprep.mubr.bf16.mxu0 0
    %423 = vmatmul.mubr.bf16.gmra.mxu0 %v325
    %v424 = vpop.f32.mrf.mxu0
    %v425 = vadd.f32 0.0, %v424
    %v426 = vpop.f32.mrf.mxu0
    %v427 = vpop.f32.mrf.mxu0
    %v428 = vpop.f32.mrf.mxu0
    %429 = vdwg.mxu0
    %430 = vst [vmem:[#allocation2] sm:$0xf] %v425
    // Predicated region
    $region34: #{forward.13} parent=1 // pred_check
      _
    $region35: #{forward.13} parent=1 // pred_check_branch
      %432 = sbr.rel (0) target = $region37
    $region36: #{forward.13} parent=1 // pred_region
      %s434 = ssub.s32 64, 64
      %435 = vsyncadd [#allocation3], %s434
      %s437 = sshll.u32 [#allocation2], 4
      %s438 = int_to_ptr.vmem [resolvable:$true] %s437
      %440 = dma.vmem_to_hbm [thread:$0]  %s438, 64, %s8, [#allocation3]
    $region37: #{forward.13} parent=1 // pred_fallthru
      _
    // Predicated region
    $region38: #{forward.13} parent=1 // pred_check
      _
    $region39: #{forward.13} parent=1 // pred_check_branch
      %442 = sbr.rel (0) target = $region41
    $region40: #{forward.13} parent=1 // pred_region
      %443 = dma.done [#allocation3], 64
    $region41: #{forward.13} parent=1 // pred_fallthru
      _
    %444 = vsyncpa [#allocation3], 1

</llo_original>
